<compile_context>
chip_gen: v7x
topology: tpu7x:2x2x1
jax: 0.10.0
libtpu: 0.0.40
codegen_flags: <defaults>
</compile_context>

<pallas_src>
import functools

import jax
import jax.numpy as jnp
from jax.experimental import pallas as pl
from jax.experimental.pallas import tpu as pltpu

# --- model hyper-parameters (small, consistent with the module) ---
LAYERS = 2
EMB = 32
HEADS = 4
HEAD = EMB // HEADS
SEQ = 8
BATCH = 2
SCALE = HEAD ** -0.5
EPS = 1e-5          # nn.LayerNorm default
NEG = -1e30         # additive mask value for cross-batch positions


def _layernorm(v, g, b):
    mu = jnp.mean(v, axis=-1, keepdims=True)
    var = jnp.mean((v - mu) ** 2, axis=-1, keepdims=True)
    return (v - mu) * jax.lax.rsqrt(var + EPS) * g + b


def encoder_kernel(x_ref, mask_ref, wqkv_ref, bqkv_ref, wo_ref, vec_ref, o_ref,
                   *, layers, emb, heads, head, scale):
    """All encoder layers, whole batch, single invocation.

    x_ref    : (B*N, E)        tokens (batch folded)
    mask_ref : (B*N, B*N)      additive block-diagonal mask (0 / NEG)
    wqkv_ref : (L, E, 3E)      Wq|Wk|Wv per layer
    bqkv_ref : (L, 1, 3E)      bq|bk|bv per layer
    wo_ref   : (L, E, E)       output projection per layer
    vec_ref  : (L, 5, E)       rows: g1, b1, bo, g2, b2 per layer
    """
    x = x_ref[...].astype(jnp.float32)          # (B*N, E)
    mask = mask_ref[...]                        # (B*N, B*N), hoisted once

    for l in range(layers):                     # static unroll over layers
        wqkv = wqkv_ref[l]                      # (E, 3E)
        bqkv = bqkv_ref[l]                      # (1, 3E)
        wo = wo_ref[l]                          # (E, E)
        vecs = vec_ref[l]                       # (5, E)
        g1, b1 = vecs[0:1, :], vecs[1:2, :]
        bo = vecs[2:3, :]
        g2, b2 = vecs[3:4, :], vecs[4:5, :]

        # --- attention_norm + fused Q|K|V projection (one MXU push) ---
        xn = _layernorm(x, g1, b1)                                   # (B*N, E)
        qkv = jnp.dot(xn, wqkv, preferred_element_type=jnp.float32) + bqkv  # (B*N, 3E)

        # --- per-head attention; Wo folded per head (no concatenate) ---
        proj = None
        for h in range(heads):                  # static unroll over heads
            lo = h * head
            q_h = qkv[:, lo:lo + head]                               # (B*N, D)
            k_h = qkv[:, emb + lo:emb + lo + head]                   # (B*N, D)
            v_h = qkv[:, 2 * emb + lo:2 * emb + lo + head]           # (B*N, D)

            # scores over the whole folded batch; cross-batch entries masked
            s = jax.lax.dot_general(q_h, k_h, (((1,), (1,)), ((), ())),
                                    preferred_element_type=jnp.float32)
            s = s * scale + mask                                     # (B*N, B*N)
            s = s - jnp.max(s, axis=-1, keepdims=True)
            p = jnp.exp(s)
            p = p / jnp.sum(p, axis=-1, keepdims=True)

            o_h = jnp.dot(p, v_h, preferred_element_type=jnp.float32)        # (B*N, D)
            contrib = jnp.dot(o_h, wo[lo:lo + head, :],
                              preferred_element_type=jnp.float32)            # (B*N, E)
            proj = contrib if proj is None else proj + contrib

        # --- output bias + residual (attn dropout = identity) ---
        x1 = proj + bo + x
        # --- mlp_norm; FeedForwardBlock returns its input -> MLP is a no-op ---
        x = _layernorm(x1, g2, b2) + x1

    o_ref[...] = x.astype(o_ref.dtype)


def pack_params(layer_params):
    """Stack per-layer dict params into a few slabs for the fused kernel."""
    wqkv = jnp.stack([jnp.concatenate([p["wq"], p["wk"], p["wv"]], axis=1)
                      for p in layer_params])                        # (L, E, 3E)
    bqkv = jnp.stack([jnp.concatenate([p["bq"], p["bk"], p["bv"]], axis=1)
                      for p in layer_params])                        # (L, 1, 3E)
    wo = jnp.stack([p["wo"] for p in layer_params])                  # (L, E, E)
    vecs = jnp.stack([jnp.concatenate(
        [p["g1"], p["b1"], p["bo"], p["g2"], p["b2"]], axis=0)
        for p in layer_params])                                      # (L, 5, E)
    return wqkv, bqkv, wo, vecs


@jax.jit
def transformer_encoder(x, wqkv, bqkv, wo, vecs):
    B, N, E = x.shape
    L = wqkv.shape[0]
    assert E % HEADS == 0, "embedding size must be divisible by num_heads"
    assert wqkv.shape == (L, E, 3 * E)

    # additive block-diagonal mask so the whole batch shares one score matrix
    token_batch = jnp.arange(B * N, dtype=jnp.int32) // N
    mask = jnp.where(token_batch[:, None] == token_batch[None, :],
                     0.0, NEG).astype(jnp.float32)                   # (B*N, B*N)

    kern = functools.partial(encoder_kernel, layers=L, emb=E,
                             heads=HEADS, head=HEAD, scale=SCALE)
    vspec = pl.BlockSpec(memory_space=pltpu.MemorySpace.VMEM)
    out = pl.pallas_call(
        kern,
        out_shape=jax.ShapeDtypeStruct((B * N, E), x.dtype),
        in_specs=[vspec] * 6,
        out_specs=vspec,
    )(x.reshape(B * N, E), mask, wqkv, bqkv, wo, vecs)
    return out.reshape(B, N, E)


# ----------------- deterministic parameter init (synthetic) -----------------
def init_params(key, layers=LAYERS, emb=EMB):
    params = []
    for _ in range(layers):
        key, kq, kbq, kk, kbk, kv, kbv, ko, kbo = jax.random.split(key, 9)

        def w(k):
            # stored as (in, out): y = x @ W + b  (equivalent to torch's x @ W^T)
            return jax.random.normal(k, (emb, emb), jnp.float32) * 0.02

        def bvec(k):
            return jax.random.normal(k, (1, emb), jnp.float32) * 0.02

        params.append(dict(
            g1=jnp.ones((1, emb), jnp.float32), b1=jnp.zeros((1, emb), jnp.float32),
            wq=w(kq), bq=bvec(kbq),
            wk=w(kk), bk=bvec(kbk),
            wv=w(kv), bv=bvec(kbv),
            wo=w(ko), bo=bvec(kbo),
            g2=jnp.ones((1, emb), jnp.float32), b2=jnp.zeros((1, emb), jnp.float32),
        ))
        # NOTE: FeedForwardBlock (Linear/GELU/Linear) weights exist in the torch
        # module but never affect the forward output (it returns its input), so
        # they are intentionally not materialized here.
    return params


# ----------------- pure-JAX reference for a correctness check -----------------
def _ref_block(x, p):
    def ln(v, g, b):
        mu = v.mean(-1, keepdims=True)
        var = ((v - mu) ** 2).mean(-1, keepdims=True)
        return (v - mu) / jnp.sqrt(var + EPS) * g + b

    B, N, E = x.shape
    xn = ln(x, p["g1"], p["b1"])
    q = (xn @ p["wq"] + p["bq"]).reshape(B, N, HEADS, HEAD).transpose(0, 2, 1, 3)
    k = (xn @ p["wk"] + p["bk"]).reshape(B, N, HEADS, HEAD).transpose(0, 2, 1, 3)
    v = (xn @ p["wv"] + p["bv"]).reshape(B, N, HEADS, HEAD).transpose(0, 2, 1, 3)
    s = jnp.einsum("bhqd,bhkd->bhqk", q, k) * SCALE
    pr = jax.nn.softmax(s, axis=-1)
    o = jnp.einsum("bhqk,bhkd->bhqd", pr, v).transpose(0, 2, 1, 3).reshape(B, N, E)
    x1 = (o @ p["wo"] + p["bo"]) + x
    return ln(x1, p["g2"], p["b2"]) + x1


def _ref_encoder(x, layer_params):
    for p in layer_params:
        x = _ref_block(x, p)
    return x


if __name__ == "__main__":
    root = jax.random.PRNGKey(0)
    kx, kp = jax.random.split(root)
    x = jax.random.normal(kx, (BATCH, SEQ, EMB), jnp.float32)
    layer_params = init_params(kp)
    wqkv, bqkv, wo, vecs = pack_params(layer_params)

    out = jax.block_until_ready(transformer_encoder(x, wqkv, bqkv, wo, vecs))
    ref = jax.block_until_ready(_ref_encoder(x, layer_params))

    assert out.shape == (BATCH, SEQ, EMB)
    assert jnp.allclose(out, ref, atol=1e-4, rtol=1e-4), (
        f"max abs err {jnp.max(jnp.abs(out - ref))}")
    print("KERNEL_OK")
</pallas_src>

<mosaic_0001>
module attributes {stable_mosaic.version = 11 : i64} {
  func.func @encoder_kernel(%arg0: memref<16x32xf32, #tpu.memory_space<vmem>>, %arg1: memref<16x16xf32, #tpu.memory_space<vmem>>, %arg2: memref<2x32x96xf32, #tpu.memory_space<vmem>>, %arg3: memref<2x1x96xf32, #tpu.memory_space<vmem>>, %arg4: memref<2x32x32xf32, #tpu.memory_space<vmem>>, %arg5: memref<2x5x32xf32, #tpu.memory_space<vmem>>, %arg6: memref<16x32xf32, #tpu.memory_space<vmem>>) attributes {dimension_semantics = [], scalar_prefetch = 0 : i64, scratch_operands = 0 : i64, tpu.core_type = #tpu.core_type<tc>} {
    %c0 = arith.constant 0 : index
    %c0_0 = arith.constant 0 : index
    %0 = vector.load %arg0[%c0, %c0_0] : memref<16x32xf32, #tpu.memory_space<vmem>>, vector<16x32xf32>
    %c0_1 = arith.constant 0 : index
    %c0_2 = arith.constant 0 : index
    %1 = vector.load %arg1[%c0_1, %c0_2] : memref<16x16xf32, #tpu.memory_space<vmem>>, vector<16x16xf32>
    %c0_3 = arith.constant 0 : index
    %c0_4 = arith.constant 0 : index
    %c0_5 = arith.constant 0 : index
    %2 = vector.load %arg2[%c0_3, %c0_4, %c0_5] : memref<2x32x96xf32, #tpu.memory_space<vmem>>, vector<1x32x96xf32>
    %3 = vector.shape_cast %2 : vector<1x32x96xf32> to vector<32x96xf32>
    %c0_6 = arith.constant 0 : index
    %c0_7 = arith.constant 0 : index
    %c0_8 = arith.constant 0 : index
    %4 = vector.load %arg3[%c0_6, %c0_7, %c0_8] : memref<2x1x96xf32, #tpu.memory_space<vmem>>, vector<1x1x96xf32>
    %5 = vector.shape_cast %4 : vector<1x1x96xf32> to vector<1x96xf32>
    %c0_9 = arith.constant 0 : index
    %c0_10 = arith.constant 0 : index
    %c0_11 = arith.constant 0 : index
    %6 = vector.load %arg4[%c0_9, %c0_10, %c0_11] : memref<2x32x32xf32, #tpu.memory_space<vmem>>, vector<1x32x32xf32>
    %7 = vector.shape_cast %6 : vector<1x32x32xf32> to vector<32x32xf32>
    %c0_12 = arith.constant 0 : index
    %c0_13 = arith.constant 0 : index
    %c0_14 = arith.constant 0 : index
    %8 = vector.load %arg5[%c0_12, %c0_13, %c0_14] : memref<2x5x32xf32, #tpu.memory_space<vmem>>, vector<1x5x32xf32>
    %9 = vector.shape_cast %8 : vector<1x5x32xf32> to vector<5x32xf32>
    %10 = vector.extract_strided_slice %9 {offsets = [0, 0], sizes = [1, 32], strides = [1, 1]} : vector<5x32xf32> to vector<1x32xf32>
    %11 = vector.extract_strided_slice %9 {offsets = [1, 0], sizes = [1, 32], strides = [1, 1]} : vector<5x32xf32> to vector<1x32xf32>
    %12 = vector.extract_strided_slice %9 {offsets = [2, 0], sizes = [1, 32], strides = [1, 1]} : vector<5x32xf32> to vector<1x32xf32>
    %13 = vector.extract_strided_slice %9 {offsets = [3, 0], sizes = [1, 32], strides = [1, 1]} : vector<5x32xf32> to vector<1x32xf32>
    %14 = vector.extract_strided_slice %9 {offsets = [4, 0], sizes = [1, 32], strides = [1, 1]} : vector<5x32xf32> to vector<1x32xf32>
    %cst = arith.constant dense<0.000000e+00> : vector<16xf32>
    %15 = vector.multi_reduction <add>, %0, %cst [1] : vector<16x32xf32> to vector<16xf32>
    %16 = vector.shape_cast %15 : vector<16xf32> to vector<16x1xf32>
    %cst_15 = arith.constant 3.200000e+01 : f32
    %17 = vector.broadcast %cst_15 : f32 to vector<16x1xf32>
    %18 = arith.divf %16, %17 : vector<16x1xf32>
    %19 = vector.broadcast %18 : vector<16x1xf32> to vector<16x32xf32>
    %20 = arith.subf %0, %19 : vector<16x32xf32>
    %21 = arith.mulf %20, %20 : vector<16x32xf32>
    %cst_16 = arith.constant dense<0.000000e+00> : vector<16xf32>
    %22 = vector.multi_reduction <add>, %21, %cst_16 [1] : vector<16x32xf32> to vector<16xf32>
    %23 = vector.shape_cast %22 : vector<16xf32> to vector<16x1xf32>
    %cst_17 = arith.constant 3.200000e+01 : f32
    %24 = vector.broadcast %cst_17 : f32 to vector<16x1xf32>
    %25 = arith.divf %23, %24 : vector<16x1xf32>
    %26 = vector.broadcast %18 : vector<16x1xf32> to vector<16x32xf32>
    %27 = arith.subf %0, %26 : vector<16x32xf32>
    %cst_18 = arith.constant 9.99999974E-6 : f32
    %28 = vector.broadcast %cst_18 : f32 to vector<16x1xf32>
    %29 = arith.addf %25, %28 : vector<16x1xf32>
    %30 = math.rsqrt %29 : vector<16x1xf32>
    %31 = vector.broadcast %30 : vector<16x1xf32> to vector<16x32xf32>
    %32 = arith.mulf %27, %31 : vector<16x32xf32>
    %33 = vector.broadcast %10 : vector<1x32xf32> to vector<16x32xf32>
    %34 = arith.mulf %32, %33 : vector<16x32xf32>
    %35 = vector.broadcast %11 : vector<1x32xf32> to vector<16x32xf32>
    %36 = arith.addf %34, %35 : vector<16x32xf32>
    %cst_19 = arith.constant dense<0.000000e+00> : vector<16x96xf32>
    %37 = tpu.matmul %36, %3, %cst_19 {dimension_numbers = #tpu.dot_dimension_numbers<[1], [0], [0], [1], [0, 0, 1, 1], [], []>} : vector<16x32xf32>, vector<32x96xf32>, vector<16x96xf32> -> vector<16x96xf32>
    %38 = vector.broadcast %5 : vector<1x96xf32> to vector<16x96xf32>
    %39 = arith.addf %37, %38 : vector<16x96xf32>
    %40 = vector.extract_strided_slice %39 {offsets = [0, 0], sizes = [16, 8], strides = [1, 1]} : vector<16x96xf32> to vector<16x8xf32>
    %41 = vector.extract_strided_slice %39 {offsets = [0, 32], sizes = [16, 8], strides = [1, 1]} : vector<16x96xf32> to vector<16x8xf32>
    %42 = vector.extract_strided_slice %39 {offsets = [0, 64], sizes = [16, 8], strides = [1, 1]} : vector<16x96xf32> to vector<16x8xf32>
    %cst_20 = arith.constant dense<0.000000e+00> : vector<16x16xf32>
    %43 = tpu.matmul %40, %41, %cst_20 {dimension_numbers = #tpu.dot_dimension_numbers<[1], [1], [0], [0], [0, 0, 1, 0], [], []>} : vector<16x8xf32>, vector<16x8xf32>, vector<16x16xf32> -> vector<16x16xf32>
    %cst_21 = arith.constant 0.353553385 : f32
    %44 = vector.broadcast %cst_21 : f32 to vector<16x16xf32>
    %45 = arith.mulf %43, %44 : vector<16x16xf32>
    %46 = arith.addf %45, %1 : vector<16x16xf32>
    %cst_22 = arith.constant dense<0xFF800000> : vector<16xf32>
    %47 = vector.multi_reduction <maximumf>, %46, %cst_22 [1] : vector<16x16xf32> to vector<16xf32>
    %48 = vector.shape_cast %47 : vector<16xf32> to vector<16x1xf32>
    %49 = vector.broadcast %48 : vector<16x1xf32> to vector<16x16xf32>
    %50 = arith.subf %46, %49 : vector<16x16xf32>
    %51 = math.exp %50 : vector<16x16xf32>
    %cst_23 = arith.constant dense<0.000000e+00> : vector<16xf32>
    %52 = vector.multi_reduction <add>, %51, %cst_23 [1] : vector<16x16xf32> to vector<16xf32>
    %53 = vector.shape_cast %52 : vector<16xf32> to vector<16x1xf32>
    %54 = vector.broadcast %53 : vector<16x1xf32> to vector<16x16xf32>
    %55 = arith.divf %51, %54 : vector<16x16xf32>
    %cst_24 = arith.constant dense<0.000000e+00> : vector<16x8xf32>
    %56 = tpu.matmul %55, %42, %cst_24 {dimension_numbers = #tpu.dot_dimension_numbers<[1], [0], [0], [1], [0, 0, 1, 1], [], []>} : vector<16x16xf32>, vector<16x8xf32>, vector<16x8xf32> -> vector<16x8xf32>
    %57 = vector.extract_strided_slice %7 {offsets = [0, 0], sizes = [8, 32], strides = [1, 1]} : vector<32x32xf32> to vector<8x32xf32>
    %cst_25 = arith.constant dense<0.000000e+00> : vector<16x32xf32>
    %58 = tpu.matmul %56, %57, %cst_25 {dimension_numbers = #tpu.dot_dimension_numbers<[1], [0], [0], [1], [0, 0, 1, 1], [], []>} : vector<16x8xf32>, vector<8x32xf32>, vector<16x32xf32> -> vector<16x32xf32>
    %59 = vector.extract_strided_slice %39 {offsets = [0, 8], sizes = [16, 8], strides = [1, 1]} : vector<16x96xf32> to vector<16x8xf32>
    %60 = vector.extract_strided_slice %39 {offsets = [0, 40], sizes = [16, 8], strides = [1, 1]} : vector<16x96xf32> to vector<16x8xf32>
    %61 = vector.extract_strided_slice %39 {offsets = [0, 72], sizes = [16, 8], strides = [1, 1]} : vector<16x96xf32> to vector<16x8xf32>
    %cst_26 = arith.constant dense<0.000000e+00> : vector<16x16xf32>
    %62 = tpu.matmul %59, %60, %cst_26 {dimension_numbers = #tpu.dot_dimension_numbers<[1], [1], [0], [0], [0, 0, 1, 0], [], []>} : vector<16x8xf32>, vector<16x8xf32>, vector<16x16xf32> -> vector<16x16xf32>
    %cst_27 = arith.constant 0.353553385 : f32
    %63 = vector.broadcast %cst_27 : f32 to vector<16x16xf32>
    %64 = arith.mulf %62, %63 : vector<16x16xf32>
    %65 = arith.addf %64, %1 : vector<16x16xf32>
    %cst_28 = arith.constant dense<0xFF800000> : vector<16xf32>
    %66 = vector.multi_reduction <maximumf>, %65, %cst_28 [1] : vector<16x16xf32> to vector<16xf32>
    %67 = vector.shape_cast %66 : vector<16xf32> to vector<16x1xf32>
    %68 = vector.broadcast %67 : vector<16x1xf32> to vector<16x16xf32>
    %69 = arith.subf %65, %68 : vector<16x16xf32>
    %70 = math.exp %69 : vector<16x16xf32>
    %cst_29 = arith.constant dense<0.000000e+00> : vector<16xf32>
    %71 = vector.multi_reduction <add>, %70, %cst_29 [1] : vector<16x16xf32> to vector<16xf32>
    %72 = vector.shape_cast %71 : vector<16xf32> to vector<16x1xf32>
    %73 = vector.broadcast %72 : vector<16x1xf32> to vector<16x16xf32>
    %74 = arith.divf %70, %73 : vector<16x16xf32>
    %cst_30 = arith.constant dense<0.000000e+00> : vector<16x8xf32>
    %75 = tpu.matmul %74, %61, %cst_30 {dimension_numbers = #tpu.dot_dimension_numbers<[1], [0], [0], [1], [0, 0, 1, 1], [], []>} : vector<16x16xf32>, vector<16x8xf32>, vector<16x8xf32> -> vector<16x8xf32>
    %76 = vector.extract_strided_slice %7 {offsets = [8, 0], sizes = [8, 32], strides = [1, 1]} : vector<32x32xf32> to vector<8x32xf32>
    %cst_31 = arith.constant dense<0.000000e+00> : vector<16x32xf32>
    %77 = tpu.matmul %75, %76, %cst_31 {dimension_numbers = #tpu.dot_dimension_numbers<[1], [0], [0], [1], [0, 0, 1, 1], [], []>} : vector<16x8xf32>, vector<8x32xf32>, vector<16x32xf32> -> vector<16x32xf32>
    %78 = arith.addf %58, %77 : vector<16x32xf32>
    %79 = vector.extract_strided_slice %39 {offsets = [0, 16], sizes = [16, 8], strides = [1, 1]} : vector<16x96xf32> to vector<16x8xf32>
    %80 = vector.extract_strided_slice %39 {offsets = [0, 48], sizes = [16, 8], strides = [1, 1]} : vector<16x96xf32> to vector<16x8xf32>
    %81 = vector.extract_strided_slice %39 {offsets = [0, 80], sizes = [16, 8], strides = [1, 1]} : vector<16x96xf32> to vector<16x8xf32>
    %cst_32 = arith.constant dense<0.000000e+00> : vector<16x16xf32>
    %82 = tpu.matmul %79, %80, %cst_32 {dimension_numbers = #tpu.dot_dimension_numbers<[1], [1], [0], [0], [0, 0, 1, 0], [], []>} : vector<16x8xf32>, vector<16x8xf32>, vector<16x16xf32> -> vector<16x16xf32>
    %cst_33 = arith.constant 0.353553385 : f32
    %83 = vector.broadcast %cst_33 : f32 to vector<16x16xf32>
    %84 = arith.mulf %82, %83 : vector<16x16xf32>
    %85 = arith.addf %84, %1 : vector<16x16xf32>
    %cst_34 = arith.constant dense<0xFF800000> : vector<16xf32>
    %86 = vector.multi_reduction <maximumf>, %85, %cst_34 [1] : vector<16x16xf32> to vector<16xf32>
    %87 = vector.shape_cast %86 : vector<16xf32> to vector<16x1xf32>
    %88 = vector.broadcast %87 : vector<16x1xf32> to vector<16x16xf32>
    %89 = arith.subf %85, %88 : vector<16x16xf32>
    %90 = math.exp %89 : vector<16x16xf32>
    %cst_35 = arith.constant dense<0.000000e+00> : vector<16xf32>
    %91 = vector.multi_reduction <add>, %90, %cst_35 [1] : vector<16x16xf32> to vector<16xf32>
    %92 = vector.shape_cast %91 : vector<16xf32> to vector<16x1xf32>
    %93 = vector.broadcast %92 : vector<16x1xf32> to vector<16x16xf32>
    %94 = arith.divf %90, %93 : vector<16x16xf32>
    %cst_36 = arith.constant dense<0.000000e+00> : vector<16x8xf32>
    %95 = tpu.matmul %94, %81, %cst_36 {dimension_numbers = #tpu.dot_dimension_numbers<[1], [0], [0], [1], [0, 0, 1, 1], [], []>} : vector<16x16xf32>, vector<16x8xf32>, vector<16x8xf32> -> vector<16x8xf32>
    %96 = vector.extract_strided_slice %7 {offsets = [16, 0], sizes = [8, 32], strides = [1, 1]} : vector<32x32xf32> to vector<8x32xf32>
    %cst_37 = arith.constant dense<0.000000e+00> : vector<16x32xf32>
    %97 = tpu.matmul %95, %96, %cst_37 {dimension_numbers = #tpu.dot_dimension_numbers<[1], [0], [0], [1], [0, 0, 1, 1], [], []>} : vector<16x8xf32>, vector<8x32xf32>, vector<16x32xf32> -> vector<16x32xf32>
    %98 = arith.addf %78, %97 : vector<16x32xf32>
    %99 = vector.extract_strided_slice %39 {offsets = [0, 24], sizes = [16, 8], strides = [1, 1]} : vector<16x96xf32> to vector<16x8xf32>
    %100 = vector.extract_strided_slice %39 {offsets = [0, 56], sizes = [16, 8], strides = [1, 1]} : vector<16x96xf32> to vector<16x8xf32>
    %101 = vector.extract_strided_slice %39 {offsets = [0, 88], sizes = [16, 8], strides = [1, 1]} : vector<16x96xf32> to vector<16x8xf32>
    %cst_38 = arith.constant dense<0.000000e+00> : vector<16x16xf32>
    %102 = tpu.matmul %99, %100, %cst_38 {dimension_numbers = #tpu.dot_dimension_numbers<[1], [1], [0], [0], [0, 0, 1, 0], [], []>} : vector<16x8xf32>, vector<16x8xf32>, vector<16x16xf32> -> vector<16x16xf32>
    %cst_39 = arith.constant 0.353553385 : f32
    %103 = vector.broadcast %cst_39 : f32 to vector<16x16xf32>
    %104 = arith.mulf %102, %103 : vector<16x16xf32>
    %105 = arith.addf %104, %1 : vector<16x16xf32>
    %cst_40 = arith.constant dense<0xFF800000> : vector<16xf32>
    %106 = vector.multi_reduction <maximumf>, %105, %cst_40 [1] : vector<16x16xf32> to vector<16xf32>
    %107 = vector.shape_cast %106 : vector<16xf32> to vector<16x1xf32>
    %108 = vector.broadcast %107 : vector<16x1xf32> to vector<16x16xf32>
    %109 = arith.subf %105, %108 : vector<16x16xf32>
    %110 = math.exp %109 : vector<16x16xf32>
    %cst_41 = arith.constant dense<0.000000e+00> : vector<16xf32>
    %111 = vector.multi_reduction <add>, %110, %cst_41 [1] : vector<16x16xf32> to vector<16xf32>
    %112 = vector.shape_cast %111 : vector<16xf32> to vector<16x1xf32>
    %113 = vector.broadcast %112 : vector<16x1xf32> to vector<16x16xf32>
    %114 = arith.divf %110, %113 : vector<16x16xf32>
    %cst_42 = arith.constant dense<0.000000e+00> : vector<16x8xf32>
    %115 = tpu.matmul %114, %101, %cst_42 {dimension_numbers = #tpu.dot_dimension_numbers<[1], [0], [0], [1], [0, 0, 1, 1], [], []>} : vector<16x16xf32>, vector<16x8xf32>, vector<16x8xf32> -> vector<16x8xf32>
    %116 = vector.extract_strided_slice %7 {offsets = [24, 0], sizes = [8, 32], strides = [1, 1]} : vector<32x32xf32> to vector<8x32xf32>
    %cst_43 = arith.constant dense<0.000000e+00> : vector<16x32xf32>
    %117 = tpu.matmul %115, %116, %cst_43 {dimension_numbers = #tpu.dot_dimension_numbers<[1], [0], [0], [1], [0, 0, 1, 1], [], []>} : vector<16x8xf32>, vector<8x32xf32>, vector<16x32xf32> -> vector<16x32xf32>
    %118 = arith.addf %98, %117 : vector<16x32xf32>
    %119 = vector.broadcast %12 : vector<1x32xf32> to vector<16x32xf32>
    %120 = arith.addf %118, %119 : vector<16x32xf32>
    %121 = arith.addf %120, %0 : vector<16x32xf32>
    %cst_44 = arith.constant dense<0.000000e+00> : vector<16xf32>
    %122 = vector.multi_reduction <add>, %121, %cst_44 [1] : vector<16x32xf32> to vector<16xf32>
    %123 = vector.shape_cast %122 : vector<16xf32> to vector<16x1xf32>
    %cst_45 = arith.constant 3.200000e+01 : f32
    %124 = vector.broadcast %cst_45 : f32 to vector<16x1xf32>
    %125 = arith.divf %123, %124 : vector<16x1xf32>
    %126 = vector.broadcast %125 : vector<16x1xf32> to vector<16x32xf32>
    %127 = arith.subf %121, %126 : vector<16x32xf32>
    %128 = arith.mulf %127, %127 : vector<16x32xf32>
    %cst_46 = arith.constant dense<0.000000e+00> : vector<16xf32>
    %129 = vector.multi_reduction <add>, %128, %cst_46 [1] : vector<16x32xf32> to vector<16xf32>
    %130 = vector.shape_cast %129 : vector<16xf32> to vector<16x1xf32>
    %cst_47 = arith.constant 3.200000e+01 : f32
    %131 = vector.broadcast %cst_47 : f32 to vector<16x1xf32>
    %132 = arith.divf %130, %131 : vector<16x1xf32>
    %133 = vector.broadcast %125 : vector<16x1xf32> to vector<16x32xf32>
    %134 = arith.subf %121, %133 : vector<16x32xf32>
    %cst_48 = arith.constant 9.99999974E-6 : f32
    %135 = vector.broadcast %cst_48 : f32 to vector<16x1xf32>
    %136 = arith.addf %132, %135 : vector<16x1xf32>
    %137 = math.rsqrt %136 : vector<16x1xf32>
    %138 = vector.broadcast %137 : vector<16x1xf32> to vector<16x32xf32>
    %139 = arith.mulf %134, %138 : vector<16x32xf32>
    %140 = vector.broadcast %13 : vector<1x32xf32> to vector<16x32xf32>
    %141 = arith.mulf %139, %140 : vector<16x32xf32>
    %142 = vector.broadcast %14 : vector<1x32xf32> to vector<16x32xf32>
    %143 = arith.addf %141, %142 : vector<16x32xf32>
    %144 = arith.addf %143, %121 : vector<16x32xf32>
    %c1 = arith.constant 1 : index
    %c0_49 = arith.constant 0 : index
    %c0_50 = arith.constant 0 : index
    %145 = vector.load %arg2[%c1, %c0_49, %c0_50] : memref<2x32x96xf32, #tpu.memory_space<vmem>>, vector<1x32x96xf32>
    %146 = vector.shape_cast %145 : vector<1x32x96xf32> to vector<32x96xf32>
    %c1_51 = arith.constant 1 : index
    %c0_52 = arith.constant 0 : index
    %c0_53 = arith.constant 0 : index
    %147 = vector.load %arg3[%c1_51, %c0_52, %c0_53] : memref<2x1x96xf32, #tpu.memory_space<vmem>>, vector<1x1x96xf32>
    %148 = vector.shape_cast %147 : vector<1x1x96xf32> to vector<1x96xf32>
    %c1_54 = arith.constant 1 : index
    %c0_55 = arith.constant 0 : index
    %c0_56 = arith.constant 0 : index
    %149 = vector.load %arg4[%c1_54, %c0_55, %c0_56] : memref<2x32x32xf32, #tpu.memory_space<vmem>>, vector<1x32x32xf32>
    %150 = vector.shape_cast %149 : vector<1x32x32xf32> to vector<32x32xf32>
    %c1_57 = arith.constant 1 : index
    %c0_58 = arith.constant 0 : index
    %c0_59 = arith.constant 0 : index
    %151 = vector.load %arg5[%c1_57, %c0_58, %c0_59] : memref<2x5x32xf32, #tpu.memory_space<vmem>>, vector<1x5x32xf32>
    %152 = vector.shape_cast %151 : vector<1x5x32xf32> to vector<5x32xf32>
    %153 = vector.extract_strided_slice %152 {offsets = [0, 0], sizes = [1, 32], strides = [1, 1]} : vector<5x32xf32> to vector<1x32xf32>
    %154 = vector.extract_strided_slice %152 {offsets = [1, 0], sizes = [1, 32], strides = [1, 1]} : vector<5x32xf32> to vector<1x32xf32>
    %155 = vector.extract_strided_slice %152 {offsets = [2, 0], sizes = [1, 32], strides = [1, 1]} : vector<5x32xf32> to vector<1x32xf32>
    %156 = vector.extract_strided_slice %152 {offsets = [3, 0], sizes = [1, 32], strides = [1, 1]} : vector<5x32xf32> to vector<1x32xf32>
    %157 = vector.extract_strided_slice %152 {offsets = [4, 0], sizes = [1, 32], strides = [1, 1]} : vector<5x32xf32> to vector<1x32xf32>
    %cst_60 = arith.constant dense<0.000000e+00> : vector<16xf32>
    %158 = vector.multi_reduction <add>, %144, %cst_60 [1] : vector<16x32xf32> to vector<16xf32>
    %159 = vector.shape_cast %158 : vector<16xf32> to vector<16x1xf32>
    %cst_61 = arith.constant 3.200000e+01 : f32
    %160 = vector.broadcast %cst_61 : f32 to vector<16x1xf32>
    %161 = arith.divf %159, %160 : vector<16x1xf32>
    %162 = vector.broadcast %161 : vector<16x1xf32> to vector<16x32xf32>
    %163 = arith.subf %144, %162 : vector<16x32xf32>
    %164 = arith.mulf %163, %163 : vector<16x32xf32>
    %cst_62 = arith.constant dense<0.000000e+00> : vector<16xf32>
    %165 = vector.multi_reduction <add>, %164, %cst_62 [1] : vector<16x32xf32> to vector<16xf32>
    %166 = vector.shape_cast %165 : vector<16xf32> to vector<16x1xf32>
    %cst_63 = arith.constant 3.200000e+01 : f32
    %167 = vector.broadcast %cst_63 : f32 to vector<16x1xf32>
    %168 = arith.divf %166, %167 : vector<16x1xf32>
    %169 = vector.broadcast %161 : vector<16x1xf32> to vector<16x32xf32>
    %170 = arith.subf %144, %169 : vector<16x32xf32>
    %cst_64 = arith.constant 9.99999974E-6 : f32
    %171 = vector.broadcast %cst_64 : f32 to vector<16x1xf32>
    %172 = arith.addf %168, %171 : vector<16x1xf32>
    %173 = math.rsqrt %172 : vector<16x1xf32>
    %174 = vector.broadcast %173 : vector<16x1xf32> to vector<16x32xf32>
    %175 = arith.mulf %170, %174 : vector<16x32xf32>
    %176 = vector.broadcast %153 : vector<1x32xf32> to vector<16x32xf32>
    %177 = arith.mulf %175, %176 : vector<16x32xf32>
    %178 = vector.broadcast %154 : vector<1x32xf32> to vector<16x32xf32>
    %179 = arith.addf %177, %178 : vector<16x32xf32>
    %cst_65 = arith.constant dense<0.000000e+00> : vector<16x96xf32>
    %180 = tpu.matmul %179, %146, %cst_65 {dimension_numbers = #tpu.dot_dimension_numbers<[1], [0], [0], [1], [0, 0, 1, 1], [], []>} : vector<16x32xf32>, vector<32x96xf32>, vector<16x96xf32> -> vector<16x96xf32>
    %181 = vector.broadcast %148 : vector<1x96xf32> to vector<16x96xf32>
    %182 = arith.addf %180, %181 : vector<16x96xf32>
    %183 = vector.extract_strided_slice %182 {offsets = [0, 0], sizes = [16, 8], strides = [1, 1]} : vector<16x96xf32> to vector<16x8xf32>
    %184 = vector.extract_strided_slice %182 {offsets = [0, 32], sizes = [16, 8], strides = [1, 1]} : vector<16x96xf32> to vector<16x8xf32>
    %185 = vector.extract_strided_slice %182 {offsets = [0, 64], sizes = [16, 8], strides = [1, 1]} : vector<16x96xf32> to vector<16x8xf32>
    %cst_66 = arith.constant dense<0.000000e+00> : vector<16x16xf32>
    %186 = tpu.matmul %183, %184, %cst_66 {dimension_numbers = #tpu.dot_dimension_numbers<[1], [1], [0], [0], [0, 0, 1, 0], [], []>} : vector<16x8xf32>, vector<16x8xf32>, vector<16x16xf32> -> vector<16x16xf32>
    %cst_67 = arith.constant 0.353553385 : f32
    %187 = vector.broadcast %cst_67 : f32 to vector<16x16xf32>
    %188 = arith.mulf %186, %187 : vector<16x16xf32>
    %189 = arith.addf %188, %1 : vector<16x16xf32>
    %cst_68 = arith.constant dense<0xFF800000> : vector<16xf32>
    %190 = vector.multi_reduction <maximumf>, %189, %cst_68 [1] : vector<16x16xf32> to vector<16xf32>
    %191 = vector.shape_cast %190 : vector<16xf32> to vector<16x1xf32>
    %192 = vector.broadcast %191 : vector<16x1xf32> to vector<16x16xf32>
    %193 = arith.subf %189, %192 : vector<16x16xf32>
    %194 = math.exp %193 : vector<16x16xf32>
    %cst_69 = arith.constant dense<0.000000e+00> : vector<16xf32>
    %195 = vector.multi_reduction <add>, %194, %cst_69 [1] : vector<16x16xf32> to vector<16xf32>
    %196 = vector.shape_cast %195 : vector<16xf32> to vector<16x1xf32>
    %197 = vector.broadcast %196 : vector<16x1xf32> to vector<16x16xf32>
    %198 = arith.divf %194, %197 : vector<16x16xf32>
    %cst_70 = arith.constant dense<0.000000e+00> : vector<16x8xf32>
    %199 = tpu.matmul %198, %185, %cst_70 {dimension_numbers = #tpu.dot_dimension_numbers<[1], [0], [0], [1], [0, 0, 1, 1], [], []>} : vector<16x16xf32>, vector<16x8xf32>, vector<16x8xf32> -> vector<16x8xf32>
    %200 = vector.extract_strided_slice %150 {offsets = [0, 0], sizes = [8, 32], strides = [1, 1]} : vector<32x32xf32> to vector<8x32xf32>
    %cst_71 = arith.constant dense<0.000000e+00> : vector<16x32xf32>
    %201 = tpu.matmul %199, %200, %cst_71 {dimension_numbers = #tpu.dot_dimension_numbers<[1], [0], [0], [1], [0, 0, 1, 1], [], []>} : vector<16x8xf32>, vector<8x32xf32>, vector<16x32xf32> -> vector<16x32xf32>
    %202 = vector.extract_strided_slice %182 {offsets = [0, 8], sizes = [16, 8], strides = [1, 1]} : vector<16x96xf32> to vector<16x8xf32>
    %203 = vector.extract_strided_slice %182 {offsets = [0, 40], sizes = [16, 8], strides = [1, 1]} : vector<16x96xf32> to vector<16x8xf32>
    %204 = vector.extract_strided_slice %182 {offsets = [0, 72], sizes = [16, 8], strides = [1, 1]} : vector<16x96xf32> to vector<16x8xf32>
    %cst_72 = arith.constant dense<0.000000e+00> : vector<16x16xf32>
    %205 = tpu.matmul %202, %203, %cst_72 {dimension_numbers = #tpu.dot_dimension_numbers<[1], [1], [0], [0], [0, 0, 1, 0], [], []>} : vector<16x8xf32>, vector<16x8xf32>, vector<16x16xf32> -> vector<16x16xf32>
    %cst_73 = arith.constant 0.353553385 : f32
    %206 = vector.broadcast %cst_73 : f32 to vector<16x16xf32>
    %207 = arith.mulf %205, %206 : vector<16x16xf32>
    %208 = arith.addf %207, %1 : vector<16x16xf32>
    %cst_74 = arith.constant dense<0xFF800000> : vector<16xf32>
    %209 = vector.multi_reduction <maximumf>, %208, %cst_74 [1] : vector<16x16xf32> to vector<16xf32>
    %210 = vector.shape_cast %209 : vector<16xf32> to vector<16x1xf32>
    %211 = vector.broadcast %210 : vector<16x1xf32> to vector<16x16xf32>
    %212 = arith.subf %208, %211 : vector<16x16xf32>
    %213 = math.exp %212 : vector<16x16xf32>
    %cst_75 = arith.constant dense<0.000000e+00> : vector<16xf32>
    %214 = vector.multi_reduction <add>, %213, %cst_75 [1] : vector<16x16xf32> to vector<16xf32>
    %215 = vector.shape_cast %214 : vector<16xf32> to vector<16x1xf32>
    %216 = vector.broadcast %215 : vector<16x1xf32> to vector<16x16xf32>
    %217 = arith.divf %213, %216 : vector<16x16xf32>
    %cst_76 = arith.constant dense<0.000000e+00> : vector<16x8xf32>
    %218 = tpu.matmul %217, %204, %cst_76 {dimension_numbers = #tpu.dot_dimension_numbers<[1], [0], [0], [1], [0, 0, 1, 1], [], []>} : vector<16x16xf32>, vector<16x8xf32>, vector<16x8xf32> -> vector<16x8xf32>
    %219 = vector.extract_strided_slice %150 {offsets = [8, 0], sizes = [8, 32], strides = [1, 1]} : vector<32x32xf32> to vector<8x32xf32>
    %cst_77 = arith.constant dense<0.000000e+00> : vector<16x32xf32>
    %220 = tpu.matmul %218, %219, %cst_77 {dimension_numbers = #tpu.dot_dimension_numbers<[1], [0], [0], [1], [0, 0, 1, 1], [], []>} : vector<16x8xf32>, vector<8x32xf32>, vector<16x32xf32> -> vector<16x32xf32>
    %221 = arith.addf %201, %220 : vector<16x32xf32>
    %222 = vector.extract_strided_slice %182 {offsets = [0, 16], sizes = [16, 8], strides = [1, 1]} : vector<16x96xf32> to vector<16x8xf32>
    %223 = vector.extract_strided_slice %182 {offsets = [0, 48], sizes = [16, 8], strides = [1, 1]} : vector<16x96xf32> to vector<16x8xf32>
    %224 = vector.extract_strided_slice %182 {offsets = [0, 80], sizes = [16, 8], strides = [1, 1]} : vector<16x96xf32> to vector<16x8xf32>
    %cst_78 = arith.constant dense<0.000000e+00> : vector<16x16xf32>
    %225 = tpu.matmul %222, %223, %cst_78 {dimension_numbers = #tpu.dot_dimension_numbers<[1], [1], [0], [0], [0, 0, 1, 0], [], []>} : vector<16x8xf32>, vector<16x8xf32>, vector<16x16xf32> -> vector<16x16xf32>
    %cst_79 = arith.constant 0.353553385 : f32
    %226 = vector.broadcast %cst_79 : f32 to vector<16x16xf32>
    %227 = arith.mulf %225, %226 : vector<16x16xf32>
    %228 = arith.addf %227, %1 : vector<16x16xf32>
    %cst_80 = arith.constant dense<0xFF800000> : vector<16xf32>
    %229 = vector.multi_reduction <maximumf>, %228, %cst_80 [1] : vector<16x16xf32> to vector<16xf32>
    %230 = vector.shape_cast %229 : vector<16xf32> to vector<16x1xf32>
    %231 = vector.broadcast %230 : vector<16x1xf32> to vector<16x16xf32>
    %232 = arith.subf %228, %231 : vector<16x16xf32>
    %233 = math.exp %232 : vector<16x16xf32>
    %cst_81 = arith.constant dense<0.000000e+00> : vector<16xf32>
    %234 = vector.multi_reduction <add>, %233, %cst_81 [1] : vector<16x16xf32> to vector<16xf32>
    %235 = vector.shape_cast %234 : vector<16xf32> to vector<16x1xf32>
    %236 = vector.broadcast %235 : vector<16x1xf32> to vector<16x16xf32>
    %237 = arith.divf %233, %236 : vector<16x16xf32>
    %cst_82 = arith.constant dense<0.000000e+00> : vector<16x8xf32>
    %238 = tpu.matmul %237, %224, %cst_82 {dimension_numbers = #tpu.dot_dimension_numbers<[1], [0], [0], [1], [0, 0, 1, 1], [], []>} : vector<16x16xf32>, vector<16x8xf32>, vector<16x8xf32> -> vector<16x8xf32>
    %239 = vector.extract_strided_slice %150 {offsets = [16, 0], sizes = [8, 32], strides = [1, 1]} : vector<32x32xf32> to vector<8x32xf32>
    %cst_83 = arith.constant dense<0.000000e+00> : vector<16x32xf32>
    %240 = tpu.matmul %238, %239, %cst_83 {dimension_numbers = #tpu.dot_dimension_numbers<[1], [0], [0], [1], [0, 0, 1, 1], [], []>} : vector<16x8xf32>, vector<8x32xf32>, vector<16x32xf32> -> vector<16x32xf32>
    %241 = arith.addf %221, %240 : vector<16x32xf32>
    %242 = vector.extract_strided_slice %182 {offsets = [0, 24], sizes = [16, 8], strides = [1, 1]} : vector<16x96xf32> to vector<16x8xf32>
    %243 = vector.extract_strided_slice %182 {offsets = [0, 56], sizes = [16, 8], strides = [1, 1]} : vector<16x96xf32> to vector<16x8xf32>
    %244 = vector.extract_strided_slice %182 {offsets = [0, 88], sizes = [16, 8], strides = [1, 1]} : vector<16x96xf32> to vector<16x8xf32>
    %cst_84 = arith.constant dense<0.000000e+00> : vector<16x16xf32>
    %245 = tpu.matmul %242, %243, %cst_84 {dimension_numbers = #tpu.dot_dimension_numbers<[1], [1], [0], [0], [0, 0, 1, 0], [], []>} : vector<16x8xf32>, vector<16x8xf32>, vector<16x16xf32> -> vector<16x16xf32>
    %cst_85 = arith.constant 0.353553385 : f32
    %246 = vector.broadcast %cst_85 : f32 to vector<16x16xf32>
    %247 = arith.mulf %245, %246 : vector<16x16xf32>
    %248 = arith.addf %247, %1 : vector<16x16xf32>
    %cst_86 = arith.constant dense<0xFF800000> : vector<16xf32>
    %249 = vector.multi_reduction <maximumf>, %248, %cst_86 [1] : vector<16x16xf32> to vector<16xf32>
    %250 = vector.shape_cast %249 : vector<16xf32> to vector<16x1xf32>
    %251 = vector.broadcast %250 : vector<16x1xf32> to vector<16x16xf32>
    %252 = arith.subf %248, %251 : vector<16x16xf32>
    %253 = math.exp %252 : vector<16x16xf32>
    %cst_87 = arith.constant dense<0.000000e+00> : vector<16xf32>
    %254 = vector.multi_reduction <add>, %253, %cst_87 [1] : vector<16x16xf32> to vector<16xf32>
    %255 = vector.shape_cast %254 : vector<16xf32> to vector<16x1xf32>
    %256 = vector.broadcast %255 : vector<16x1xf32> to vector<16x16xf32>
    %257 = arith.divf %253, %256 : vector<16x16xf32>
    %cst_88 = arith.constant dense<0.000000e+00> : vector<16x8xf32>
    %258 = tpu.matmul %257, %244, %cst_88 {dimension_numbers = #tpu.dot_dimension_numbers<[1], [0], [0], [1], [0, 0, 1, 1], [], []>} : vector<16x16xf32>, vector<16x8xf32>, vector<16x8xf32> -> vector<16x8xf32>
    %259 = vector.extract_strided_slice %150 {offsets = [24, 0], sizes = [8, 32], strides = [1, 1]} : vector<32x32xf32> to vector<8x32xf32>
    %cst_89 = arith.constant dense<0.000000e+00> : vector<16x32xf32>
    %260 = tpu.matmul %258, %259, %cst_89 {dimension_numbers = #tpu.dot_dimension_numbers<[1], [0], [0], [1], [0, 0, 1, 1], [], []>} : vector<16x8xf32>, vector<8x32xf32>, vector<16x32xf32> -> vector<16x32xf32>
    %261 = arith.addf %241, %260 : vector<16x32xf32>
    %262 = vector.broadcast %155 : vector<1x32xf32> to vector<16x32xf32>
    %263 = arith.addf %261, %262 : vector<16x32xf32>
    %264 = arith.addf %263, %144 : vector<16x32xf32>
    %cst_90 = arith.constant dense<0.000000e+00> : vector<16xf32>
    %265 = vector.multi_reduction <add>, %264, %cst_90 [1] : vector<16x32xf32> to vector<16xf32>
    %266 = vector.shape_cast %265 : vector<16xf32> to vector<16x1xf32>
    %cst_91 = arith.constant 3.200000e+01 : f32
    %267 = vector.broadcast %cst_91 : f32 to vector<16x1xf32>
    %268 = arith.divf %266, %267 : vector<16x1xf32>
    %269 = vector.broadcast %268 : vector<16x1xf32> to vector<16x32xf32>
    %270 = arith.subf %264, %269 : vector<16x32xf32>
    %271 = arith.mulf %270, %270 : vector<16x32xf32>
    %cst_92 = arith.constant dense<0.000000e+00> : vector<16xf32>
    %272 = vector.multi_reduction <add>, %271, %cst_92 [1] : vector<16x32xf32> to vector<16xf32>
    %273 = vector.shape_cast %272 : vector<16xf32> to vector<16x1xf32>
    %cst_93 = arith.constant 3.200000e+01 : f32
    %274 = vector.broadcast %cst_93 : f32 to vector<16x1xf32>
    %275 = arith.divf %273, %274 : vector<16x1xf32>
    %276 = vector.broadcast %268 : vector<16x1xf32> to vector<16x32xf32>
    %277 = arith.subf %264, %276 : vector<16x32xf32>
    %cst_94 = arith.constant 9.99999974E-6 : f32
    %278 = vector.broadcast %cst_94 : f32 to vector<16x1xf32>
    %279 = arith.addf %275, %278 : vector<16x1xf32>
    %280 = math.rsqrt %279 : vector<16x1xf32>
    %281 = vector.broadcast %280 : vector<16x1xf32> to vector<16x32xf32>
    %282 = arith.mulf %277, %281 : vector<16x32xf32>
    %283 = vector.broadcast %156 : vector<1x32xf32> to vector<16x32xf32>
    %284 = arith.mulf %282, %283 : vector<16x32xf32>
    %285 = vector.broadcast %157 : vector<1x32xf32> to vector<16x32xf32>
    %286 = arith.addf %284, %285 : vector<16x32xf32>
    %287 = arith.addf %286, %264 : vector<16x32xf32>
    %c0_95 = arith.constant 0 : index
    %c0_96 = arith.constant 0 : index
    %288 = vector.load %arg6[%c0_95, %c0_96] : memref<16x32xf32, #tpu.memory_space<vmem>>, vector<16x32xf32>
    tpu.vector_store %arg6[%c0_95, %c0_96], %287 {strides = array<i32>} : memref<16x32xf32, #tpu.memory_space<vmem>>, vector<16x32xf32>,
    return
  }
}

</mosaic_0001>

<llo_original>
// kernel: transformer_encoder.1
$region0: #{transformer_encoder.1}
  #allocation0 [shape = 'u32[]', space=smem, size = 0x4, offset = 0x4, fixed_abs, tag = 'smem constant byte address 0x4 - core index']
  #allocation1 [shape = 'u32[144,128]{1,0:T(1,128)}', space=vmem, size = 0x12000, scoped, tag = 'internal scratch']
  %s0 = inlined_call_operand.vmem [shape: f32[16,32], index: 0, kind: input, shape index: {}]
  %s1 = inlined_call_operand.vmem [shape: f32[16,16], index: 1, kind: input, shape index: {}]
  %s2 = inlined_call_operand.hbm [shape: f32[2,32,96], index: 2, kind: input, shape index: {}]
  %s3 = inlined_call_operand.vmem [shape: f32[2,1,96], index: 3, kind: input, shape index: {}]
  %s4 = inlined_call_operand.hbm [shape: f32[2,32,32], index: 4, kind: input, shape index: {}]
  %s5 = inlined_call_operand.vmem [shape: f32[2,5,32], index: 5, kind: input, shape index: {}]
  %s6 = inlined_call_operand.hbm [shape: f32[16,32], index: 6, kind: output, shape index: {}]
  %s7 = sld [smem:[#allocation0]]
  $region42: #{transformer_encoder.1} parent=0
    _
  %s9 = ssub.s32 1, %s7
  %s10 = scalar_select 0, %s9, %s7
  $region1: #{transformer_encoder.1} parent=0
    #allocation2 [shape = 'u8[32768]{0}', space=vmem, size = 0x8000, scoped, tag = 'input window, operand 2, single buffered']
    #allocation3 [shape = 's32[1]{0}', space=sflag, size = 0x4, scoped, tag = 'scoped memory for transformer_encoder.1']
    #allocation4 [shape = 's32[1]{0}', space=sflag, size = 0x4, scoped, tag = 'scoped memory for transformer_encoder.1']
    #allocation5 [shape = 'u8[32768]{0}', space=vmem, size = 0x8000, scoped, tag = 'input window, operand 4, single buffered']
    #allocation6 [shape = 's32[1]{0}', space=sflag, size = 0x4, scoped, tag = 'scoped memory for transformer_encoder.1']
    #allocation7 [shape = 'u8[8192]{0}', space=vmem, size = 0x2000, scoped, tag = 'output window, operand 0, single buffered']
    %11 = vsyncpa [#allocation3], 0
    %12 = vsyncpa [#allocation6], 0
    %13 = vsyncpa [#allocation4], 0
    // Predicated region
    $region2: #{transformer_encoder.1} parent=1 // pred_check
      _
    $region3: #{transformer_encoder.1} parent=1 // pred_check_branch
      %15 = sbr.rel (0) target = $region5
    $region4: #{transformer_encoder.1} parent=1 // pred_region
      _
    $region5: #{transformer_encoder.1} parent=1 // pred_fallthru
      _
    // Predicated region
    $region6: #{transformer_encoder.1} parent=1 // pred_check
      _
    $region7: #{transformer_encoder.1} parent=1 // pred_check_branch
      %17 = sbr.rel (0) target = $region9
    $region8: #{transformer_encoder.1} parent=1 // pred_region
      _
    $region9: #{transformer_encoder.1} parent=1 // pred_fallthru
      _
    // Predicated region
    $region10: #{transformer_encoder.1} parent=1 // pred_check
      _
    $region11: #{transformer_encoder.1} parent=1 // pred_check_branch
      %19 = sbr.rel (0) target = $region13
    $region12: #{transformer_encoder.1} parent=1 // pred_region
      %s21 = ssub.s32 1024, 1024
      %22 = vsyncadd [#allocation3], %s21
      %s23 = sshll.u32 [#allocation2], 4
      %s24 = int_to_ptr.vmem [resolvable:$true] %s23
      %29 = dma.hbm_to_vmem [thread:$0]  %s2, 1024, %s24, [#allocation3], 128, 128, 8
    $region13: #{transformer_encoder.1} parent=1 // pred_fallthru
      _
    // Predicated region
    $region14: #{transformer_encoder.1} parent=1 // pred_check
      _
    $region15: #{transformer_encoder.1} parent=1 // pred_check_branch
      %31 = sbr.rel (0) target = $region17
    $region16: #{transformer_encoder.1} parent=1 // pred_region
      _
    $region17: #{transformer_encoder.1} parent=1 // pred_fallthru
      _
    // Predicated region
    $region18: #{transformer_encoder.1} parent=1 // pred_check
      _
    $region19: #{transformer_encoder.1} parent=1 // pred_check_branch
      %33 = sbr.rel (0) target = $region21
    $region20: #{transformer_encoder.1} parent=1 // pred_region
      %s35 = ssub.s32 1024, 1024
      %36 = vsyncadd [#allocation6], %s35
      %s37 = sshll.u32 [#allocation5], 4
      %s38 = int_to_ptr.vmem [resolvable:$true] %s37
      %43 = dma.hbm_to_vmem [thread:$0]  %s4, 1024, %s38, [#allocation6], 128, 128, 8
    $region21: #{transformer_encoder.1} parent=1 // pred_fallthru
      _
    // Predicated region
    $region22: #{transformer_encoder.1} parent=1 // pred_check
      _
    $region23: #{transformer_encoder.1} parent=1 // pred_check_branch
      %45 = sbr.rel (0) target = $region25
    $region24: #{transformer_encoder.1} parent=1 // pred_region
      _
    $region25: #{transformer_encoder.1} parent=1 // pred_fallthru
      _
    // Predicated region
    $region26: #{transformer_encoder.1} parent=1 // pred_check
      _
    $region27: #{transformer_encoder.1} parent=1 // pred_check_branch
      %47 = sbr.rel (0) target = $region29
    $region28: #{transformer_encoder.1} parent=1 // pred_region
      %48 = dma.done [#allocation3], 1024
    $region29: #{transformer_encoder.1} parent=1 // pred_fallthru
      _
    // Predicated region
    $region30: #{transformer_encoder.1} parent=1 // pred_check
      _
    $region31: #{transformer_encoder.1} parent=1 // pred_check_branch
      %50 = sbr.rel (0) target = $region33
    $region32: #{transformer_encoder.1} parent=1 // pred_region
      %51 = dma.done [#allocation6], 1024
    $region33: #{transformer_encoder.1} parent=1 // pred_fallthru
      _
    %v52 = vld [vmem:[%s0] sm:$0xff]
    %v53 = vld [vmem:[%s0 + $0x8] sm:$0xff]
    %v54 = vld [vmem:[%s1] sm:$0xff]
    %v55 = vld [vmem:[%s1 + $0x8] sm:$0xff]
    %v56 = vld [vmem:[#allocation2] sm:$0xff]
    %v57 = vld [vmem:[#allocation2 + $0x8] sm:$0xff]
    %v58 = vld [vmem:[#allocation2 + $0x10] sm:$0xff]
    %v59 = vld [vmem:[#allocation2 + $0x18] sm:$0xff]
    %v60 = vld [vmem:[%s3] sm:$0x1]
    %v61 = vld [vmem:[#allocation5] sm:$0xff]
    %v62 = vld [vmem:[#allocation5 + $0x8] sm:$0xff]
    %v63 = vld [vmem:[#allocation5 + $0x10] sm:$0xff]
    %v64 = vld [vmem:[#allocation5 + $0x18] sm:$0xff]
    %v65 = vld [vmem:[%s5] sm:$0x1f]
    %vm66 = vcmask 261120
    %v67 = vsel %vm66, %v52, 0.0
    %68 = vadd.xlane.f32.xlu0 %v67
    %v69 = vpop.xlane.xlu0 %68
    %v70 = vsel %vm66, %v53, 0.0
    %71 = vadd.xlane.f32.xlu0 %v70
    %v72 = vpop.xlane.xlu0 %71
    %v73 = vrcp.pop 32.0
    %v74 = vmul.f32 %v69, %v73
    %v75 = vmul.f32 %v72, %v73
    %v76 = vsub.f32 %v52, %v74
    %v77 = vsub.f32 %v53, %v75
    %v78 = vmul.f32 %v76, %v76
    %v79 = vmul.f32 %v77, %v77
    %v80 = vsel %vm66, %v78, 0.0
    %81 = vadd.xlane.f32.xlu0 %v80
    %v82 = vpop.xlane.xlu0 %81
    %v83 = vsel %vm66, %v79, 0.0
    %84 = vadd.xlane.f32.xlu0 %v83
    %v85 = vpop.xlane.xlu0 %84
    %v86 = vmul.f32 %v82, %v73
    %v87 = vmul.f32 %v85, %v73
    %v88 = vadd.f32 %v86, 1e-05
    %v89 = vadd.f32 %v87, 1e-05
    %v90 = vrsqrt.pop %v88
    %v91 = vrsqrt.pop %v89
    %v92 = vmul.f32 %v76, %v90
    %v93 = vmul.f32 %v77, %v91
    %v94 = vlaneseq
    %v95 = vshrl.u32 %v94, 7
    %v96 = vsub.s32 0, %v95
    %v97 = vrot.slane %v65, %v96
    %v98 = vmul.f32 %v92, %v97
    %v99 = vmul.f32 %v93, %v97
    %v100 = vlaneseq
    %v101 = vshrl.u32 %v100, 7
    %v102 = vsub.s32 1, %v101
    %v103 = vrot.slane %v65, %v102
    %v104 = vadd.f32 %v98, %v103
    %v105 = vadd.f32 %v99, %v103
    %v107 = vlaneseq
    %v108 = vshrl.u32 %v107, 7
    %v109 = vsub.s32 0, %v108
    %v110 = vrot.slane %v60, %v109
    %v113 = vsel %vm66, %v104, 0
    %v116 = vsel %vm66, %v105, 0
    %118 = vmatprep.subr.mxu0 0.0
    %119 = vmatpush1.msra.mxu0 %v56
    %120 = vmatprep.subr.mxu0 0.0
    %121 = vmatpush1.msra.mxu0 %v57
    %122 = vmatprep.subr.mxu0 0.0
    %123 = vmatpush1.msra.mxu0 %v58
    %124 = vmatprep.subr.mxu0 0.0
    %125 = vmatpush1.msra.mxu0 %v59
    %126 = vmatprep.subr.mxu0 0.0
    %127 = vmatpush1.msra.mxu0 0.0
    %128 = vmatprep.subr.mxu0 0.0
    %129 = vmatpush1.msra.mxu0 0.0
    %130 = vmatprep.subr.mxu0 0.0
    %131 = vmatpush1.msra.mxu0 0.0
    %132 = vmatprep.subr.mxu0 0.0
    %133 = vmatpush1.msra.mxu0 0.0
    %134 = vmatprep.subr.mxu0 0.0
    %135 = vmatpush1.msra.mxu0 0.0
    %136 = vmatprep.subr.mxu0 0.0
    %137 = vmatpush1.msra.mxu0 0.0
    %138 = vmatprep.subr.mxu0 0.0
    %139 = vmatpush1.msra.mxu0 0.0
    %140 = vmatprep.subr.mxu0 0.0
    %141 = vmatpush1.msra.mxu0 0.0
    %142 = vmatprep.subr.mxu0 0.0
    %143 = vmatpush1.msra.mxu0 0.0
    %144 = vmatprep.subr.mxu0 0.0
    %145 = vmatpush1.msra.mxu0 0.0
    %146 = vmatprep.subr.mxu0 0.0
    %147 = vmatpush1.msra.mxu0 0.0
    %148 = vmatprep.subr.mxu0 0.0
    %149 = vmatpush1.msra.mxu0 0.0
    %150 = vmatprep.subr.mxu0 0.0
    %151 = vmatpush1.msra.mxu0 0.0
    %152 = vmatprep.subr.mxu0 0.0
    %153 = vmatpush1.msra.mxu0 0.0
    %154 = vmatprep.subr.mxu0 0.0
    %155 = vmatpush1.msra.mxu0 0.0
    %156 = vmatprep.subr.mxu0 0.0
    %157 = vmatpush1.msra.mxu0 0.0
    %158 = vmatprep.subr.mxu0 0.0
    %159 = vmatpush1.msra.mxu0 0.0
    %160 = vmatprep.subr.mxu0 0.0
    %161 = vmatpush1.msra.mxu0 0.0
    %162 = vmatprep.subr.mxu0 0.0
    %163 = vmatpush1.msra.mxu0 0.0
    %164 = vmatprep.subr.mxu0 0.0
    %165 = vmatpush1.msra.mxu0 0.0
    %166 = vmatprep.subr.mxu0 0.0
    %167 = vmatpush1.msra.mxu0 0.0
    %168 = vmatprep.subr.mxu0 0.0
    %169 = vmatpush1.msra.mxu0 0.0
    %170 = vmatprep.subr.mxu0 0.0
    %171 = vmatpush1.msra.mxu0 0.0
    %172 = vmatprep.subr.mxu0 0.0
    %173 = vmatpush1.msra.mxu0 0.0
    %174 = vmatprep.subr.mxu0 0.0
    %175 = vmatpush1.msra.mxu0 0.0
    %176 = vmatprep.subr.mxu0 0.0
    %177 = vmatpush1.msra.mxu0 0.0
    %178 = vmatprep.subr.mxu0 0.0
    %179 = vmatpush1.msra.mxu0 0.0
    %180 = vmatprep.subr.mxu0 0.0
    %181 = vmatpush1.msra.mxu0 0.0
    %182 = vmatprep.mubr.f32.mxu0 0.0
    %183 = vmatmul.mubr.f32.gmra.mrb[0].mxu0 %v113
    %v184 = vpop.f32.mrb[0].mxu0
    %v185 = vadd.f32 %v110, %v184
    %v186 = vpop.f32.mrb[0].mxu0
    %187 = vmatprep.mubr.f32.mxu0 0.0
    %188 = vmatmul.mubr.f32.gmra.mrb[0].mxu0 %v116
    %v189 = vpop.f32.mrb[0].mxu0
    %v190 = vadd.f32 %v110, %v189
    %v191 = vpop.f32.mrb[0].mxu0
    %192 = vdwg.mxu0
    %195 = vrot.lane.b32.xlu0 %v185, 96
    %v196 = vpop.permute.xlu0 %195
    %197 = vrot.lane.b32.xlu0 %v190, 96
    %v198 = vpop.permute.xlu0 %197
    %vm199 = vcmask 64512
    %v200 = vsel %vm199, %v185, 0
    %v202 = vsel %vm199, %v190, 0
    %v204 = vsel %vm199, %v196, 0
    %v206 = vsel %vm199, %v198, 0
    %208 = vmatprep.subr.mxu0 0.0
    %209 = vmatpush1.xpose.msra.mxu0 %v204
    %210 = vmatprep.subr.mxu0 0.0
    %211 = vmatpush1.xpose.msra.mxu0 %v206
    %212 = vmatprep.subr.mxu0 0.0
    %213 = vmatpush1.xpose.msra.mxu0 0.0
    %214 = vmatprep.subr.mxu0 0.0
    %215 = vmatpush1.xpose.msra.mxu0 0.0
    %216 = vmatprep.subr.mxu0 0.0
    %217 = vmatpush1.xpose.msra.mxu0 0.0
    %218 = vmatprep.subr.mxu0 0.0
    %219 = vmatpush1.xpose.msra.mxu0 0.0
    %220 = vmatprep.subr.mxu0 0.0
    %221 = vmatpush1.xpose.msra.mxu0 0.0
    %222 = vmatprep.subr.mxu0 0.0
    %223 = vmatpush1.xpose.msra.mxu0 0.0
    %224 = vmatprep.subr.mxu0 0.0
    %225 = vmatpush1.xpose.msra.mxu0 0.0
    %226 = vmatprep.subr.mxu0 0.0
    %227 = vmatpush1.xpose.msra.mxu0 0.0
    %228 = vmatprep.subr.mxu0 0.0
    %229 = vmatpush1.xpose.msra.mxu0 0.0
    %230 = vmatprep.subr.mxu0 0.0
    %231 = vmatpush1.xpose.msra.mxu0 0.0
    %232 = vmatprep.subr.mxu0 0.0
    %233 = vmatpush1.xpose.msra.mxu0 0.0
    %234 = vmatprep.subr.mxu0 0.0
    %235 = vmatpush1.xpose.msra.mxu0 0.0
    %236 = vmatprep.subr.mxu0 0.0
    %237 = vmatpush1.xpose.msra.mxu0 0.0
    %238 = vmatprep.subr.mxu0 0.0
    %239 = vmatpush1.xpose.msra.mxu0 0.0
    %240 = vmatprep.subr.mxu0 0.0
    %241 = vmatpush1.xpose.msra.mxu0 0.0
    %242 = vmatprep.subr.mxu0 0.0
    %243 = vmatpush1.xpose.msra.mxu0 0.0
    %244 = vmatprep.subr.mxu0 0.0
    %245 = vmatpush1.xpose.msra.mxu0 0.0
    %246 = vmatprep.subr.mxu0 0.0
    %247 = vmatpush1.xpose.msra.mxu0 0.0
    %248 = vmatprep.subr.mxu0 0.0
    %249 = vmatpush1.xpose.msra.mxu0 0.0
    %250 = vmatprep.subr.mxu0 0.0
    %251 = vmatpush1.xpose.msra.mxu0 0.0
    %252 = vmatprep.subr.mxu0 0.0
    %253 = vmatpush1.xpose.msra.mxu0 0.0
    %254 = vmatprep.subr.mxu0 0.0
    %255 = vmatpush1.xpose.msra.mxu0 0.0
    %256 = vmatprep.subr.mxu0 0.0
    %257 = vmatpush1.xpose.msra.mxu0 0.0
    %258 = vmatprep.subr.mxu0 0.0
    %259 = vmatpush1.xpose.msra.mxu0 0.0
    %260 = vmatprep.subr.mxu0 0.0
    %261 = vmatpush1.xpose.msra.mxu0 0.0
    %262 = vmatprep.subr.mxu0 0.0
    %263 = vmatpush1.xpose.msra.mxu0 0.0
    %264 = vmatprep.subr.mxu0 0.0
    %265 = vmatpush1.xpose.msra.mxu0 0.0
    %266 = vmatprep.subr.mxu0 0.0
    %267 = vmatpush1.xpose.msra.mxu0 0.0
    %268 = vmatprep.subr.mxu0 0.0
    %269 = vmatpush1.xpose.msra.mxu0 0.0
    %270 = vmatprep.subr.mxu0 0.0
    %271 = vmatpush1.xpose.msra.mxu0 0.0
    %272 = vmatprep.mubr.f32.mxu0 0.0
    %273 = vmatmul.mubr.f32.gmra.mrb[0].mxu0 %v200
    %v274 = vpop.f32.mrb[0].mxu0
    %v275 = vadd.f32 0.0, %v274
    %v276 = vpop.f32.mrb[0].mxu0
    %277 = vmatprep.mubr.f32.mxu0 0.0
    %278 = vmatmul.mubr.f32.gmra.mrb[0].mxu0 %v202
    %v279 = vpop.f32.mrb[0].mxu0
    %v280 = vadd.f32 0.0, %v279
    %v281 = vpop.f32.mrb[0].mxu0
    %282 = vdwg.mxu0
    %v283 = vmul.f32 %v275, 0.35355338
    %v284 = vmul.f32 %v280, 0.35355338
    %v285 = vadd.f32 %v283, %v54
    %v286 = vadd.f32 %v284, %v55
    %vm287 = vcmask 130048
    %v288 = vsel %vm287, %v285, -inf
    %289 = vmax.xlane.f32.xlu0 %v288
    %v290 = vpop.xlane.xlu0 %289
    %v291 = vsel %vm287, %v286, -inf
    %292 = vmax.xlane.f32.xlu0 %v291
    %v293 = vpop.xlane.xlu0 %292
    %v294 = vsub.f32 %v285, %v290
    %v295 = vsub.f32 %v286, %v293
    %v296 = vmul.f32 %v294, 1.442695
    %v297 = vpow.pop %v296
    %v298 = vmul.f32 %v295, 1.442695
    %v299 = vpow.pop %v298
    %v300 = vsel %vm287, %v297, 0.0
    %301 = vadd.xlane.f32.xlu0 %v300
    %v302 = vpop.xlane.xlu0 %301
    %v303 = vsel %vm287, %v299, 0.0
    %304 = vadd.xlane.f32.xlu0 %v303
    %v305 = vpop.xlane.xlu0 %304
    %v306 = vrcp.pop %v302
    %v307 = vmul.f32 %v297, %v306
    %v308 = vrcp.pop %v305
    %v309 = vmul.f32 %v299, %v308
    %310 = vrot.lane.b32.xlu0 %v185, 64
    %v311 = vpop.permute.xlu0 %310
    %312 = vrot.lane.b32.xlu0 %v190, 64
    %v313 = vpop.permute.xlu0 %312
    %v317 = vsel %vm287, %v307, 0
    %v320 = vsel %vm287, %v309, 0
    %322 = vmatprep.subr.mxu0 0.0
    %323 = vmatpush1.msra.mxu0 %v311
    %324 = vmatprep.subr.mxu0 0.0
    %325 = vmatpush1.msra.mxu0 %v313
    %326 = vmatprep.subr.mxu0 0.0
    %327 = vmatpush1.msra.mxu0 0.0
    %328 = vmatprep.subr.mxu0 0.0
    %329 = vmatpush1.msra.mxu0 0.0
    %330 = vmatprep.subr.mxu0 0.0
    %331 = vmatpush1.msra.mxu0 0.0
    %332 = vmatprep.subr.mxu0 0.0
    %333 = vmatpush1.msra.mxu0 0.0
    %334 = vmatprep.subr.mxu0 0.0
    %335 = vmatpush1.msra.mxu0 0.0
    %336 = vmatprep.subr.mxu0 0.0
    %337 = vmatpush1.msra.mxu0 0.0
    %338 = vmatprep.subr.mxu0 0.0
    %339 = vmatpush1.msra.mxu0 0.0
    %340 = vmatprep.subr.mxu0 0.0
    %341 = vmatpush1.msra.mxu0 0.0
    %342 = vmatprep.subr.mxu0 0.0
    %343 = vmatpush1.msra.mxu0 0.0
    %344 = vmatprep.subr.mxu0 0.0
    %345 = vmatpush1.msra.mxu0 0.0
    %346 = vmatprep.subr.mxu0 0.0
    %347 = vmatpush1.msra.mxu0 0.0
    %348 = vmatprep.subr.mxu0 0.0
    %349 = vmatpush1.msra.mxu0 0.0
    %350 = vmatprep.subr.mxu0 0.0
    %351 = vmatpush1.msra.mxu0 0.0
    %352 = vmatprep.subr.mxu0 0.0
    %353 = vmatpush1.msra.mxu0 0.0
    %354 = vmatprep.subr.mxu0 0.0
    %355 = vmatpush1.msra.mxu0 0.0
    %356 = vmatprep.subr.mxu0 0.0
    %357 = vmatpush1.msra.mxu0 0.0
    %358 = vmatprep.subr.mxu0 0.0
    %359 = vmatpush1.msra.mxu0 0.0
    %360 = vmatprep.subr.mxu0 0.0
    %361 = vmatpush1.msra.mxu0 0.0
    %362 = vmatprep.subr.mxu0 0.0
    %363 = vmatpush1.msra.mxu0 0.0
    %364 = vmatprep.subr.mxu0 0.0
    %365 = vmatpush1.msra.mxu0 0.0
    %366 = vmatprep.subr.mxu0 0.0
    %367 = vmatpush1.msra.mxu0 0.0
    %368 = vmatprep.subr.mxu0 0.0
    %369 = vmatpush1.msra.mxu0 0.0
    %370 = vmatprep.subr.mxu0 0.0
    %371 = vmatpush1.msra.mxu0 0.0
    %372 = vmatprep.subr.mxu0 0.0
    %373 = vmatpush1.msra.mxu0 0.0
    %374 = vmatprep.subr.mxu0 0.0
    %375 = vmatpush1.msra.mxu0 0.0
    %376 = vmatprep.subr.mxu0 0.0
    %377 = vmatpush1.msra.mxu0 0.0
    %378 = vmatprep.subr.mxu0 0.0
    %379 = vmatpush1.msra.mxu0 0.0
    %380 = vmatprep.subr.mxu0 0.0
    %381 = vmatpush1.msra.mxu0 0.0
    %382 = vmatprep.subr.mxu0 0.0
    %383 = vmatpush1.msra.mxu0 0.0
    %384 = vmatprep.subr.mxu0 0.0
    %385 = vmatpush1.msra.mxu0 0.0
    %386 = vmatprep.mubr.f32.mxu0 0.0
    %387 = vmatmul.mubr.f32.gmra.mrb[0].mxu0 %v317
    %v388 = vpop.f32.mrb[0].mxu0
    %v389 = vadd.f32 0.0, %v388
    %v390 = vpop.f32.mrb[0].mxu0
    %391 = vmatprep.mubr.f32.mxu0 0.0
    %392 = vmatmul.mubr.f32.gmra.mrb[0].mxu0 %v320
    %v393 = vpop.f32.mrb[0].mxu0
    %v394 = vadd.f32 0.0, %v393
    %v395 = vpop.f32.mrb[0].mxu0
    %396 = vdwg.mxu0
    %397 = vrot.lane.b32.xlu0 %v185, 120
    %v398 = vpop.permute.xlu0 %397
    %399 = vrot.lane.b32.xlu0 %v190, 120
    %v400 = vpop.permute.xlu0 %399
    %401 = vrot.lane.b32.xlu0 %v185, 88
    %v402 = vpop.permute.xlu0 %401
    %403 = vrot.lane.b32.xlu0 %v190, 88
    %v404 = vpop.permute.xlu0 %403
    %v405 = vsel %vm199, %v398, 0
    %v407 = vsel %vm199, %v400, 0
    %v409 = vsel %vm199, %v402, 0
    %v411 = vsel %vm199, %v404, 0
    %413 = vmatprep.subr.mxu0 0.0
    %414 = vmatpush1.xpose.msra.mxu0 %v409
    %415 = vmatprep.subr.mxu0 0.0
    %416 = vmatpush1.xpose.msra.mxu0 %v411
    %417 = vmatprep.subr.mxu0 0.0
    %418 = vmatpush1.xpose.msra.mxu0 0.0
    %419 = vmatprep.subr.mxu0 0.0
    %420 = vmatpush1.xpose.msra.mxu0 0.0
    %421 = vmatprep.subr.mxu0 0.0
    %422 = vmatpush1.xpose.msra.mxu0 0.0
    %423 = vmatprep.subr.mxu0 0.0
    %424 = vmatpush1.xpose.msra.mxu0 0.0
    %425 = vmatprep.subr.mxu0 0.0
    %426 = vmatpush1.xpose.msra.mxu0 0.0
    %427 = vmatprep.subr.mxu0 0.0
    %428 = vmatpush1.xpose.msra.mxu0 0.0
    %429 = vmatprep.subr.mxu0 0.0
    %430 = vmatpush1.xpose.msra.mxu0 0.0
    %431 = vmatprep.subr.mxu0 0.0
    %432 = vmatpush1.xpose.msra.mxu0 0.0
    %433 = vmatprep.subr.mxu0 0.0
    %434 = vmatpush1.xpose.msra.mxu0 0.0
    %435 = vmatprep.subr.mxu0 0.0
    %436 = vmatpush1.xpose.msra.mxu0 0.0
    %437 = vmatprep.subr.mxu0 0.0
    %438 = vmatpush1.xpose.msra.mxu0 0.0
    %439 = vmatprep.subr.mxu0 0.0
    %440 = vmatpush1.xpose.msra.mxu0 0.0
    %441 = vmatprep.subr.mxu0 0.0
    %442 = vmatpush1.xpose.msra.mxu0 0.0
    %443 = vmatprep.subr.mxu0 0.0
    %444 = vmatpush1.xpose.msra.mxu0 0.0
    %445 = vmatprep.subr.mxu0 0.0
    %446 = vmatpush1.xpose.msra.mxu0 0.0
    %447 = vmatprep.subr.mxu0 0.0
    %448 = vmatpush1.xpose.msra.mxu0 0.0
    %449 = vmatprep.subr.mxu0 0.0
    %450 = vmatpush1.xpose.msra.mxu0 0.0
    %451 = vmatprep.subr.mxu0 0.0
    %452 = vmatpush1.xpose.msra.mxu0 0.0
    %453 = vmatprep.subr.mxu0 0.0
    %454 = vmatpush1.xpose.msra.mxu0 0.0
    %455 = vmatprep.subr.mxu0 0.0
    %456 = vmatpush1.xpose.msra.mxu0 0.0
    %457 = vmatprep.subr.mxu0 0.0
    %458 = vmatpush1.xpose.msra.mxu0 0.0
    %459 = vmatprep.subr.mxu0 0.0
    %460 = vmatpush1.xpose.msra.mxu0 0.0
    %461 = vmatprep.subr.mxu0 0.0
    %462 = vmatpush1.xpose.msra.mxu0 0.0
    %463 = vmatprep.subr.mxu0 0.0
    %464 = vmatpush1.xpose.msra.mxu0 0.0
    %465 = vmatprep.subr.mxu0 0.0
    %466 = vmatpush1.xpose.msra.mxu0 0.0
    %467 = vmatprep.subr.mxu0 0.0
    %468 = vmatpush1.xpose.msra.mxu0 0.0
    %469 = vmatprep.subr.mxu0 0.0
    %470 = vmatpush1.xpose.msra.mxu0 0.0
    %471 = vmatprep.subr.mxu0 0.0
    %472 = vmatpush1.xpose.msra.mxu0 0.0
    %473 = vmatprep.subr.mxu0 0.0
    %474 = vmatpush1.xpose.msra.mxu0 0.0
    %475 = vmatprep.subr.mxu0 0.0
    %476 = vmatpush1.xpose.msra.mxu0 0.0
    %477 = vmatprep.mubr.f32.mxu0 0.0
    %478 = vmatmul.mubr.f32.gmra.mrb[0].mxu0 %v405
    %v479 = vpop.f32.mrb[0].mxu0
    %v480 = vadd.f32 0.0, %v479
    %v481 = vpop.f32.mrb[0].mxu0
    %482 = vmatprep.mubr.f32.mxu0 0.0
    %483 = vmatmul.mubr.f32.gmra.mrb[0].mxu0 %v407
    %v484 = vpop.f32.mrb[0].mxu0
    %v485 = vadd.f32 0.0, %v484
    %v486 = vpop.f32.mrb[0].mxu0
    %487 = vdwg.mxu0
    %v488 = vmul.f32 %v480, 0.35355338
    %v489 = vmul.f32 %v485, 0.35355338
    %v490 = vadd.f32 %v488, %v54
    %v491 = vadd.f32 %v489, %v55
    %v492 = vsel %vm287, %v490, -inf
    %493 = vmax.xlane.f32.xlu0 %v492
    %v494 = vpop.xlane.xlu0 %493
    %v495 = vsel %vm287, %v491, -inf
    %496 = vmax.xlane.f32.xlu0 %v495
    %v497 = vpop.xlane.xlu0 %496
    %v498 = vsub.f32 %v490, %v494
    %v499 = vsub.f32 %v491, %v497
    %v500 = vmul.f32 %v498, 1.442695
    %v501 = vpow.pop %v500
    %v502 = vmul.f32 %v499, 1.442695
    %v503 = vpow.pop %v502
    %v504 = vsel %vm287, %v501, 0.0
    %505 = vadd.xlane.f32.xlu0 %v504
    %v506 = vpop.xlane.xlu0 %505
    %v507 = vsel %vm287, %v503, 0.0
    %508 = vadd.xlane.f32.xlu0 %v507
    %v509 = vpop.xlane.xlu0 %508
    %v510 = vrcp.pop %v506
    %v511 = vmul.f32 %v501, %v510
    %v512 = vrcp.pop %v509
    %v513 = vmul.f32 %v503, %v512
    %514 = vrot.lane.b32.xlu0 %v185, 56
    %v515 = vpop.permute.xlu0 %514
    %516 = vrot.lane.b32.xlu0 %v190, 56
    %v517 = vpop.permute.xlu0 %516
    %v521 = vsel %vm287, %v511, 0
    %v524 = vsel %vm287, %v513, 0
    %526 = vmatprep.subr.mxu0 0.0
    %527 = vmatpush1.msra.mxu0 %v515
    %528 = vmatprep.subr.mxu0 0.0
    %529 = vmatpush1.msra.mxu0 %v517
    %530 = vmatprep.subr.mxu0 0.0
    %531 = vmatpush1.msra.mxu0 0.0
    %532 = vmatprep.subr.mxu0 0.0
    %533 = vmatpush1.msra.mxu0 0.0
    %534 = vmatprep.subr.mxu0 0.0
    %535 = vmatpush1.msra.mxu0 0.0
    %536 = vmatprep.subr.mxu0 0.0
    %537 = vmatpush1.msra.mxu0 0.0
    %538 = vmatprep.subr.mxu0 0.0
    %539 = vmatpush1.msra.mxu0 0.0
    %540 = vmatprep.subr.mxu0 0.0
    %541 = vmatpush1.msra.mxu0 0.0
    %542 = vmatprep.subr.mxu0 0.0
    %543 = vmatpush1.msra.mxu0 0.0
    %544 = vmatprep.subr.mxu0 0.0
    %545 = vmatpush1.msra.mxu0 0.0
    %546 = vmatprep.subr.mxu0 0.0
    %547 = vmatpush1.msra.mxu0 0.0
    %548 = vmatprep.subr.mxu0 0.0
    %549 = vmatpush1.msra.mxu0 0.0
    %550 = vmatprep.subr.mxu0 0.0
    %551 = vmatpush1.msra.mxu0 0.0
    %552 = vmatprep.subr.mxu0 0.0
    %553 = vmatpush1.msra.mxu0 0.0
    %554 = vmatprep.subr.mxu0 0.0
    %555 = vmatpush1.msra.mxu0 0.0
    %556 = vmatprep.subr.mxu0 0.0
    %557 = vmatpush1.msra.mxu0 0.0
    %558 = vmatprep.subr.mxu0 0.0
    %559 = vmatpush1.msra.mxu0 0.0
    %560 = vmatprep.subr.mxu0 0.0
    %561 = vmatpush1.msra.mxu0 0.0
    %562 = vmatprep.subr.mxu0 0.0
    %563 = vmatpush1.msra.mxu0 0.0
    %564 = vmatprep.subr.mxu0 0.0
    %565 = vmatpush1.msra.mxu0 0.0
    %566 = vmatprep.subr.mxu0 0.0
    %567 = vmatpush1.msra.mxu0 0.0
    %568 = vmatprep.subr.mxu0 0.0
    %569 = vmatpush1.msra.mxu0 0.0
    %570 = vmatprep.subr.mxu0 0.0
    %571 = vmatpush1.msra.mxu0 0.0
    %572 = vmatprep.subr.mxu0 0.0
    %573 = vmatpush1.msra.mxu0 0.0
    %574 = vmatprep.subr.mxu0 0.0
    %575 = vmatpush1.msra.mxu0 0.0
    %576 = vmatprep.subr.mxu0 0.0
    %577 = vmatpush1.msra.mxu0 0.0
    %578 = vmatprep.subr.mxu0 0.0
    %579 = vmatpush1.msra.mxu0 0.0
    %580 = vmatprep.subr.mxu0 0.0
    %581 = vmatpush1.msra.mxu0 0.0
    %582 = vmatprep.subr.mxu0 0.0
    %583 = vmatpush1.msra.mxu0 0.0
    %584 = vmatprep.subr.mxu0 0.0
    %585 = vmatpush1.msra.mxu0 0.0
    %586 = vmatprep.subr.mxu0 0.0
    %587 = vmatpush1.msra.mxu0 0.0
    %588 = vmatprep.subr.mxu0 0.0
    %589 = vmatpush1.msra.mxu0 0.0
    %590 = vmatprep.mubr.f32.mxu0 0.0
    %591 = vmatmul.mubr.f32.gmra.mrb[0].mxu0 %v521
    %v592 = vpop.f32.mrb[0].mxu0
    %v593 = vadd.f32 0.0, %v592
    %v594 = vpop.f32.mrb[0].mxu0
    %595 = vmatprep.mubr.f32.mxu0 0.0
    %596 = vmatmul.mubr.f32.gmra.mrb[0].mxu0 %v524
    %v597 = vpop.f32.mrb[0].mxu0
    %v598 = vadd.f32 0.0, %v597
    %v599 = vpop.f32.mrb[0].mxu0
    %600 = vdwg.mxu0
    %v602 = vsel %vm199, %v593, 0
    %v605 = vsel %vm199, %v598, 0
    %607 = vmatprep.subr.mxu0 0.0
    %608 = vmatpush1.msra.mxu0 %v62
    %609 = vmatprep.subr.mxu0 0.0
    %610 = vmatpush1.msra.mxu0 0.0
    %611 = vmatprep.subr.mxu0 0.0
    %612 = vmatpush1.msra.mxu0 0.0
    %613 = vmatprep.subr.mxu0 0.0
    %614 = vmatpush1.msra.mxu0 0.0
    %615 = vmatprep.subr.mxu0 0.0
    %616 = vmatpush1.msra.mxu0 0.0
    %617 = vmatprep.subr.mxu0 0.0
    %618 = vmatpush1.msra.mxu0 0.0
    %619 = vmatprep.subr.mxu0 0.0
    %620 = vmatpush1.msra.mxu0 0.0
    %621 = vmatprep.subr.mxu0 0.0
    %622 = vmatpush1.msra.mxu0 0.0
    %623 = vmatprep.subr.mxu0 0.0
    %624 = vmatpush1.msra.mxu0 0.0
    %625 = vmatprep.subr.mxu0 0.0
    %626 = vmatpush1.msra.mxu0 0.0
    %627 = vmatprep.subr.mxu0 0.0
    %628 = vmatpush1.msra.mxu0 0.0
    %629 = vmatprep.subr.mxu0 0.0
    %630 = vmatpush1.msra.mxu0 0.0
    %631 = vmatprep.subr.mxu0 0.0
    %632 = vmatpush1.msra.mxu0 0.0
    %633 = vmatprep.subr.mxu0 0.0
    %634 = vmatpush1.msra.mxu0 0.0
    %635 = vmatprep.subr.mxu0 0.0
    %636 = vmatpush1.msra.mxu0 0.0
    %637 = vmatprep.subr.mxu0 0.0
    %638 = vmatpush1.msra.mxu0 0.0
    %639 = vmatprep.subr.mxu0 0.0
    %640 = vmatpush1.msra.mxu0 0.0
    %641 = vmatprep.subr.mxu0 0.0
    %642 = vmatpush1.msra.mxu0 0.0
    %643 = vmatprep.subr.mxu0 0.0
    %644 = vmatpush1.msra.mxu0 0.0
    %645 = vmatprep.subr.mxu0 0.0
    %646 = vmatpush1.msra.mxu0 0.0
    %647 = vmatprep.subr.mxu0 0.0
    %648 = vmatpush1.msra.mxu0 0.0
    %649 = vmatprep.subr.mxu0 0.0
    %650 = vmatpush1.msra.mxu0 0.0
    %651 = vmatprep.subr.mxu0 0.0
    %652 = vmatpush1.msra.mxu0 0.0
    %653 = vmatprep.subr.mxu0 0.0
    %654 = vmatpush1.msra.mxu0 0.0
    %655 = vmatprep.subr.mxu0 0.0
    %656 = vmatpush1.msra.mxu0 0.0
    %657 = vmatprep.subr.mxu0 0.0
    %658 = vmatpush1.msra.mxu0 0.0
    %659 = vmatprep.subr.mxu0 0.0
    %660 = vmatpush1.msra.mxu0 0.0
    %661 = vmatprep.subr.mxu0 0.0
    %662 = vmatpush1.msra.mxu0 0.0
    %663 = vmatprep.subr.mxu0 0.0
    %664 = vmatpush1.msra.mxu0 0.0
    %665 = vmatprep.subr.mxu0 0.0
    %666 = vmatpush1.msra.mxu0 0.0
    %667 = vmatprep.subr.mxu0 0.0
    %668 = vmatpush1.msra.mxu0 0.0
    %669 = vmatprep.subr.mxu0 0.0
    %670 = vmatpush1.msra.mxu0 0.0
    %671 = vmatprep.mubr.f32.mxu0 0.0
    %672 = vmatmul.mubr.f32.gmra.mrb[0].mxu0 %v602
    %v673 = vpop.f32.mrb[0].mxu0
    %v674 = vadd.f32 0.0, %v673
    %v675 = vpop.f32.mrb[0].mxu0
    %676 = vmatprep.mubr.f32.mxu0 0.0
    %677 = vmatmul.mubr.f32.gmra.mrb[0].mxu0 %v605
    %v678 = vpop.f32.mrb[0].mxu0
    %v679 = vadd.f32 0.0, %v678
    %v680 = vpop.f32.mrb[0].mxu0
    %681 = vdwg.mxu0
    %v683 = vsel %vm199, %v389, 0
    %v686 = vsel %vm199, %v394, 0
    %688 = vmatprep.subr.mxu0 0.0
    %689 = vmatpush1.msra.mxu0 %v61
    %690 = vmatprep.subr.mxu0 0.0
    %691 = vmatpush1.msra.mxu0 0.0
    %692 = vmatprep.subr.mxu0 0.0
    %693 = vmatpush1.msra.mxu0 0.0
    %694 = vmatprep.subr.mxu0 0.0
    %695 = vmatpush1.msra.mxu0 0.0
    %696 = vmatprep.subr.mxu0 0.0
    %697 = vmatpush1.msra.mxu0 0.0
    %698 = vmatprep.subr.mxu0 0.0
    %699 = vmatpush1.msra.mxu0 0.0
    %700 = vmatprep.subr.mxu0 0.0
    %701 = vmatpush1.msra.mxu0 0.0
    %702 = vmatprep.subr.mxu0 0.0
    %703 = vmatpush1.msra.mxu0 0.0
    %704 = vmatprep.subr.mxu0 0.0
    %705 = vmatpush1.msra.mxu0 0.0
    %706 = vmatprep.subr.mxu0 0.0
    %707 = vmatpush1.msra.mxu0 0.0
    %708 = vmatprep.subr.mxu0 0.0
    %709 = vmatpush1.msra.mxu0 0.0
    %710 = vmatprep.subr.mxu0 0.0
    %711 = vmatpush1.msra.mxu0 0.0
    %712 = vmatprep.subr.mxu0 0.0
    %713 = vmatpush1.msra.mxu0 0.0
    %714 = vmatprep.subr.mxu0 0.0
    %715 = vmatpush1.msra.mxu0 0.0
    %716 = vmatprep.subr.mxu0 0.0
    %717 = vmatpush1.msra.mxu0 0.0
    %718 = vmatprep.subr.mxu0 0.0
    %719 = vmatpush1.msra.mxu0 0.0
    %720 = vmatprep.subr.mxu0 0.0
    %721 = vmatpush1.msra.mxu0 0.0
    %722 = vmatprep.subr.mxu0 0.0
    %723 = vmatpush1.msra.mxu0 0.0
    %724 = vmatprep.subr.mxu0 0.0
    %725 = vmatpush1.msra.mxu0 0.0
    %726 = vmatprep.subr.mxu0 0.0
    %727 = vmatpush1.msra.mxu0 0.0
    %728 = vmatprep.subr.mxu0 0.0
    %729 = vmatpush1.msra.mxu0 0.0
    %730 = vmatprep.subr.mxu0 0.0
    %731 = vmatpush1.msra.mxu0 0.0
    %732 = vmatprep.subr.mxu0 0.0
    %733 = vmatpush1.msra.mxu0 0.0
    %734 = vmatprep.subr.mxu0 0.0
    %735 = vmatpush1.msra.mxu0 0.0
    %736 = vmatprep.subr.mxu0 0.0
    %737 = vmatpush1.msra.mxu0 0.0
    %738 = vmatprep.subr.mxu0 0.0
    %739 = vmatpush1.msra.mxu0 0.0
    %740 = vmatprep.subr.mxu0 0.0
    %741 = vmatpush1.msra.mxu0 0.0
    %742 = vmatprep.subr.mxu0 0.0
    %743 = vmatpush1.msra.mxu0 0.0
    %744 = vmatprep.subr.mxu0 0.0
    %745 = vmatpush1.msra.mxu0 0.0
    %746 = vmatprep.subr.mxu0 0.0
    %747 = vmatpush1.msra.mxu0 0.0
    %748 = vmatprep.subr.mxu0 0.0
    %749 = vmatpush1.msra.mxu0 0.0
    %750 = vmatprep.subr.mxu0 0.0
    %751 = vmatpush1.msra.mxu0 0.0
    %752 = vmatprep.mubr.f32.mxu0 0.0
    %753 = vmatmul.mubr.f32.gmra.mrb[0].mxu0 %v683
    %v754 = vpop.f32.mrb[0].mxu0
    %v755 = vadd.f32 %v674, %v754
    %v756 = vpop.f32.mrb[0].mxu0
    %757 = vmatprep.mubr.f32.mxu0 0.0
    %758 = vmatmul.mubr.f32.gmra.mrb[0].mxu0 %v686
    %v759 = vpop.f32.mrb[0].mxu0
    %v760 = vadd.f32 %v679, %v759
    %v761 = vpop.f32.mrb[0].mxu0
    %762 = vdwg.mxu0
    %763 = vrot.lane.b32.xlu0 %v185, 112
    %v764 = vpop.permute.xlu0 %763
    %765 = vrot.lane.b32.xlu0 %v190, 112
    %v766 = vpop.permute.xlu0 %765
    %767 = vrot.lane.b32.xlu0 %v185, 80
    %v768 = vpop.permute.xlu0 %767
    %769 = vrot.lane.b32.xlu0 %v190, 80
    %v770 = vpop.permute.xlu0 %769
    %v771 = vsel %vm199, %v764, 0
    %v773 = vsel %vm199, %v766, 0
    %v775 = vsel %vm199, %v768, 0
    %v777 = vsel %vm199, %v770, 0
    %779 = vmatprep.subr.mxu0 0.0
    %780 = vmatpush1.xpose.msra.mxu0 %v775
    %781 = vmatprep.subr.mxu0 0.0
    %782 = vmatpush1.xpose.msra.mxu0 %v777
    %783 = vmatprep.subr.mxu0 0.0
    %784 = vmatpush1.xpose.msra.mxu0 0.0
    %785 = vmatprep.subr.mxu0 0.0
    %786 = vmatpush1.xpose.msra.mxu0 0.0
    %787 = vmatprep.subr.mxu0 0.0
    %788 = vmatpush1.xpose.msra.mxu0 0.0
    %789 = vmatprep.subr.mxu0 0.0
    %790 = vmatpush1.xpose.msra.mxu0 0.0
    %791 = vmatprep.subr.mxu0 0.0
    %792 = vmatpush1.xpose.msra.mxu0 0.0
    %793 = vmatprep.subr.mxu0 0.0
    %794 = vmatpush1.xpose.msra.mxu0 0.0
    %795 = vmatprep.subr.mxu0 0.0
    %796 = vmatpush1.xpose.msra.mxu0 0.0
    %797 = vmatprep.subr.mxu0 0.0
    %798 = vmatpush1.xpose.msra.mxu0 0.0
    %799 = vmatprep.subr.mxu0 0.0
    %800 = vmatpush1.xpose.msra.mxu0 0.0
    %801 = vmatprep.subr.mxu0 0.0
    %802 = vmatpush1.xpose.msra.mxu0 0.0
    %803 = vmatprep.subr.mxu0 0.0
    %804 = vmatpush1.xpose.msra.mxu0 0.0
    %805 = vmatprep.subr.mxu0 0.0
    %806 = vmatpush1.xpose.msra.mxu0 0.0
    %807 = vmatprep.subr.mxu0 0.0
    %808 = vmatpush1.xpose.msra.mxu0 0.0
    %809 = vmatprep.subr.mxu0 0.0
    %810 = vmatpush1.xpose.msra.mxu0 0.0
    %811 = vmatprep.subr.mxu0 0.0
    %812 = vmatpush1.xpose.msra.mxu0 0.0
    %813 = vmatprep.subr.mxu0 0.0
    %814 = vmatpush1.xpose.msra.mxu0 0.0
    %815 = vmatprep.subr.mxu0 0.0
    %816 = vmatpush1.xpose.msra.mxu0 0.0
    %817 = vmatprep.subr.mxu0 0.0
    %818 = vmatpush1.xpose.msra.mxu0 0.0
    %819 = vmatprep.subr.mxu0 0.0
    %820 = vmatpush1.xpose.msra.mxu0 0.0
    %821 = vmatprep.subr.mxu0 0.0
    %822 = vmatpush1.xpose.msra.mxu0 0.0
    %823 = vmatprep.subr.mxu0 0.0
    %824 = vmatpush1.xpose.msra.mxu0 0.0
    %825 = vmatprep.subr.mxu0 0.0
    %826 = vmatpush1.xpose.msra.mxu0 0.0
    %827 = vmatprep.subr.mxu0 0.0
    %828 = vmatpush1.xpose.msra.mxu0 0.0
    %829 = vmatprep.subr.mxu0 0.0
    %830 = vmatpush1.xpose.msra.mxu0 0.0
    %831 = vmatprep.subr.mxu0 0.0
    %832 = vmatpush1.xpose.msra.mxu0 0.0
    %833 = vmatprep.subr.mxu0 0.0
    %834 = vmatpush1.xpose.msra.mxu0 0.0
    %835 = vmatprep.subr.mxu0 0.0
    %836 = vmatpush1.xpose.msra.mxu0 0.0
    %837 = vmatprep.subr.mxu0 0.0
    %838 = vmatpush1.xpose.msra.mxu0 0.0
    %839 = vmatprep.subr.mxu0 0.0
    %840 = vmatpush1.xpose.msra.mxu0 0.0
    %841 = vmatprep.subr.mxu0 0.0
    %842 = vmatpush1.xpose.msra.mxu0 0.0
    %843 = vmatprep.mubr.f32.mxu0 0.0
    %844 = vmatmul.mubr.f32.gmra.mrb[0].mxu0 %v771
    %v845 = vpop.f32.mrb[0].mxu0
    %v846 = vadd.f32 0.0, %v845
    %v847 = vpop.f32.mrb[0].mxu0
    %848 = vmatprep.mubr.f32.mxu0 0.0
    %849 = vmatmul.mubr.f32.gmra.mrb[0].mxu0 %v773
    %v850 = vpop.f32.mrb[0].mxu0
    %v851 = vadd.f32 0.0, %v850
    %v852 = vpop.f32.mrb[0].mxu0
    %853 = vdwg.mxu0
    %v854 = vmul.f32 %v846, 0.35355338
    %v855 = vmul.f32 %v851, 0.35355338
    %v856 = vadd.f32 %v854, %v54
    %v857 = vadd.f32 %v855, %v55
    %v858 = vsel %vm287, %v856, -inf
    %859 = vmax.xlane.f32.xlu0 %v858
    %v860 = vpop.xlane.xlu0 %859
    %v861 = vsel %vm287, %v857, -inf
    %862 = vmax.xlane.f32.xlu0 %v861
    %v863 = vpop.xlane.xlu0 %862
    %v864 = vsub.f32 %v856, %v860
    %v865 = vsub.f32 %v857, %v863
    %v866 = vmul.f32 %v864, 1.442695
    %v867 = vpow.pop %v866
    %v868 = vmul.f32 %v865, 1.442695
    %v869 = vpow.pop %v868
    %v870 = vsel %vm287, %v867, 0.0
    %871 = vadd.xlane.f32.xlu0 %v870
    %v872 = vpop.xlane.xlu0 %871
    %v873 = vsel %vm287, %v869, 0.0
    %874 = vadd.xlane.f32.xlu0 %v873
    %v875 = vpop.xlane.xlu0 %874
    %v876 = vrcp.pop %v872
    %v877 = vmul.f32 %v867, %v876
    %v878 = vrcp.pop %v875
    %v879 = vmul.f32 %v869, %v878
    %880 = vrot.lane.b32.xlu0 %v185, 48
    %v881 = vpop.permute.xlu0 %880
    %882 = vrot.lane.b32.xlu0 %v190, 48
    %v883 = vpop.permute.xlu0 %882
    %v887 = vsel %vm287, %v877, 0
    %v890 = vsel %vm287, %v879, 0
    %892 = vmatprep.subr.mxu0 0.0
    %893 = vmatpush1.msra.mxu0 %v881
    %894 = vmatprep.subr.mxu0 0.0
    %895 = vmatpush1.msra.mxu0 %v883
    %896 = vmatprep.subr.mxu0 0.0
    %897 = vmatpush1.msra.mxu0 0.0
    %898 = vmatprep.subr.mxu0 0.0
    %899 = vmatpush1.msra.mxu0 0.0
    %900 = vmatprep.subr.mxu0 0.0
    %901 = vmatpush1.msra.mxu0 0.0
    %902 = vmatprep.subr.mxu0 0.0
    %903 = vmatpush1.msra.mxu0 0.0
    %904 = vmatprep.subr.mxu0 0.0
    %905 = vmatpush1.msra.mxu0 0.0
    %906 = vmatprep.subr.mxu0 0.0
    %907 = vmatpush1.msra.mxu0 0.0
    %908 = vmatprep.subr.mxu0 0.0
    %909 = vmatpush1.msra.mxu0 0.0
    %910 = vmatprep.subr.mxu0 0.0
    %911 = vmatpush1.msra.mxu0 0.0
    %912 = vmatprep.subr.mxu0 0.0
    %913 = vmatpush1.msra.mxu0 0.0
    %914 = vmatprep.subr.mxu0 0.0
    %915 = vmatpush1.msra.mxu0 0.0
    %916 = vmatprep.subr.mxu0 0.0
    %917 = vmatpush1.msra.mxu0 0.0
    %918 = vmatprep.subr.mxu0 0.0
    %919 = vmatpush1.msra.mxu0 0.0
    %920 = vmatprep.subr.mxu0 0.0
    %921 = vmatpush1.msra.mxu0 0.0
    %922 = vmatprep.subr.mxu0 0.0
    %923 = vmatpush1.msra.mxu0 0.0
    %924 = vmatprep.subr.mxu0 0.0
    %925 = vmatpush1.msra.mxu0 0.0
    %926 = vmatprep.subr.mxu0 0.0
    %927 = vmatpush1.msra.mxu0 0.0
    %928 = vmatprep.subr.mxu0 0.0
    %929 = vmatpush1.msra.mxu0 0.0
    %930 = vmatprep.subr.mxu0 0.0
    %931 = vmatpush1.msra.mxu0 0.0
    %932 = vmatprep.subr.mxu0 0.0
    %933 = vmatpush1.msra.mxu0 0.0
    %934 = vmatprep.subr.mxu0 0.0
    %935 = vmatpush1.msra.mxu0 0.0
    %936 = vmatprep.subr.mxu0 0.0
    %937 = vmatpush1.msra.mxu0 0.0
    %938 = vmatprep.subr.mxu0 0.0
    %939 = vmatpush1.msra.mxu0 0.0
    %940 = vmatprep.subr.mxu0 0.0
    %941 = vmatpush1.msra.mxu0 0.0
    %942 = vmatprep.subr.mxu0 0.0
    %943 = vmatpush1.msra.mxu0 0.0
    %944 = vmatprep.subr.mxu0 0.0
    %945 = vmatpush1.msra.mxu0 0.0
    %946 = vmatprep.subr.mxu0 0.0
    %947 = vmatpush1.msra.mxu0 0.0
    %948 = vmatprep.subr.mxu0 0.0
    %949 = vmatpush1.msra.mxu0 0.0
    %950 = vmatprep.subr.mxu0 0.0
    %951 = vmatpush1.msra.mxu0 0.0
    %952 = vmatprep.subr.mxu0 0.0
    %953 = vmatpush1.msra.mxu0 0.0
    %954 = vmatprep.subr.mxu0 0.0
    %955 = vmatpush1.msra.mxu0 0.0
    %956 = vmatprep.mubr.f32.mxu0 0.0
    %957 = vmatmul.mubr.f32.gmra.mrb[0].mxu0 %v887
    %v958 = vpop.f32.mrb[0].mxu0
    %v959 = vadd.f32 0.0, %v958
    %v960 = vpop.f32.mrb[0].mxu0
    %961 = vmatprep.mubr.f32.mxu0 0.0
    %962 = vmatmul.mubr.f32.gmra.mrb[0].mxu0 %v890
    %v963 = vpop.f32.mrb[0].mxu0
    %v964 = vadd.f32 0.0, %v963
    %v965 = vpop.f32.mrb[0].mxu0
    %966 = vdwg.mxu0
    %v968 = vsel %vm199, %v959, 0
    %v971 = vsel %vm199, %v964, 0
    %973 = vmatprep.subr.mxu0 0.0
    %974 = vmatpush1.msra.mxu0 %v63
    %975 = vmatprep.subr.mxu0 0.0
    %976 = vmatpush1.msra.mxu0 0.0
    %977 = vmatprep.subr.mxu0 0.0
    %978 = vmatpush1.msra.mxu0 0.0
    %979 = vmatprep.subr.mxu0 0.0
    %980 = vmatpush1.msra.mxu0 0.0
    %981 = vmatprep.subr.mxu0 0.0
    %982 = vmatpush1.msra.mxu0 0.0
    %983 = vmatprep.subr.mxu0 0.0
    %984 = vmatpush1.msra.mxu0 0.0
    %985 = vmatprep.subr.mxu0 0.0
    %986 = vmatpush1.msra.mxu0 0.0
    %987 = vmatprep.subr.mxu0 0.0
    %988 = vmatpush1.msra.mxu0 0.0
    %989 = vmatprep.subr.mxu0 0.0
    %990 = vmatpush1.msra.mxu0 0.0
    %991 = vmatprep.subr.mxu0 0.0
    %992 = vmatpush1.msra.mxu0 0.0
    %993 = vmatprep.subr.mxu0 0.0
    %994 = vmatpush1.msra.mxu0 0.0
    %995 = vmatprep.subr.mxu0 0.0
    %996 = vmatpush1.msra.mxu0 0.0
    %997 = vmatprep.subr.mxu0 0.0
    %998 = vmatpush1.msra.mxu0 0.0
    %999 = vmatprep.subr.mxu0 0.0
    %1000 = vmatpush1.msra.mxu0 0.0
    %1001 = vmatprep.subr.mxu0 0.0
    %1002 = vmatpush1.msra.mxu0 0.0
    %1003 = vmatprep.subr.mxu0 0.0
    %1004 = vmatpush1.msra.mxu0 0.0
    %1005 = vmatprep.subr.mxu0 0.0
    %1006 = vmatpush1.msra.mxu0 0.0
    %1007 = vmatprep.subr.mxu0 0.0
    %1008 = vmatpush1.msra.mxu0 0.0
    %1009 = vmatprep.subr.mxu0 0.0
    %1010 = vmatpush1.msra.mxu0 0.0
    %1011 = vmatprep.subr.mxu0 0.0
    %1012 = vmatpush1.msra.mxu0 0.0
    %1013 = vmatprep.subr.mxu0 0.0
    %1014 = vmatpush1.msra.mxu0 0.0
    %1015 = vmatprep.subr.mxu0 0.0
    %1016 = vmatpush1.msra.mxu0 0.0
    %1017 = vmatprep.subr.mxu0 0.0
    %1018 = vmatpush1.msra.mxu0 0.0
    %1019 = vmatprep.subr.mxu0 0.0
    %1020 = vmatpush1.msra.mxu0 0.0
    %1021 = vmatprep.subr.mxu0 0.0
    %1022 = vmatpush1.msra.mxu0 0.0
    %1023 = vmatprep.subr.mxu0 0.0
    %1024 = vmatpush1.msra.mxu0 0.0
    %1025 = vmatprep.subr.mxu0 0.0
    %1026 = vmatpush1.msra.mxu0 0.0
    %1027 = vmatprep.subr.mxu0 0.0
    %1028 = vmatpush1.msra.mxu0 0.0
    %1029 = vmatprep.subr.mxu0 0.0
    %1030 = vmatpush1.msra.mxu0 0.0
    %1031 = vmatprep.subr.mxu0 0.0
    %1032 = vmatpush1.msra.mxu0 0.0
    %1033 = vmatprep.subr.mxu0 0.0
    %1034 = vmatpush1.msra.mxu0 0.0
    %1035 = vmatprep.subr.mxu0 0.0
    %1036 = vmatpush1.msra.mxu0 0.0
    %1037 = vmatprep.mubr.f32.mxu0 0.0
    %1038 = vmatmul.mubr.f32.gmra.mrb[0].mxu0 %v968
    %v1039 = vpop.f32.mrb[0].mxu0
    %v1040 = vadd.f32 0.0, %v1039
    %v1041 = vpop.f32.mrb[0].mxu0
    %1042 = vmatprep.mubr.f32.mxu0 0.0
    %1043 = vmatmul.mubr.f32.gmra.mrb[0].mxu0 %v971
    %v1044 = vpop.f32.mrb[0].mxu0
    %v1045 = vadd.f32 0.0, %v1044
    %v1046 = vpop.f32.mrb[0].mxu0
    %1047 = vdwg.mxu0
    %v1048 = vadd.f32 %v755, %v1040
    %v1049 = vadd.f32 %v760, %v1045
    %1050 = vrot.lane.b32.xlu0 %v185, 104
    %v1051 = vpop.permute.xlu0 %1050
    %1052 = vrot.lane.b32.xlu0 %v190, 104
    %v1053 = vpop.permute.xlu0 %1052
    %1054 = vrot.lane.b32.xlu0 %v185, 72
    %v1055 = vpop.permute.xlu0 %1054
    %1056 = vrot.lane.b32.xlu0 %v190, 72
    %v1057 = vpop.permute.xlu0 %1056
    %v1058 = vsel %vm199, %v1051, 0
    %v1060 = vsel %vm199, %v1053, 0
    %v1062 = vsel %vm199, %v1055, 0
    %v1064 = vsel %vm199, %v1057, 0
    %1066 = vmatprep.subr.mxu0 0.0
    %1067 = vmatpush1.xpose.msra.mxu0 %v1062
    %1068 = vmatprep.subr.mxu0 0.0
    %1069 = vmatpush1.xpose.msra.mxu0 %v1064
    %1070 = vmatprep.subr.mxu0 0.0
    %1071 = vmatpush1.xpose.msra.mxu0 0.0
    %1072 = vmatprep.subr.mxu0 0.0
    %1073 = vmatpush1.xpose.msra.mxu0 0.0
    %1074 = vmatprep.subr.mxu0 0.0
    %1075 = vmatpush1.xpose.msra.mxu0 0.0
    %1076 = vmatprep.subr.mxu0 0.0
    %1077 = vmatpush1.xpose.msra.mxu0 0.0
    %1078 = vmatprep.subr.mxu0 0.0
    %1079 = vmatpush1.xpose.msra.mxu0 0.0
    %1080 = vmatprep.subr.mxu0 0.0
    %1081 = vmatpush1.xpose.msra.mxu0 0.0
    %1082 = vmatprep.subr.mxu0 0.0
    %1083 = vmatpush1.xpose.msra.mxu0 0.0
    %1084 = vmatprep.subr.mxu0 0.0
    %1085 = vmatpush1.xpose.msra.mxu0 0.0
    %1086 = vmatprep.subr.mxu0 0.0
    %1087 = vmatpush1.xpose.msra.mxu0 0.0
    %1088 = vmatprep.subr.mxu0 0.0
    %1089 = vmatpush1.xpose.msra.mxu0 0.0
    %1090 = vmatprep.subr.mxu0 0.0
    %1091 = vmatpush1.xpose.msra.mxu0 0.0
    %1092 = vmatprep.subr.mxu0 0.0
    %1093 = vmatpush1.xpose.msra.mxu0 0.0
    %1094 = vmatprep.subr.mxu0 0.0
    %1095 = vmatpush1.xpose.msra.mxu0 0.0
    %1096 = vmatprep.subr.mxu0 0.0
    %1097 = vmatpush1.xpose.msra.mxu0 0.0
    %1098 = vmatprep.subr.mxu0 0.0
    %1099 = vmatpush1.xpose.msra.mxu0 0.0
    %1100 = vmatprep.subr.mxu0 0.0
    %1101 = vmatpush1.xpose.msra.mxu0 0.0
    %1102 = vmatprep.subr.mxu0 0.0
    %1103 = vmatpush1.xpose.msra.mxu0 0.0
    %1104 = vmatprep.subr.mxu0 0.0
    %1105 = vmatpush1.xpose.msra.mxu0 0.0
    %1106 = vmatprep.subr.mxu0 0.0
    %1107 = vmatpush1.xpose.msra.mxu0 0.0
    %1108 = vmatprep.subr.mxu0 0.0
    %1109 = vmatpush1.xpose.msra.mxu0 0.0
    %1110 = vmatprep.subr.mxu0 0.0
    %1111 = vmatpush1.xpose.msra.mxu0 0.0
    %1112 = vmatprep.subr.mxu0 0.0
    %1113 = vmatpush1.xpose.msra.mxu0 0.0
    %1114 = vmatprep.subr.mxu0 0.0
    %1115 = vmatpush1.xpose.msra.mxu0 0.0
    %1116 = vmatprep.subr.mxu0 0.0
    %1117 = vmatpush1.xpose.msra.mxu0 0.0
    %1118 = vmatprep.subr.mxu0 0.0
    %1119 = vmatpush1.xpose.msra.mxu0 0.0
    %1120 = vmatprep.subr.mxu0 0.0
    %1121 = vmatpush1.xpose.msra.mxu0 0.0
    %1122 = vmatprep.subr.mxu0 0.0
    %1123 = vmatpush1.xpose.msra.mxu0 0.0
    %1124 = vmatprep.subr.mxu0 0.0
    %1125 = vmatpush1.xpose.msra.mxu0 0.0
    %1126 = vmatprep.subr.mxu0 0.0
    %1127 = vmatpush1.xpose.msra.mxu0 0.0
    %1128 = vmatprep.subr.mxu0 0.0
    %1129 = vmatpush1.xpose.msra.mxu0 0.0
    %1130 = vmatprep.mubr.f32.mxu0 0.0
    %1131 = vmatmul.mubr.f32.gmra.mrb[0].mxu0 %v1058
    %v1132 = vpop.f32.mrb[0].mxu0
    %v1133 = vadd.f32 0.0, %v1132
    %v1134 = vpop.f32.mrb[0].mxu0
    %1135 = vmatprep.mubr.f32.mxu0 0.0
    %1136 = vmatmul.mubr.f32.gmra.mrb[0].mxu0 %v1060
    %v1137 = vpop.f32.mrb[0].mxu0
    %v1138 = vadd.f32 0.0, %v1137
    %v1139 = vpop.f32.mrb[0].mxu0
    %1140 = vdwg.mxu0
    %v1141 = vmul.f32 %v1133, 0.35355338
    %v1142 = vmul.f32 %v1138, 0.35355338
    %v1143 = vadd.f32 %v1141, %v54
    %v1144 = vadd.f32 %v1142, %v55
    %v1145 = vsel %vm287, %v1143, -inf
    %1146 = vmax.xlane.f32.xlu0 %v1145
    %v1147 = vpop.xlane.xlu0 %1146
    %v1148 = vsel %vm287, %v1144, -inf
    %1149 = vmax.xlane.f32.xlu0 %v1148
    %v1150 = vpop.xlane.xlu0 %1149
    %v1151 = vsub.f32 %v1143, %v1147
    %v1152 = vsub.f32 %v1144, %v1150
    %v1153 = vmul.f32 %v1151, 1.442695
    %v1154 = vpow.pop %v1153
    %v1155 = vmul.f32 %v1152, 1.442695
    %v1156 = vpow.pop %v1155
    %v1157 = vsel %vm287, %v1154, 0.0
    %1158 = vadd.xlane.f32.xlu0 %v1157
    %v1159 = vpop.xlane.xlu0 %1158
    %v1160 = vsel %vm287, %v1156, 0.0
    %1161 = vadd.xlane.f32.xlu0 %v1160
    %v1162 = vpop.xlane.xlu0 %1161
    %v1163 = vrcp.pop %v1159
    %v1164 = vmul.f32 %v1154, %v1163
    %v1165 = vrcp.pop %v1162
    %v1166 = vmul.f32 %v1156, %v1165
    %1167 = vrot.lane.b32.xlu0 %v185, 40
    %v1168 = vpop.permute.xlu0 %1167
    %1169 = vrot.lane.b32.xlu0 %v190, 40
    %v1170 = vpop.permute.xlu0 %1169
    %v1174 = vsel %vm287, %v1164, 0
    %v1177 = vsel %vm287, %v1166, 0
    %1179 = vmatprep.subr.mxu0 0.0
    %1180 = vmatpush1.msra.mxu0 %v1168
    %1181 = vmatprep.subr.mxu0 0.0
    %1182 = vmatpush1.msra.mxu0 %v1170
    %1183 = vmatprep.subr.mxu0 0.0
    %1184 = vmatpush1.msra.mxu0 0.0
    %1185 = vmatprep.subr.mxu0 0.0
    %1186 = vmatpush1.msra.mxu0 0.0
    %1187 = vmatprep.subr.mxu0 0.0
    %1188 = vmatpush1.msra.mxu0 0.0
    %1189 = vmatprep.subr.mxu0 0.0
    %1190 = vmatpush1.msra.mxu0 0.0
    %1191 = vmatprep.subr.mxu0 0.0
    %1192 = vmatpush1.msra.mxu0 0.0
    %1193 = vmatprep.subr.mxu0 0.0
    %1194 = vmatpush1.msra.mxu0 0.0
    %1195 = vmatprep.subr.mxu0 0.0
    %1196 = vmatpush1.msra.mxu0 0.0
    %1197 = vmatprep.subr.mxu0 0.0
    %1198 = vmatpush1.msra.mxu0 0.0
    %1199 = vmatprep.subr.mxu0 0.0
    %1200 = vmatpush1.msra.mxu0 0.0
    %1201 = vmatprep.subr.mxu0 0.0
    %1202 = vmatpush1.msra.mxu0 0.0
    %1203 = vmatprep.subr.mxu0 0.0
    %1204 = vmatpush1.msra.mxu0 0.0
    %1205 = vmatprep.subr.mxu0 0.0
    %1206 = vmatpush1.msra.mxu0 0.0
    %1207 = vmatprep.subr.mxu0 0.0
    %1208 = vmatpush1.msra.mxu0 0.0
    %1209 = vmatprep.subr.mxu0 0.0
    %1210 = vmatpush1.msra.mxu0 0.0
    %1211 = vmatprep.subr.mxu0 0.0
    %1212 = vmatpush1.msra.mxu0 0.0
    %1213 = vmatprep.subr.mxu0 0.0
    %1214 = vmatpush1.msra.mxu0 0.0
    %1215 = vmatprep.subr.mxu0 0.0
    %1216 = vmatpush1.msra.mxu0 0.0
    %1217 = vmatprep.subr.mxu0 0.0
    %1218 = vmatpush1.msra.mxu0 0.0
    %1219 = vmatprep.subr.mxu0 0.0
    %1220 = vmatpush1.msra.mxu0 0.0
    %1221 = vmatprep.subr.mxu0 0.0
    %1222 = vmatpush1.msra.mxu0 0.0
    %1223 = vmatprep.subr.mxu0 0.0
    %1224 = vmatpush1.msra.mxu0 0.0
    %1225 = vmatprep.subr.mxu0 0.0
    %1226 = vmatpush1.msra.mxu0 0.0
    %1227 = vmatprep.subr.mxu0 0.0
    %1228 = vmatpush1.msra.mxu0 0.0
    %1229 = vmatprep.subr.mxu0 0.0
    %1230 = vmatpush1.msra.mxu0 0.0
    %1231 = vmatprep.subr.mxu0 0.0
    %1232 = vmatpush1.msra.mxu0 0.0
    %1233 = vmatprep.subr.mxu0 0.0
    %1234 = vmatpush1.msra.mxu0 0.0
    %1235 = vmatprep.subr.mxu0 0.0
    %1236 = vmatpush1.msra.mxu0 0.0
    %1237 = vmatprep.subr.mxu0 0.0
    %1238 = vmatpush1.msra.mxu0 0.0
    %1239 = vmatprep.subr.mxu0 0.0
    %1240 = vmatpush1.msra.mxu0 0.0
    %1241 = vmatprep.subr.mxu0 0.0
    %1242 = vmatpush1.msra.mxu0 0.0
    %1243 = vmatprep.mubr.f32.mxu0 0.0
    %1244 = vmatmul.mubr.f32.gmra.mrb[0].mxu0 %v1174
    %v1245 = vpop.f32.mrb[0].mxu0
    %v1246 = vadd.f32 0.0, %v1245
    %v1247 = vpop.f32.mrb[0].mxu0
    %1248 = vmatprep.mubr.f32.mxu0 0.0
    %1249 = vmatmul.mubr.f32.gmra.mrb[0].mxu0 %v1177
    %v1250 = vpop.f32.mrb[0].mxu0
    %v1251 = vadd.f32 0.0, %v1250
    %v1252 = vpop.f32.mrb[0].mxu0
    %1253 = vdwg.mxu0
    %v1255 = vsel %vm199, %v1246, 0
    %v1258 = vsel %vm199, %v1251, 0
    %1260 = vmatprep.subr.mxu0 0.0
    %1261 = vmatpush1.msra.mxu0 %v64
    %1262 = vmatprep.subr.mxu0 0.0
    %1263 = vmatpush1.msra.mxu0 0.0
    %1264 = vmatprep.subr.mxu0 0.0
    %1265 = vmatpush1.msra.mxu0 0.0
    %1266 = vmatprep.subr.mxu0 0.0
    %1267 = vmatpush1.msra.mxu0 0.0
    %1268 = vmatprep.subr.mxu0 0.0
    %1269 = vmatpush1.msra.mxu0 0.0
    %1270 = vmatprep.subr.mxu0 0.0
    %1271 = vmatpush1.msra.mxu0 0.0
    %1272 = vmatprep.subr.mxu0 0.0
    %1273 = vmatpush1.msra.mxu0 0.0
    %1274 = vmatprep.subr.mxu0 0.0
    %1275 = vmatpush1.msra.mxu0 0.0
    %1276 = vmatprep.subr.mxu0 0.0
    %1277 = vmatpush1.msra.mxu0 0.0
    %1278 = vmatprep.subr.mxu0 0.0
    %1279 = vmatpush1.msra.mxu0 0.0
    %1280 = vmatprep.subr.mxu0 0.0
    %1281 = vmatpush1.msra.mxu0 0.0
    %1282 = vmatprep.subr.mxu0 0.0
    %1283 = vmatpush1.msra.mxu0 0.0
    %1284 = vmatprep.subr.mxu0 0.0
    %1285 = vmatpush1.msra.mxu0 0.0
    %1286 = vmatprep.subr.mxu0 0.0
    %1287 = vmatpush1.msra.mxu0 0.0
    %1288 = vmatprep.subr.mxu0 0.0
    %1289 = vmatpush1.msra.mxu0 0.0
    %1290 = vmatprep.subr.mxu0 0.0
    %1291 = vmatpush1.msra.mxu0 0.0
    %1292 = vmatprep.subr.mxu0 0.0
    %1293 = vmatpush1.msra.mxu0 0.0
    %1294 = vmatprep.subr.mxu0 0.0
    %1295 = vmatpush1.msra.mxu0 0.0
    %1296 = vmatprep.subr.mxu0 0.0
    %1297 = vmatpush1.msra.mxu0 0.0
    %1298 = vmatprep.subr.mxu0 0.0
    %1299 = vmatpush1.msra.mxu0 0.0
    %1300 = vmatprep.subr.mxu0 0.0
    %1301 = vmatpush1.msra.mxu0 0.0
    %1302 = vmatprep.subr.mxu0 0.0
    %1303 = vmatpush1.msra.mxu0 0.0
    %1304 = vmatprep.subr.mxu0 0.0
    %1305 = vmatpush1.msra.mxu0 0.0
    %1306 = vmatprep.subr.mxu0 0.0
    %1307 = vmatpush1.msra.mxu0 0.0
    %1308 = vmatprep.subr.mxu0 0.0
    %1309 = vmatpush1.msra.mxu0 0.0
    %1310 = vmatprep.subr.mxu0 0.0
    %1311 = vmatpush1.msra.mxu0 0.0
    %1312 = vmatprep.subr.mxu0 0.0
    %1313 = vmatpush1.msra.mxu0 0.0
    %1314 = vmatprep.subr.mxu0 0.0
    %1315 = vmatpush1.msra.mxu0 0.0
    %1316 = vmatprep.subr.mxu0 0.0
    %1317 = vmatpush1.msra.mxu0 0.0
    %1318 = vmatprep.subr.mxu0 0.0
    %1319 = vmatpush1.msra.mxu0 0.0
    %1320 = vmatprep.subr.mxu0 0.0
    %1321 = vmatpush1.msra.mxu0 0.0
    %1322 = vmatprep.subr.mxu0 0.0
    %1323 = vmatpush1.msra.mxu0 0.0
    %1324 = vmatprep.mubr.f32.mxu0 0.0
    %1325 = vmatmul.mubr.f32.gmra.mrb[0].mxu0 %v1255
    %v1326 = vpop.f32.mrb[0].mxu0
    %v1327 = vadd.f32 0.0, %v1326
    %v1328 = vpop.f32.mrb[0].mxu0
    %1329 = vmatprep.mubr.f32.mxu0 0.0
    %1330 = vmatmul.mubr.f32.gmra.mrb[0].mxu0 %v1258
    %v1331 = vpop.f32.mrb[0].mxu0
    %v1332 = vadd.f32 0.0, %v1331
    %v1333 = vpop.f32.mrb[0].mxu0
    %1334 = vdwg.mxu0
    %v1335 = vadd.f32 %v1048, %v1327
    %v1336 = vadd.f32 %v1049, %v1332
    %v1337 = vlaneseq
    %v1338 = vshrl.u32 %v1337, 7
    %v1339 = vsub.s32 2, %v1338
    %v1340 = vrot.slane %v65, %v1339
    %v1341 = vadd.f32 %v1335, %v1340
    %v1342 = vadd.f32 %v1336, %v1340
    %v1343 = vadd.f32 %v1341, %v52
    %v1344 = vadd.f32 %v1342, %v53
    %v1345 = vsel %vm66, %v1343, 0.0
    %1346 = vadd.xlane.f32.xlu0 %v1345
    %v1347 = vpop.xlane.xlu0 %1346
    %v1348 = vsel %vm66, %v1344, 0.0
    %1349 = vadd.xlane.f32.xlu0 %v1348
    %v1350 = vpop.xlane.xlu0 %1349
    %v1351 = vmul.f32 %v1347, %v73
    %v1352 = vmul.f32 %v1350, %v73
    %v1353 = vsub.f32 %v1343, %v1351
    %v1354 = vsub.f32 %v1344, %v1352
    %v1355 = vmul.f32 %v1353, %v1353
    %v1356 = vmul.f32 %v1354, %v1354
    %v1357 = vsel %vm66, %v1355, 0.0
    %1358 = vadd.xlane.f32.xlu0 %v1357
    %v1359 = vpop.xlane.xlu0 %1358
    %v1360 = vsel %vm66, %v1356, 0.0
    %1361 = vadd.xlane.f32.xlu0 %v1360
    %v1362 = vpop.xlane.xlu0 %1361
    %v1363 = vmul.f32 %v1359, %v73
    %v1364 = vmul.f32 %v1362, %v73
    %v1365 = vadd.f32 %v1363, 1e-05
    %v1366 = vadd.f32 %v1364, 1e-05
    %v1367 = vrsqrt.pop %v1365
    %v1368 = vrsqrt.pop %v1366
    %v1369 = vmul.f32 %v1353, %v1367
    %v1370 = vmul.f32 %v1354, %v1368
    %v1371 = vlaneseq
    %v1372 = vshrl.u32 %v1371, 7
    %v1373 = vsub.s32 3, %v1372
    %v1374 = vrot.slane %v65, %v1373
    %v1375 = vmul.f32 %v1369, %v1374
    %v1376 = vmul.f32 %v1370, %v1374
    %v1377 = vlaneseq
    %v1378 = vshrl.u32 %v1377, 7
    %v1379 = vsub.s32 4, %v1378
    %v1380 = vrot.slane %v65, %v1379
    %v1381 = vadd.f32 %v1375, %v1380
    %v1382 = vadd.f32 %v1376, %v1380
    %v1383 = vadd.f32 %v1381, %v1343
    %v1384 = vadd.f32 %v1382, %v1344
    %s1385 = scalar_lea.vmem [#allocation2], 32
    %v1386 = vld [vmem:[%s1385] sm:$0xff]
    %v1387 = vld [vmem:[%s1385 + $0x8] sm:$0xff]
    %v1388 = vld [vmem:[%s1385 + $0x10] sm:$0xff]
    %v1389 = vld [vmem:[%s1385 + $0x18] sm:$0xff]
    %s1390 = scalar_lea.vmem %s3, 1
    %v1391 = vld [vmem:[%s1390] sm:$0x1]
    %s1392 = scalar_lea.vmem [#allocation5], 32
    %v1393 = vld [vmem:[%s1392] sm:$0xff]
    %v1394 = vld [vmem:[%s1392 + $0x8] sm:$0xff]
    %v1395 = vld [vmem:[%s1392 + $0x10] sm:$0xff]
    %v1396 = vld [vmem:[%s1392 + $0x18] sm:$0xff]
    %s1397 = scalar_lea.vmem %s5, 8
    %v1398 = vld [vmem:[%s1397] sm:$0x1f]
    %v1399 = vsel %vm66, %v1383, 0.0
    %1400 = vadd.xlane.f32.xlu0 %v1399
    %v1401 = vpop.xlane.xlu0 %1400
    %v1402 = vsel %vm66, %v1384, 0.0
    %1403 = vadd.xlane.f32.xlu0 %v1402
    %v1404 = vpop.xlane.xlu0 %1403
    %v1405 = vmul.f32 %v1401, %v73
    %v1406 = vmul.f32 %v1404, %v73
    %v1407 = vsub.f32 %v1383, %v1405
    %v1408 = vsub.f32 %v1384, %v1406
    %v1409 = vmul.f32 %v1407, %v1407
    %v1410 = vmul.f32 %v1408, %v1408
    %v1411 = vsel %vm66, %v1409, 0.0
    %1412 = vadd.xlane.f32.xlu0 %v1411
    %v1413 = vpop.xlane.xlu0 %1412
    %v1414 = vsel %vm66, %v1410, 0.0
    %1415 = vadd.xlane.f32.xlu0 %v1414
    %v1416 = vpop.xlane.xlu0 %1415
    %v1417 = vmul.f32 %v1413, %v73
    %v1418 = vmul.f32 %v1416, %v73
    %v1419 = vadd.f32 %v1417, 1e-05
    %v1420 = vadd.f32 %v1418, 1e-05
    %v1421 = vrsqrt.pop %v1419
    %v1422 = vrsqrt.pop %v1420
    %v1423 = vmul.f32 %v1407, %v1421
    %v1424 = vmul.f32 %v1408, %v1422
    %v1425 = vlaneseq
    %v1426 = vshrl.u32 %v1425, 7
    %v1427 = vsub.s32 0, %v1426
    %v1428 = vrot.slane %v1398, %v1427
    %v1429 = vmul.f32 %v1423, %v1428
    %v1430 = vmul.f32 %v1424, %v1428
    %v1431 = vlaneseq
    %v1432 = vshrl.u32 %v1431, 7
    %v1433 = vsub.s32 1, %v1432
    %v1434 = vrot.slane %v1398, %v1433
    %v1435 = vadd.f32 %v1429, %v1434
    %v1436 = vadd.f32 %v1430, %v1434
    %v1438 = vlaneseq
    %v1439 = vshrl.u32 %v1438, 7
    %v1440 = vsub.s32 0, %v1439
    %v1441 = vrot.slane %v1391, %v1440
    %v1444 = vsel %vm66, %v1435, 0
    %v1447 = vsel %vm66, %v1436, 0
    %1449 = vmatprep.subr.mxu0 0.0
    %1450 = vmatpush1.msra.mxu0 %v1386
    %1451 = vmatprep.subr.mxu0 0.0
    %1452 = vmatpush1.msra.mxu0 %v1387
    %1453 = vmatprep.subr.mxu0 0.0
    %1454 = vmatpush1.msra.mxu0 %v1388
    %1455 = vmatprep.subr.mxu0 0.0
    %1456 = vmatpush1.msra.mxu0 %v1389
    %1457 = vmatprep.subr.mxu0 0.0
    %1458 = vmatpush1.msra.mxu0 0.0
    %1459 = vmatprep.subr.mxu0 0.0
    %1460 = vmatpush1.msra.mxu0 0.0
    %1461 = vmatprep.subr.mxu0 0.0
    %1462 = vmatpush1.msra.mxu0 0.0
    %1463 = vmatprep.subr.mxu0 0.0
    %1464 = vmatpush1.msra.mxu0 0.0
    %1465 = vmatprep.subr.mxu0 0.0
    %1466 = vmatpush1.msra.mxu0 0.0
    %1467 = vmatprep.subr.mxu0 0.0
    %1468 = vmatpush1.msra.mxu0 0.0
    %1469 = vmatprep.subr.mxu0 0.0
    %1470 = vmatpush1.msra.mxu0 0.0
    %1471 = vmatprep.subr.mxu0 0.0
    %1472 = vmatpush1.msra.mxu0 0.0
    %1473 = vmatprep.subr.mxu0 0.0
    %1474 = vmatpush1.msra.mxu0 0.0
    %1475 = vmatprep.subr.mxu0 0.0
    %1476 = vmatpush1.msra.mxu0 0.0
    %1477 = vmatprep.subr.mxu0 0.0
    %1478 = vmatpush1.msra.mxu0 0.0
    %1479 = vmatprep.subr.mxu0 0.0
    %1480 = vmatpush1.msra.mxu0 0.0
    %1481 = vmatprep.subr.mxu0 0.0
    %1482 = vmatpush1.msra.mxu0 0.0
    %1483 = vmatprep.subr.mxu0 0.0
    %1484 = vmatpush1.msra.mxu0 0.0
    %1485 = vmatprep.subr.mxu0 0.0
    %1486 = vmatpush1.msra.mxu0 0.0
    %1487 = vmatprep.subr.mxu0 0.0
    %1488 = vmatpush1.msra.mxu0 0.0
    %1489 = vmatprep.subr.mxu0 0.0
    %1490 = vmatpush1.msra.mxu0 0.0
    %1491 = vmatprep.subr.mxu0 0.0
    %1492 = vmatpush1.msra.mxu0 0.0
    %1493 = vmatprep.subr.mxu0 0.0
    %1494 = vmatpush1.msra.mxu0 0.0
    %1495 = vmatprep.subr.mxu0 0.0
    %1496 = vmatpush1.msra.mxu0 0.0
    %1497 = vmatprep.subr.mxu0 0.0
    %1498 = vmatpush1.msra.mxu0 0.0
    %1499 = vmatprep.subr.mxu0 0.0
    %1500 = vmatpush1.msra.mxu0 0.0
    %1501 = vmatprep.subr.mxu0 0.0
    %1502 = vmatpush1.msra.mxu0 0.0
    %1503 = vmatprep.subr.mxu0 0.0
    %1504 = vmatpush1.msra.mxu0 0.0
    %1505 = vmatprep.subr.mxu0 0.0
    %1506 = vmatpush1.msra.mxu0 0.0
    %1507 = vmatprep.subr.mxu0 0.0
    %1508 = vmatpush1.msra.mxu0 0.0
    %1509 = vmatprep.subr.mxu0 0.0
    %1510 = vmatpush1.msra.mxu0 0.0
    %1511 = vmatprep.subr.mxu0 0.0
    %1512 = vmatpush1.msra.mxu0 0.0
    %1513 = vmatprep.mubr.f32.mxu0 0.0
    %1514 = vmatmul.mubr.f32.gmra.mrb[0].mxu0 %v1444
    %v1515 = vpop.f32.mrb[0].mxu0
    %v1516 = vadd.f32 %v1441, %v1515
    %v1517 = vpop.f32.mrb[0].mxu0
    %1518 = vmatprep.mubr.f32.mxu0 0.0
    %1519 = vmatmul.mubr.f32.gmra.mrb[0].mxu0 %v1447
    %v1520 = vpop.f32.mrb[0].mxu0
    %v1521 = vadd.f32 %v1441, %v1520
    %v1522 = vpop.f32.mrb[0].mxu0
    %1523 = vdwg.mxu0
    %1526 = vrot.lane.b32.xlu0 %v1516, 96
    %v1527 = vpop.permute.xlu0 %1526
    %1528 = vrot.lane.b32.xlu0 %v1521, 96
    %v1529 = vpop.permute.xlu0 %1528
    %v1530 = vsel %vm199, %v1516, 0
    %v1532 = vsel %vm199, %v1521, 0
    %v1534 = vsel %vm199, %v1527, 0
    %v1536 = vsel %vm199, %v1529, 0
    %1538 = vmatprep.subr.mxu0 0.0
    %1539 = vmatpush1.xpose.msra.mxu0 %v1534
    %1540 = vmatprep.subr.mxu0 0.0
    %1541 = vmatpush1.xpose.msra.mxu0 %v1536
    %1542 = vmatprep.subr.mxu0 0.0
    %1543 = vmatpush1.xpose.msra.mxu0 0.0
    %1544 = vmatprep.subr.mxu0 0.0
    %1545 = vmatpush1.xpose.msra.mxu0 0.0
    %1546 = vmatprep.subr.mxu0 0.0
    %1547 = vmatpush1.xpose.msra.mxu0 0.0
    %1548 = vmatprep.subr.mxu0 0.0
    %1549 = vmatpush1.xpose.msra.mxu0 0.0
    %1550 = vmatprep.subr.mxu0 0.0
    %1551 = vmatpush1.xpose.msra.mxu0 0.0
    %1552 = vmatprep.subr.mxu0 0.0
    %1553 = vmatpush1.xpose.msra.mxu0 0.0
    %1554 = vmatprep.subr.mxu0 0.0
    %1555 = vmatpush1.xpose.msra.mxu0 0.0
    %1556 = vmatprep.subr.mxu0 0.0
    %1557 = vmatpush1.xpose.msra.mxu0 0.0
    %1558 = vmatprep.subr.mxu0 0.0
    %1559 = vmatpush1.xpose.msra.mxu0 0.0
    %1560 = vmatprep.subr.mxu0 0.0
    %1561 = vmatpush1.xpose.msra.mxu0 0.0
    %1562 = vmatprep.subr.mxu0 0.0
    %1563 = vmatpush1.xpose.msra.mxu0 0.0
    %1564 = vmatprep.subr.mxu0 0.0
    %1565 = vmatpush1.xpose.msra.mxu0 0.0
    %1566 = vmatprep.subr.mxu0 0.0
    %1567 = vmatpush1.xpose.msra.mxu0 0.0
    %1568 = vmatprep.subr.mxu0 0.0
    %1569 = vmatpush1.xpose.msra.mxu0 0.0
    %1570 = vmatprep.subr.mxu0 0.0
    %1571 = vmatpush1.xpose.msra.mxu0 0.0
    %1572 = vmatprep.subr.mxu0 0.0
    %1573 = vmatpush1.xpose.msra.mxu0 0.0
    %1574 = vmatprep.subr.mxu0 0.0
    %1575 = vmatpush1.xpose.msra.mxu0 0.0
    %1576 = vmatprep.subr.mxu0 0.0
    %1577 = vmatpush1.xpose.msra.mxu0 0.0
    %1578 = vmatprep.subr.mxu0 0.0
    %1579 = vmatpush1.xpose.msra.mxu0 0.0
    %1580 = vmatprep.subr.mxu0 0.0
    %1581 = vmatpush1.xpose.msra.mxu0 0.0
    %1582 = vmatprep.subr.mxu0 0.0
    %1583 = vmatpush1.xpose.msra.mxu0 0.0
    %1584 = vmatprep.subr.mxu0 0.0
    %1585 = vmatpush1.xpose.msra.mxu0 0.0
    %1586 = vmatprep.subr.mxu0 0.0
    %1587 = vmatpush1.xpose.msra.mxu0 0.0
    %1588 = vmatprep.subr.mxu0 0.0
    %1589 = vmatpush1.xpose.msra.mxu0 0.0
    %1590 = vmatprep.subr.mxu0 0.0
    %1591 = vmatpush1.xpose.msra.mxu0 0.0
    %1592 = vmatprep.subr.mxu0 0.0
    %1593 = vmatpush1.xpose.msra.mxu0 0.0
    %1594 = vmatprep.subr.mxu0 0.0
    %1595 = vmatpush1.xpose.msra.mxu0 0.0
    %1596 = vmatprep.subr.mxu0 0.0
    %1597 = vmatpush1.xpose.msra.mxu0 0.0
    %1598 = vmatprep.subr.mxu0 0.0
    %1599 = vmatpush1.xpose.msra.mxu0 0.0
    %1600 = vmatprep.subr.mxu0 0.0
    %1601 = vmatpush1.xpose.msra.mxu0 0.0
    %1602 = vmatprep.mubr.f32.mxu0 0.0
    %1603 = vmatmul.mubr.f32.gmra.mrb[0].mxu0 %v1530
    %v1604 = vpop.f32.mrb[0].mxu0
    %v1605 = vadd.f32 0.0, %v1604
    %v1606 = vpop.f32.mrb[0].mxu0
    %1607 = vmatprep.mubr.f32.mxu0 0.0
    %1608 = vmatmul.mubr.f32.gmra.mrb[0].mxu0 %v1532
    %v1609 = vpop.f32.mrb[0].mxu0
    %v1610 = vadd.f32 0.0, %v1609
    %v1611 = vpop.f32.mrb[0].mxu0
    %1612 = vdwg.mxu0
    %v1613 = vmul.f32 %v1605, 0.35355338
    %v1614 = vmul.f32 %v1610, 0.35355338
    %v1615 = vadd.f32 %v1613, %v54
    %v1616 = vadd.f32 %v1614, %v55
    %v1617 = vsel %vm287, %v1615, -inf
    %1618 = vmax.xlane.f32.xlu0 %v1617
    %v1619 = vpop.xlane.xlu0 %1618
    %v1620 = vsel %vm287, %v1616, -inf
    %1621 = vmax.xlane.f32.xlu0 %v1620
    %v1622 = vpop.xlane.xlu0 %1621
    %v1623 = vsub.f32 %v1615, %v1619
    %v1624 = vsub.f32 %v1616, %v1622
    %v1625 = vmul.f32 %v1623, 1.442695
    %v1626 = vpow.pop %v1625
    %v1627 = vmul.f32 %v1624, 1.442695
    %v1628 = vpow.pop %v1627
    %v1629 = vsel %vm287, %v1626, 0.0
    %1630 = vadd.xlane.f32.xlu0 %v1629
    %v1631 = vpop.xlane.xlu0 %1630
    %v1632 = vsel %vm287, %v1628, 0.0
    %1633 = vadd.xlane.f32.xlu0 %v1632
    %v1634 = vpop.xlane.xlu0 %1633
    %v1635 = vrcp.pop %v1631
    %v1636 = vmul.f32 %v1626, %v1635
    %v1637 = vrcp.pop %v1634
    %v1638 = vmul.f32 %v1628, %v1637
    %1639 = vrot.lane.b32.xlu0 %v1516, 64
    %v1640 = vpop.permute.xlu0 %1639
    %1641 = vrot.lane.b32.xlu0 %v1521, 64
    %v1642 = vpop.permute.xlu0 %1641
    %v1646 = vsel %vm287, %v1636, 0
    %v1649 = vsel %vm287, %v1638, 0
    %1651 = vmatprep.subr.mxu0 0.0
    %1652 = vmatpush1.msra.mxu0 %v1640
    %1653 = vmatprep.subr.mxu0 0.0
    %1654 = vmatpush1.msra.mxu0 %v1642
    %1655 = vmatprep.subr.mxu0 0.0
    %1656 = vmatpush1.msra.mxu0 0.0
    %1657 = vmatprep.subr.mxu0 0.0
    %1658 = vmatpush1.msra.mxu0 0.0
    %1659 = vmatprep.subr.mxu0 0.0
    %1660 = vmatpush1.msra.mxu0 0.0
    %1661 = vmatprep.subr.mxu0 0.0
    %1662 = vmatpush1.msra.mxu0 0.0
    %1663 = vmatprep.subr.mxu0 0.0
    %1664 = vmatpush1.msra.mxu0 0.0
    %1665 = vmatprep.subr.mxu0 0.0
    %1666 = vmatpush1.msra.mxu0 0.0
    %1667 = vmatprep.subr.mxu0 0.0
    %1668 = vmatpush1.msra.mxu0 0.0
    %1669 = vmatprep.subr.mxu0 0.0
    %1670 = vmatpush1.msra.mxu0 0.0
    %1671 = vmatprep.subr.mxu0 0.0
    %1672 = vmatpush1.msra.mxu0 0.0
    %1673 = vmatprep.subr.mxu0 0.0
    %1674 = vmatpush1.msra.mxu0 0.0
    %1675 = vmatprep.subr.mxu0 0.0
    %1676 = vmatpush1.msra.mxu0 0.0
    %1677 = vmatprep.subr.mxu0 0.0
    %1678 = vmatpush1.msra.mxu0 0.0
    %1679 = vmatprep.subr.mxu0 0.0
    %1680 = vmatpush1.msra.mxu0 0.0
    %1681 = vmatprep.subr.mxu0 0.0
    %1682 = vmatpush1.msra.mxu0 0.0
    %1683 = vmatprep.subr.mxu0 0.0
    %1684 = vmatpush1.msra.mxu0 0.0
    %1685 = vmatprep.subr.mxu0 0.0
    %1686 = vmatpush1.msra.mxu0 0.0
    %1687 = vmatprep.subr.mxu0 0.0
    %1688 = vmatpush1.msra.mxu0 0.0
    %1689 = vmatprep.subr.mxu0 0.0
    %1690 = vmatpush1.msra.mxu0 0.0
    %1691 = vmatprep.subr.mxu0 0.0
    %1692 = vmatpush1.msra.mxu0 0.0
    %1693 = vmatprep.subr.mxu0 0.0
    %1694 = vmatpush1.msra.mxu0 0.0
    %1695 = vmatprep.subr.mxu0 0.0
    %1696 = vmatpush1.msra.mxu0 0.0
    %1697 = vmatprep.subr.mxu0 0.0
    %1698 = vmatpush1.msra.mxu0 0.0
    %1699 = vmatprep.subr.mxu0 0.0
    %1700 = vmatpush1.msra.mxu0 0.0
    %1701 = vmatprep.subr.mxu0 0.0
    %1702 = vmatpush1.msra.mxu0 0.0
    %1703 = vmatprep.subr.mxu0 0.0
    %1704 = vmatpush1.msra.mxu0 0.0
    %1705 = vmatprep.subr.mxu0 0.0
    %1706 = vmatpush1.msra.mxu0 0.0
    %1707 = vmatprep.subr.mxu0 0.0
    %1708 = vmatpush1.msra.mxu0 0.0
    %1709 = vmatprep.subr.mxu0 0.0
    %1710 = vmatpush1.msra.mxu0 0.0
    %1711 = vmatprep.subr.mxu0 0.0
    %1712 = vmatpush1.msra.mxu0 0.0
    %1713 = vmatprep.subr.mxu0 0.0
    %1714 = vmatpush1.msra.mxu0 0.0
    %1715 = vmatprep.mubr.f32.mxu0 0.0
    %1716 = vmatmul.mubr.f32.gmra.mrb[0].mxu0 %v1646
    %v1717 = vpop.f32.mrb[0].mxu0
    %v1718 = vadd.f32 0.0, %v1717
    %v1719 = vpop.f32.mrb[0].mxu0
    %1720 = vmatprep.mubr.f32.mxu0 0.0
    %1721 = vmatmul.mubr.f32.gmra.mrb[0].mxu0 %v1649
    %v1722 = vpop.f32.mrb[0].mxu0
    %v1723 = vadd.f32 0.0, %v1722
    %v1724 = vpop.f32.mrb[0].mxu0
    %1725 = vdwg.mxu0
    %1726 = vrot.lane.b32.xlu0 %v1516, 120
    %v1727 = vpop.permute.xlu0 %1726
    %1728 = vrot.lane.b32.xlu0 %v1521, 120
    %v1729 = vpop.permute.xlu0 %1728
    %1730 = vrot.lane.b32.xlu0 %v1516, 88
    %v1731 = vpop.permute.xlu0 %1730
    %1732 = vrot.lane.b32.xlu0 %v1521, 88
    %v1733 = vpop.permute.xlu0 %1732
    %v1734 = vsel %vm199, %v1727, 0
    %v1736 = vsel %vm199, %v1729, 0
    %v1738 = vsel %vm199, %v1731, 0
    %v1740 = vsel %vm199, %v1733, 0
    %1742 = vmatprep.subr.mxu0 0.0
    %1743 = vmatpush1.xpose.msra.mxu0 %v1738
    %1744 = vmatprep.subr.mxu0 0.0
    %1745 = vmatpush1.xpose.msra.mxu0 %v1740
    %1746 = vmatprep.subr.mxu0 0.0
    %1747 = vmatpush1.xpose.msra.mxu0 0.0
    %1748 = vmatprep.subr.mxu0 0.0
    %1749 = vmatpush1.xpose.msra.mxu0 0.0
    %1750 = vmatprep.subr.mxu0 0.0
    %1751 = vmatpush1.xpose.msra.mxu0 0.0
    %1752 = vmatprep.subr.mxu0 0.0
    %1753 = vmatpush1.xpose.msra.mxu0 0.0
    %1754 = vmatprep.subr.mxu0 0.0
    %1755 = vmatpush1.xpose.msra.mxu0 0.0
    %1756 = vmatprep.subr.mxu0 0.0
    %1757 = vmatpush1.xpose.msra.mxu0 0.0
    %1758 = vmatprep.subr.mxu0 0.0
    %1759 = vmatpush1.xpose.msra.mxu0 0.0
    %1760 = vmatprep.subr.mxu0 0.0
    %1761 = vmatpush1.xpose.msra.mxu0 0.0
    %1762 = vmatprep.subr.mxu0 0.0
    %1763 = vmatpush1.xpose.msra.mxu0 0.0
    %1764 = vmatprep.subr.mxu0 0.0
    %1765 = vmatpush1.xpose.msra.mxu0 0.0
    %1766 = vmatprep.subr.mxu0 0.0
    %1767 = vmatpush1.xpose.msra.mxu0 0.0
    %1768 = vmatprep.subr.mxu0 0.0
    %1769 = vmatpush1.xpose.msra.mxu0 0.0
    %1770 = vmatprep.subr.mxu0 0.0
    %1771 = vmatpush1.xpose.msra.mxu0 0.0
    %1772 = vmatprep.subr.mxu0 0.0
    %1773 = vmatpush1.xpose.msra.mxu0 0.0
    %1774 = vmatprep.subr.mxu0 0.0
    %1775 = vmatpush1.xpose.msra.mxu0 0.0
    %1776 = vmatprep.subr.mxu0 0.0
    %1777 = vmatpush1.xpose.msra.mxu0 0.0
    %1778 = vmatprep.subr.mxu0 0.0
    %1779 = vmatpush1.xpose.msra.mxu0 0.0
    %1780 = vmatprep.subr.mxu0 0.0
    %1781 = vmatpush1.xpose.msra.mxu0 0.0
    %1782 = vmatprep.subr.mxu0 0.0
    %1783 = vmatpush1.xpose.msra.mxu0 0.0
    %1784 = vmatprep.subr.mxu0 0.0
    %1785 = vmatpush1.xpose.msra.mxu0 0.0
    %1786 = vmatprep.subr.mxu0 0.0
    %1787 = vmatpush1.xpose.msra.mxu0 0.0
    %1788 = vmatprep.subr.mxu0 0.0
    %1789 = vmatpush1.xpose.msra.mxu0 0.0
    %1790 = vmatprep.subr.mxu0 0.0
    %1791 = vmatpush1.xpose.msra.mxu0 0.0
    %1792 = vmatprep.subr.mxu0 0.0
    %1793 = vmatpush1.xpose.msra.mxu0 0.0
    %1794 = vmatprep.subr.mxu0 0.0
    %1795 = vmatpush1.xpose.msra.mxu0 0.0
    %1796 = vmatprep.subr.mxu0 0.0
    %1797 = vmatpush1.xpose.msra.mxu0 0.0
    %1798 = vmatprep.subr.mxu0 0.0
    %1799 = vmatpush1.xpose.msra.mxu0 0.0
    %1800 = vmatprep.subr.mxu0 0.0
    %1801 = vmatpush1.xpose.msra.mxu0 0.0
    %1802 = vmatprep.subr.mxu0 0.0
    %1803 = vmatpush1.xpose.msra.mxu0 0.0
    %1804 = vmatprep.subr.mxu0 0.0
    %1805 = vmatpush1.xpose.msra.mxu0 0.0
    %1806 = vmatprep.mubr.f32.mxu0 0.0
    %1807 = vmatmul.mubr.f32.gmra.mrb[0].mxu0 %v1734
    %v1808 = vpop.f32.mrb[0].mxu0
    %v1809 = vadd.f32 0.0, %v1808
    %v1810 = vpop.f32.mrb[0].mxu0
    %1811 = vmatprep.mubr.f32.mxu0 0.0
    %1812 = vmatmul.mubr.f32.gmra.mrb[0].mxu0 %v1736
    %v1813 = vpop.f32.mrb[0].mxu0
    %v1814 = vadd.f32 0.0, %v1813
    %v1815 = vpop.f32.mrb[0].mxu0
    %1816 = vdwg.mxu0
    %v1817 = vmul.f32 %v1809, 0.35355338
    %v1818 = vmul.f32 %v1814, 0.35355338
    %v1819 = vadd.f32 %v1817, %v54
    %v1820 = vadd.f32 %v1818, %v55
    %v1821 = vsel %vm287, %v1819, -inf
    %1822 = vmax.xlane.f32.xlu0 %v1821
    %v1823 = vpop.xlane.xlu0 %1822
    %v1824 = vsel %vm287, %v1820, -inf
    %1825 = vmax.xlane.f32.xlu0 %v1824
    %v1826 = vpop.xlane.xlu0 %1825
    %v1827 = vsub.f32 %v1819, %v1823
    %v1828 = vsub.f32 %v1820, %v1826
    %v1829 = vmul.f32 %v1827, 1.442695
    %v1830 = vpow.pop %v1829
    %v1831 = vmul.f32 %v1828, 1.442695
    %v1832 = vpow.pop %v1831
    %v1833 = vsel %vm287, %v1830, 0.0
    %1834 = vadd.xlane.f32.xlu0 %v1833
    %v1835 = vpop.xlane.xlu0 %1834
    %v1836 = vsel %vm287, %v1832, 0.0
    %1837 = vadd.xlane.f32.xlu0 %v1836
    %v1838 = vpop.xlane.xlu0 %1837
    %v1839 = vrcp.pop %v1835
    %v1840 = vmul.f32 %v1830, %v1839
    %v1841 = vrcp.pop %v1838
    %v1842 = vmul.f32 %v1832, %v1841
    %1843 = vrot.lane.b32.xlu0 %v1516, 56
    %v1844 = vpop.permute.xlu0 %1843
    %1845 = vrot.lane.b32.xlu0 %v1521, 56
    %v1846 = vpop.permute.xlu0 %1845
    %v1850 = vsel %vm287, %v1840, 0
    %v1853 = vsel %vm287, %v1842, 0
    %1855 = vmatprep.subr.mxu0 0.0
    %1856 = vmatpush1.msra.mxu0 %v1844
    %1857 = vmatprep.subr.mxu0 0.0
    %1858 = vmatpush1.msra.mxu0 %v1846
    %1859 = vmatprep.subr.mxu0 0.0
    %1860 = vmatpush1.msra.mxu0 0.0
    %1861 = vmatprep.subr.mxu0 0.0
    %1862 = vmatpush1.msra.mxu0 0.0
    %1863 = vmatprep.subr.mxu0 0.0
    %1864 = vmatpush1.msra.mxu0 0.0
    %1865 = vmatprep.subr.mxu0 0.0
    %1866 = vmatpush1.msra.mxu0 0.0
    %1867 = vmatprep.subr.mxu0 0.0
    %1868 = vmatpush1.msra.mxu0 0.0
    %1869 = vmatprep.subr.mxu0 0.0
    %1870 = vmatpush1.msra.mxu0 0.0
    %1871 = vmatprep.subr.mxu0 0.0
    %1872 = vmatpush1.msra.mxu0 0.0
    %1873 = vmatprep.subr.mxu0 0.0
    %1874 = vmatpush1.msra.mxu0 0.0
    %1875 = vmatprep.subr.mxu0 0.0
    %1876 = vmatpush1.msra.mxu0 0.0
    %1877 = vmatprep.subr.mxu0 0.0
    %1878 = vmatpush1.msra.mxu0 0.0
    %1879 = vmatprep.subr.mxu0 0.0
    %1880 = vmatpush1.msra.mxu0 0.0
    %1881 = vmatprep.subr.mxu0 0.0
    %1882 = vmatpush1.msra.mxu0 0.0
    %1883 = vmatprep.subr.mxu0 0.0
    %1884 = vmatpush1.msra.mxu0 0.0
    %1885 = vmatprep.subr.mxu0 0.0
    %1886 = vmatpush1.msra.mxu0 0.0
    %1887 = vmatprep.subr.mxu0 0.0
    %1888 = vmatpush1.msra.mxu0 0.0
    %1889 = vmatprep.subr.mxu0 0.0
    %1890 = vmatpush1.msra.mxu0 0.0
    %1891 = vmatprep.subr.mxu0 0.0
    %1892 = vmatpush1.msra.mxu0 0.0
    %1893 = vmatprep.subr.mxu0 0.0
    %1894 = vmatpush1.msra.mxu0 0.0
    %1895 = vmatprep.subr.mxu0 0.0
    %1896 = vmatpush1.msra.mxu0 0.0
    %1897 = vmatprep.subr.mxu0 0.0
    %1898 = vmatpush1.msra.mxu0 0.0
    %1899 = vmatprep.subr.mxu0 0.0
    %1900 = vmatpush1.msra.mxu0 0.0
    %1901 = vmatprep.subr.mxu0 0.0
    %1902 = vmatpush1.msra.mxu0 0.0
    %1903 = vmatprep.subr.mxu0 0.0
    %1904 = vmatpush1.msra.mxu0 0.0
    %1905 = vmatprep.subr.mxu0 0.0
    %1906 = vmatpush1.msra.mxu0 0.0
    %1907 = vmatprep.subr.mxu0 0.0
    %1908 = vmatpush1.msra.mxu0 0.0
    %1909 = vmatprep.subr.mxu0 0.0
    %1910 = vmatpush1.msra.mxu0 0.0
    %1911 = vmatprep.subr.mxu0 0.0
    %1912 = vmatpush1.msra.mxu0 0.0
    %1913 = vmatprep.subr.mxu0 0.0
    %1914 = vmatpush1.msra.mxu0 0.0
    %1915 = vmatprep.subr.mxu0 0.0
    %1916 = vmatpush1.msra.mxu0 0.0
    %1917 = vmatprep.subr.mxu0 0.0
    %1918 = vmatpush1.msra.mxu0 0.0
    %1919 = vmatprep.mubr.f32.mxu0 0.0
    %1920 = vmatmul.mubr.f32.gmra.mrb[0].mxu0 %v1850
    %v1921 = vpop.f32.mrb[0].mxu0
    %v1922 = vadd.f32 0.0, %v1921
    %v1923 = vpop.f32.mrb[0].mxu0
    %1924 = vmatprep.mubr.f32.mxu0 0.0
    %1925 = vmatmul.mubr.f32.gmra.mrb[0].mxu0 %v1853
    %v1926 = vpop.f32.mrb[0].mxu0
    %v1927 = vadd.f32 0.0, %v1926
    %v1928 = vpop.f32.mrb[0].mxu0
    %1929 = vdwg.mxu0
    %v1931 = vsel %vm199, %v1922, 0
    %v1934 = vsel %vm199, %v1927, 0
    %1936 = vmatprep.subr.mxu0 0.0
    %1937 = vmatpush1.msra.mxu0 %v1394
    %1938 = vmatprep.subr.mxu0 0.0
    %1939 = vmatpush1.msra.mxu0 0.0
    %1940 = vmatprep.subr.mxu0 0.0
    %1941 = vmatpush1.msra.mxu0 0.0
    %1942 = vmatprep.subr.mxu0 0.0
    %1943 = vmatpush1.msra.mxu0 0.0
    %1944 = vmatprep.subr.mxu0 0.0
    %1945 = vmatpush1.msra.mxu0 0.0
    %1946 = vmatprep.subr.mxu0 0.0
    %1947 = vmatpush1.msra.mxu0 0.0
    %1948 = vmatprep.subr.mxu0 0.0
    %1949 = vmatpush1.msra.mxu0 0.0
    %1950 = vmatprep.subr.mxu0 0.0
    %1951 = vmatpush1.msra.mxu0 0.0
    %1952 = vmatprep.subr.mxu0 0.0
    %1953 = vmatpush1.msra.mxu0 0.0
    %1954 = vmatprep.subr.mxu0 0.0
    %1955 = vmatpush1.msra.mxu0 0.0
    %1956 = vmatprep.subr.mxu0 0.0
    %1957 = vmatpush1.msra.mxu0 0.0
    %1958 = vmatprep.subr.mxu0 0.0
    %1959 = vmatpush1.msra.mxu0 0.0
    %1960 = vmatprep.subr.mxu0 0.0
    %1961 = vmatpush1.msra.mxu0 0.0
    %1962 = vmatprep.subr.mxu0 0.0
    %1963 = vmatpush1.msra.mxu0 0.0
    %1964 = vmatprep.subr.mxu0 0.0
    %1965 = vmatpush1.msra.mxu0 0.0
    %1966 = vmatprep.subr.mxu0 0.0
    %1967 = vmatpush1.msra.mxu0 0.0
    %1968 = vmatprep.subr.mxu0 0.0
    %1969 = vmatpush1.msra.mxu0 0.0
    %1970 = vmatprep.subr.mxu0 0.0
    %1971 = vmatpush1.msra.mxu0 0.0
    %1972 = vmatprep.subr.mxu0 0.0
    %1973 = vmatpush1.msra.mxu0 0.0
    %1974 = vmatprep.subr.mxu0 0.0
    %1975 = vmatpush1.msra.mxu0 0.0
    %1976 = vmatprep.subr.mxu0 0.0
    %1977 = vmatpush1.msra.mxu0 0.0
    %1978 = vmatprep.subr.mxu0 0.0
    %1979 = vmatpush1.msra.mxu0 0.0
    %1980 = vmatprep.subr.mxu0 0.0
    %1981 = vmatpush1.msra.mxu0 0.0
    %1982 = vmatprep.subr.mxu0 0.0
    %1983 = vmatpush1.msra.mxu0 0.0
    %1984 = vmatprep.subr.mxu0 0.0
    %1985 = vmatpush1.msra.mxu0 0.0
    %1986 = vmatprep.subr.mxu0 0.0
    %1987 = vmatpush1.msra.mxu0 0.0
    %1988 = vmatprep.subr.mxu0 0.0
    %1989 = vmatpush1.msra.mxu0 0.0
    %1990 = vmatprep.subr.mxu0 0.0
    %1991 = vmatpush1.msra.mxu0 0.0
    %1992 = vmatprep.subr.mxu0 0.0
    %1993 = vmatpush1.msra.mxu0 0.0
    %1994 = vmatprep.subr.mxu0 0.0
    %1995 = vmatpush1.msra.mxu0 0.0
    %1996 = vmatprep.subr.mxu0 0.0
    %1997 = vmatpush1.msra.mxu0 0.0
    %1998 = vmatprep.subr.mxu0 0.0
    %1999 = vmatpush1.msra.mxu0 0.0
    %2000 = vmatprep.mubr.f32.mxu0 0.0
    %2001 = vmatmul.mubr.f32.gmra.mrb[0].mxu0 %v1931
    %v2002 = vpop.f32.mrb[0].mxu0
    %v2003 = vadd.f32 0.0, %v2002
    %v2004 = vpop.f32.mrb[0].mxu0
    %2005 = vmatprep.mubr.f32.mxu0 0.0
    %2006 = vmatmul.mubr.f32.gmra.mrb[0].mxu0 %v1934
    %v2007 = vpop.f32.mrb[0].mxu0
    %v2008 = vadd.f32 0.0, %v2007
    %v2009 = vpop.f32.mrb[0].mxu0
    %2010 = vdwg.mxu0
    %v2012 = vsel %vm199, %v1718, 0
    %v2015 = vsel %vm199, %v1723, 0
    %2017 = vmatprep.subr.mxu0 0.0
    %2018 = vmatpush1.msra.mxu0 %v1393
    %2019 = vmatprep.subr.mxu0 0.0
    %2020 = vmatpush1.msra.mxu0 0.0
    %2021 = vmatprep.subr.mxu0 0.0
    %2022 = vmatpush1.msra.mxu0 0.0
    %2023 = vmatprep.subr.mxu0 0.0
    %2024 = vmatpush1.msra.mxu0 0.0
    %2025 = vmatprep.subr.mxu0 0.0
    %2026 = vmatpush1.msra.mxu0 0.0
    %2027 = vmatprep.subr.mxu0 0.0
    %2028 = vmatpush1.msra.mxu0 0.0
    %2029 = vmatprep.subr.mxu0 0.0
    %2030 = vmatpush1.msra.mxu0 0.0
    %2031 = vmatprep.subr.mxu0 0.0
    %2032 = vmatpush1.msra.mxu0 0.0
    %2033 = vmatprep.subr.mxu0 0.0
    %2034 = vmatpush1.msra.mxu0 0.0
    %2035 = vmatprep.subr.mxu0 0.0
    %2036 = vmatpush1.msra.mxu0 0.0
    %2037 = vmatprep.subr.mxu0 0.0
    %2038 = vmatpush1.msra.mxu0 0.0
    %2039 = vmatprep.subr.mxu0 0.0
    %2040 = vmatpush1.msra.mxu0 0.0
    %2041 = vmatprep.subr.mxu0 0.0
    %2042 = vmatpush1.msra.mxu0 0.0
    %2043 = vmatprep.subr.mxu0 0.0
    %2044 = vmatpush1.msra.mxu0 0.0
    %2045 = vmatprep.subr.mxu0 0.0
    %2046 = vmatpush1.msra.mxu0 0.0
    %2047 = vmatprep.subr.mxu0 0.0
    %2048 = vmatpush1.msra.mxu0 0.0
    %2049 = vmatprep.subr.mxu0 0.0
    %2050 = vmatpush1.msra.mxu0 0.0
    %2051 = vmatprep.subr.mxu0 0.0
    %2052 = vmatpush1.msra.mxu0 0.0
    %2053 = vmatprep.subr.mxu0 0.0
    %2054 = vmatpush1.msra.mxu0 0.0
    %2055 = vmatprep.subr.mxu0 0.0
    %2056 = vmatpush1.msra.mxu0 0.0
    %2057 = vmatprep.subr.mxu0 0.0
    %2058 = vmatpush1.msra.mxu0 0.0
    %2059 = vmatprep.subr.mxu0 0.0
    %2060 = vmatpush1.msra.mxu0 0.0
    %2061 = vmatprep.subr.mxu0 0.0
    %2062 = vmatpush1.msra.mxu0 0.0
    %2063 = vmatprep.subr.mxu0 0.0
    %2064 = vmatpush1.msra.mxu0 0.0
    %2065 = vmatprep.subr.mxu0 0.0
    %2066 = vmatpush1.msra.mxu0 0.0
    %2067 = vmatprep.subr.mxu0 0.0
    %2068 = vmatpush1.msra.mxu0 0.0
    %2069 = vmatprep.subr.mxu0 0.0
    %2070 = vmatpush1.msra.mxu0 0.0
    %2071 = vmatprep.subr.mxu0 0.0
    %2072 = vmatpush1.msra.mxu0 0.0
    %2073 = vmatprep.subr.mxu0 0.0
    %2074 = vmatpush1.msra.mxu0 0.0
    %2075 = vmatprep.subr.mxu0 0.0
    %2076 = vmatpush1.msra.mxu0 0.0
    %2077 = vmatprep.subr.mxu0 0.0
    %2078 = vmatpush1.msra.mxu0 0.0
    %2079 = vmatprep.subr.mxu0 0.0
    %2080 = vmatpush1.msra.mxu0 0.0
    %2081 = vmatprep.mubr.f32.mxu0 0.0
    %2082 = vmatmul.mubr.f32.gmra.mrb[0].mxu0 %v2012
    %v2083 = vpop.f32.mrb[0].mxu0
    %v2084 = vadd.f32 %v2003, %v2083
    %v2085 = vpop.f32.mrb[0].mxu0
    %2086 = vmatprep.mubr.f32.mxu0 0.0
    %2087 = vmatmul.mubr.f32.gmra.mrb[0].mxu0 %v2015
    %v2088 = vpop.f32.mrb[0].mxu0
    %v2089 = vadd.f32 %v2008, %v2088
    %v2090 = vpop.f32.mrb[0].mxu0
    %2091 = vdwg.mxu0
    %2092 = vrot.lane.b32.xlu0 %v1516, 112
    %v2093 = vpop.permute.xlu0 %2092
    %2094 = vrot.lane.b32.xlu0 %v1521, 112
    %v2095 = vpop.permute.xlu0 %2094
    %2096 = vrot.lane.b32.xlu0 %v1516, 80
    %v2097 = vpop.permute.xlu0 %2096
    %2098 = vrot.lane.b32.xlu0 %v1521, 80
    %v2099 = vpop.permute.xlu0 %2098
    %v2100 = vsel %vm199, %v2093, 0
    %v2102 = vsel %vm199, %v2095, 0
    %v2104 = vsel %vm199, %v2097, 0
    %v2106 = vsel %vm199, %v2099, 0
    %2108 = vmatprep.subr.mxu0 0.0
    %2109 = vmatpush1.xpose.msra.mxu0 %v2104
    %2110 = vmatprep.subr.mxu0 0.0
    %2111 = vmatpush1.xpose.msra.mxu0 %v2106
    %2112 = vmatprep.subr.mxu0 0.0
    %2113 = vmatpush1.xpose.msra.mxu0 0.0
    %2114 = vmatprep.subr.mxu0 0.0
    %2115 = vmatpush1.xpose.msra.mxu0 0.0
    %2116 = vmatprep.subr.mxu0 0.0
    %2117 = vmatpush1.xpose.msra.mxu0 0.0
    %2118 = vmatprep.subr.mxu0 0.0
    %2119 = vmatpush1.xpose.msra.mxu0 0.0
    %2120 = vmatprep.subr.mxu0 0.0
    %2121 = vmatpush1.xpose.msra.mxu0 0.0
    %2122 = vmatprep.subr.mxu0 0.0
    %2123 = vmatpush1.xpose.msra.mxu0 0.0
    %2124 = vmatprep.subr.mxu0 0.0
    %2125 = vmatpush1.xpose.msra.mxu0 0.0
    %2126 = vmatprep.subr.mxu0 0.0
    %2127 = vmatpush1.xpose.msra.mxu0 0.0
    %2128 = vmatprep.subr.mxu0 0.0
    %2129 = vmatpush1.xpose.msra.mxu0 0.0
    %2130 = vmatprep.subr.mxu0 0.0
    %2131 = vmatpush1.xpose.msra.mxu0 0.0
    %2132 = vmatprep.subr.mxu0 0.0
    %2133 = vmatpush1.xpose.msra.mxu0 0.0
    %2134 = vmatprep.subr.mxu0 0.0
    %2135 = vmatpush1.xpose.msra.mxu0 0.0
    %2136 = vmatprep.subr.mxu0 0.0
    %2137 = vmatpush1.xpose.msra.mxu0 0.0
    %2138 = vmatprep.subr.mxu0 0.0
    %2139 = vmatpush1.xpose.msra.mxu0 0.0
    %2140 = vmatprep.subr.mxu0 0.0
    %2141 = vmatpush1.xpose.msra.mxu0 0.0
    %2142 = vmatprep.subr.mxu0 0.0
    %2143 = vmatpush1.xpose.msra.mxu0 0.0
    %2144 = vmatprep.subr.mxu0 0.0
    %2145 = vmatpush1.xpose.msra.mxu0 0.0
    %2146 = vmatprep.subr.mxu0 0.0
    %2147 = vmatpush1.xpose.msra.mxu0 0.0
    %2148 = vmatprep.subr.mxu0 0.0
    %2149 = vmatpush1.xpose.msra.mxu0 0.0
    %2150 = vmatprep.subr.mxu0 0.0
    %2151 = vmatpush1.xpose.msra.mxu0 0.0
    %2152 = vmatprep.subr.mxu0 0.0
    %2153 = vmatpush1.xpose.msra.mxu0 0.0
    %2154 = vmatprep.subr.mxu0 0.0
    %2155 = vmatpush1.xpose.msra.mxu0 0.0
    %2156 = vmatprep.subr.mxu0 0.0
    %2157 = vmatpush1.xpose.msra.mxu0 0.0
    %2158 = vmatprep.subr.mxu0 0.0
    %2159 = vmatpush1.xpose.msra.mxu0 0.0
    %2160 = vmatprep.subr.mxu0 0.0
    %2161 = vmatpush1.xpose.msra.mxu0 0.0
    %2162 = vmatprep.subr.mxu0 0.0
    %2163 = vmatpush1.xpose.msra.mxu0 0.0
    %2164 = vmatprep.subr.mxu0 0.0
    %2165 = vmatpush1.xpose.msra.mxu0 0.0
    %2166 = vmatprep.subr.mxu0 0.0
    %2167 = vmatpush1.xpose.msra.mxu0 0.0
    %2168 = vmatprep.subr.mxu0 0.0
    %2169 = vmatpush1.xpose.msra.mxu0 0.0
    %2170 = vmatprep.subr.mxu0 0.0
    %2171 = vmatpush1.xpose.msra.mxu0 0.0
    %2172 = vmatprep.mubr.f32.mxu0 0.0
    %2173 = vmatmul.mubr.f32.gmra.mrb[0].mxu0 %v2100
    %v2174 = vpop.f32.mrb[0].mxu0
    %v2175 = vadd.f32 0.0, %v2174
    %v2176 = vpop.f32.mrb[0].mxu0
    %2177 = vmatprep.mubr.f32.mxu0 0.0
    %2178 = vmatmul.mubr.f32.gmra.mrb[0].mxu0 %v2102
    %v2179 = vpop.f32.mrb[0].mxu0
    %v2180 = vadd.f32 0.0, %v2179
    %v2181 = vpop.f32.mrb[0].mxu0
    %2182 = vdwg.mxu0
    %v2183 = vmul.f32 %v2175, 0.35355338
    %v2184 = vmul.f32 %v2180, 0.35355338
    %v2185 = vadd.f32 %v2183, %v54
    %v2186 = vadd.f32 %v2184, %v55
    %v2187 = vsel %vm287, %v2185, -inf
    %2188 = vmax.xlane.f32.xlu0 %v2187
    %v2189 = vpop.xlane.xlu0 %2188
    %v2190 = vsel %vm287, %v2186, -inf
    %2191 = vmax.xlane.f32.xlu0 %v2190
    %v2192 = vpop.xlane.xlu0 %2191
    %v2193 = vsub.f32 %v2185, %v2189
    %v2194 = vsub.f32 %v2186, %v2192
    %v2195 = vmul.f32 %v2193, 1.442695
    %v2196 = vpow.pop %v2195
    %v2197 = vmul.f32 %v2194, 1.442695
    %v2198 = vpow.pop %v2197
    %v2199 = vsel %vm287, %v2196, 0.0
    %2200 = vadd.xlane.f32.xlu0 %v2199
    %v2201 = vpop.xlane.xlu0 %2200
    %v2202 = vsel %vm287, %v2198, 0.0
    %2203 = vadd.xlane.f32.xlu0 %v2202
    %v2204 = vpop.xlane.xlu0 %2203
    %v2205 = vrcp.pop %v2201
    %v2206 = vmul.f32 %v2196, %v2205
    %v2207 = vrcp.pop %v2204
    %v2208 = vmul.f32 %v2198, %v2207
    %2209 = vrot.lane.b32.xlu0 %v1516, 48
    %v2210 = vpop.permute.xlu0 %2209
    %2211 = vrot.lane.b32.xlu0 %v1521, 48
    %v2212 = vpop.permute.xlu0 %2211
    %v2216 = vsel %vm287, %v2206, 0
    %v2219 = vsel %vm287, %v2208, 0
    %2221 = vmatprep.subr.mxu0 0.0
    %2222 = vmatpush1.msra.mxu0 %v2210
    %2223 = vmatprep.subr.mxu0 0.0
    %2224 = vmatpush1.msra.mxu0 %v2212
    %2225 = vmatprep.subr.mxu0 0.0
    %2226 = vmatpush1.msra.mxu0 0.0
    %2227 = vmatprep.subr.mxu0 0.0
    %2228 = vmatpush1.msra.mxu0 0.0
    %2229 = vmatprep.subr.mxu0 0.0
    %2230 = vmatpush1.msra.mxu0 0.0
    %2231 = vmatprep.subr.mxu0 0.0
    %2232 = vmatpush1.msra.mxu0 0.0
    %2233 = vmatprep.subr.mxu0 0.0
    %2234 = vmatpush1.msra.mxu0 0.0
    %2235 = vmatprep.subr.mxu0 0.0
    %2236 = vmatpush1.msra.mxu0 0.0
    %2237 = vmatprep.subr.mxu0 0.0
    %2238 = vmatpush1.msra.mxu0 0.0
    %2239 = vmatprep.subr.mxu0 0.0
    %2240 = vmatpush1.msra.mxu0 0.0
    %2241 = vmatprep.subr.mxu0 0.0
    %2242 = vmatpush1.msra.mxu0 0.0
    %2243 = vmatprep.subr.mxu0 0.0
    %2244 = vmatpush1.msra.mxu0 0.0
    %2245 = vmatprep.subr.mxu0 0.0
    %2246 = vmatpush1.msra.mxu0 0.0
    %2247 = vmatprep.subr.mxu0 0.0
    %2248 = vmatpush1.msra.mxu0 0.0
    %2249 = vmatprep.subr.mxu0 0.0
    %2250 = vmatpush1.msra.mxu0 0.0
    %2251 = vmatprep.subr.mxu0 0.0
    %2252 = vmatpush1.msra.mxu0 0.0
    %2253 = vmatprep.subr.mxu0 0.0
    %2254 = vmatpush1.msra.mxu0 0.0
    %2255 = vmatprep.subr.mxu0 0.0
    %2256 = vmatpush1.msra.mxu0 0.0
    %2257 = vmatprep.subr.mxu0 0.0
    %2258 = vmatpush1.msra.mxu0 0.0
    %2259 = vmatprep.subr.mxu0 0.0
    %2260 = vmatpush1.msra.mxu0 0.0
    %2261 = vmatprep.subr.mxu0 0.0
    %2262 = vmatpush1.msra.mxu0 0.0
    %2263 = vmatprep.subr.mxu0 0.0
    %2264 = vmatpush1.msra.mxu0 0.0
    %2265 = vmatprep.subr.mxu0 0.0
    %2266 = vmatpush1.msra.mxu0 0.0
    %2267 = vmatprep.subr.mxu0 0.0
    %2268 = vmatpush1.msra.mxu0 0.0
    %2269 = vmatprep.subr.mxu0 0.0
    %2270 = vmatpush1.msra.mxu0 0.0
    %2271 = vmatprep.subr.mxu0 0.0
    %2272 = vmatpush1.msra.mxu0 0.0
    %2273 = vmatprep.subr.mxu0 0.0
    %2274 = vmatpush1.msra.mxu0 0.0
    %2275 = vmatprep.subr.mxu0 0.0
    %2276 = vmatpush1.msra.mxu0 0.0
    %2277 = vmatprep.subr.mxu0 0.0
    %2278 = vmatpush1.msra.mxu0 0.0
    %2279 = vmatprep.subr.mxu0 0.0
    %2280 = vmatpush1.msra.mxu0 0.0
    %2281 = vmatprep.subr.mxu0 0.0
    %2282 = vmatpush1.msra.mxu0 0.0
    %2283 = vmatprep.subr.mxu0 0.0
    %2284 = vmatpush1.msra.mxu0 0.0
    %2285 = vmatprep.mubr.f32.mxu0 0.0
    %2286 = vmatmul.mubr.f32.gmra.mrb[0].mxu0 %v2216
    %v2287 = vpop.f32.mrb[0].mxu0
    %v2288 = vadd.f32 0.0, %v2287
    %v2289 = vpop.f32.mrb[0].mxu0
    %2290 = vmatprep.mubr.f32.mxu0 0.0
    %2291 = vmatmul.mubr.f32.gmra.mrb[0].mxu0 %v2219
    %v2292 = vpop.f32.mrb[0].mxu0
    %v2293 = vadd.f32 0.0, %v2292
    %v2294 = vpop.f32.mrb[0].mxu0
    %2295 = vdwg.mxu0
    %v2297 = vsel %vm199, %v2288, 0
    %v2300 = vsel %vm199, %v2293, 0
    %2302 = vmatprep.subr.mxu0 0.0
    %2303 = vmatpush1.msra.mxu0 %v1395
    %2304 = vmatprep.subr.mxu0 0.0
    %2305 = vmatpush1.msra.mxu0 0.0
    %2306 = vmatprep.subr.mxu0 0.0
    %2307 = vmatpush1.msra.mxu0 0.0
    %2308 = vmatprep.subr.mxu0 0.0
    %2309 = vmatpush1.msra.mxu0 0.0
    %2310 = vmatprep.subr.mxu0 0.0
    %2311 = vmatpush1.msra.mxu0 0.0
    %2312 = vmatprep.subr.mxu0 0.0
    %2313 = vmatpush1.msra.mxu0 0.0
    %2314 = vmatprep.subr.mxu0 0.0
    %2315 = vmatpush1.msra.mxu0 0.0
    %2316 = vmatprep.subr.mxu0 0.0
    %2317 = vmatpush1.msra.mxu0 0.0
    %2318 = vmatprep.subr.mxu0 0.0
    %2319 = vmatpush1.msra.mxu0 0.0
    %2320 = vmatprep.subr.mxu0 0.0
    %2321 = vmatpush1.msra.mxu0 0.0
    %2322 = vmatprep.subr.mxu0 0.0
    %2323 = vmatpush1.msra.mxu0 0.0
    %2324 = vmatprep.subr.mxu0 0.0
    %2325 = vmatpush1.msra.mxu0 0.0
    %2326 = vmatprep.subr.mxu0 0.0
    %2327 = vmatpush1.msra.mxu0 0.0
    %2328 = vmatprep.subr.mxu0 0.0
    %2329 = vmatpush1.msra.mxu0 0.0
    %2330 = vmatprep.subr.mxu0 0.0
    %2331 = vmatpush1.msra.mxu0 0.0
    %2332 = vmatprep.subr.mxu0 0.0
    %2333 = vmatpush1.msra.mxu0 0.0
    %2334 = vmatprep.subr.mxu0 0.0
    %2335 = vmatpush1.msra.mxu0 0.0
    %2336 = vmatprep.subr.mxu0 0.0
    %2337 = vmatpush1.msra.mxu0 0.0
    %2338 = vmatprep.subr.mxu0 0.0
    %2339 = vmatpush1.msra.mxu0 0.0
    %2340 = vmatprep.subr.mxu0 0.0
    %2341 = vmatpush1.msra.mxu0 0.0
    %2342 = vmatprep.subr.mxu0 0.0
    %2343 = vmatpush1.msra.mxu0 0.0
    %2344 = vmatprep.subr.mxu0 0.0
    %2345 = vmatpush1.msra.mxu0 0.0
    %2346 = vmatprep.subr.mxu0 0.0
    %2347 = vmatpush1.msra.mxu0 0.0
    %2348 = vmatprep.subr.mxu0 0.0
    %2349 = vmatpush1.msra.mxu0 0.0
    %2350 = vmatprep.subr.mxu0 0.0
    %2351 = vmatpush1.msra.mxu0 0.0
    %2352 = vmatprep.subr.mxu0 0.0
    %2353 = vmatpush1.msra.mxu0 0.0
    %2354 = vmatprep.subr.mxu0 0.0
    %2355 = vmatpush1.msra.mxu0 0.0
    %2356 = vmatprep.subr.mxu0 0.0
    %2357 = vmatpush1.msra.mxu0 0.0
    %2358 = vmatprep.subr.mxu0 0.0
    %2359 = vmatpush1.msra.mxu0 0.0
    %2360 = vmatprep.subr.mxu0 0.0
    %2361 = vmatpush1.msra.mxu0 0.0
    %2362 = vmatprep.subr.mxu0 0.0
    %2363 = vmatpush1.msra.mxu0 0.0
    %2364 = vmatprep.subr.mxu0 0.0
    %2365 = vmatpush1.msra.mxu0 0.0
    %2366 = vmatprep.mubr.f32.mxu0 0.0
    %2367 = vmatmul.mubr.f32.gmra.mrb[0].mxu0 %v2297
    %v2368 = vpop.f32.mrb[0].mxu0
    %v2369 = vadd.f32 0.0, %v2368
    %v2370 = vpop.f32.mrb[0].mxu0
    %2371 = vmatprep.mubr.f32.mxu0 0.0
    %2372 = vmatmul.mubr.f32.gmra.mrb[0].mxu0 %v2300
    %v2373 = vpop.f32.mrb[0].mxu0
    %v2374 = vadd.f32 0.0, %v2373
    %v2375 = vpop.f32.mrb[0].mxu0
    %2376 = vdwg.mxu0
    %v2377 = vadd.f32 %v2084, %v2369
    %v2378 = vadd.f32 %v2089, %v2374
    %2379 = vrot.lane.b32.xlu0 %v1516, 104
    %v2380 = vpop.permute.xlu0 %2379
    %2381 = vrot.lane.b32.xlu0 %v1521, 104
    %v2382 = vpop.permute.xlu0 %2381
    %2383 = vrot.lane.b32.xlu0 %v1516, 72
    %v2384 = vpop.permute.xlu0 %2383
    %2385 = vrot.lane.b32.xlu0 %v1521, 72
    %v2386 = vpop.permute.xlu0 %2385
    %v2387 = vsel %vm199, %v2380, 0
    %v2389 = vsel %vm199, %v2382, 0
    %v2391 = vsel %vm199, %v2384, 0
    %v2393 = vsel %vm199, %v2386, 0
    %2395 = vmatprep.subr.mxu0 0.0
    %2396 = vmatpush1.xpose.msra.mxu0 %v2391
    %2397 = vmatprep.subr.mxu0 0.0
    %2398 = vmatpush1.xpose.msra.mxu0 %v2393
    %2399 = vmatprep.subr.mxu0 0.0
    %2400 = vmatpush1.xpose.msra.mxu0 0.0
    %2401 = vmatprep.subr.mxu0 0.0
    %2402 = vmatpush1.xpose.msra.mxu0 0.0
    %2403 = vmatprep.subr.mxu0 0.0
    %2404 = vmatpush1.xpose.msra.mxu0 0.0
    %2405 = vmatprep.subr.mxu0 0.0
    %2406 = vmatpush1.xpose.msra.mxu0 0.0
    %2407 = vmatprep.subr.mxu0 0.0
    %2408 = vmatpush1.xpose.msra.mxu0 0.0
    %2409 = vmatprep.subr.mxu0 0.0
    %2410 = vmatpush1.xpose.msra.mxu0 0.0
    %2411 = vmatprep.subr.mxu0 0.0
    %2412 = vmatpush1.xpose.msra.mxu0 0.0
    %2413 = vmatprep.subr.mxu0 0.0
    %2414 = vmatpush1.xpose.msra.mxu0 0.0
    %2415 = vmatprep.subr.mxu0 0.0
    %2416 = vmatpush1.xpose.msra.mxu0 0.0
    %2417 = vmatprep.subr.mxu0 0.0
    %2418 = vmatpush1.xpose.msra.mxu0 0.0
    %2419 = vmatprep.subr.mxu0 0.0
    %2420 = vmatpush1.xpose.msra.mxu0 0.0
    %2421 = vmatprep.subr.mxu0 0.0
    %2422 = vmatpush1.xpose.msra.mxu0 0.0
    %2423 = vmatprep.subr.mxu0 0.0
    %2424 = vmatpush1.xpose.msra.mxu0 0.0
    %2425 = vmatprep.subr.mxu0 0.0
    %2426 = vmatpush1.xpose.msra.mxu0 0.0
    %2427 = vmatprep.subr.mxu0 0.0
    %2428 = vmatpush1.xpose.msra.mxu0 0.0
    %2429 = vmatprep.subr.mxu0 0.0
    %2430 = vmatpush1.xpose.msra.mxu0 0.0
    %2431 = vmatprep.subr.mxu0 0.0
    %2432 = vmatpush1.xpose.msra.mxu0 0.0
    %2433 = vmatprep.subr.mxu0 0.0
    %2434 = vmatpush1.xpose.msra.mxu0 0.0
    %2435 = vmatprep.subr.mxu0 0.0
    %2436 = vmatpush1.xpose.msra.mxu0 0.0
    %2437 = vmatprep.subr.mxu0 0.0
    %2438 = vmatpush1.xpose.msra.mxu0 0.0
    %2439 = vmatprep.subr.mxu0 0.0
    %2440 = vmatpush1.xpose.msra.mxu0 0.0
    %2441 = vmatprep.subr.mxu0 0.0
    %2442 = vmatpush1.xpose.msra.mxu0 0.0
    %2443 = vmatprep.subr.mxu0 0.0
    %2444 = vmatpush1.xpose.msra.mxu0 0.0
    %2445 = vmatprep.subr.mxu0 0.0
    %2446 = vmatpush1.xpose.msra.mxu0 0.0
    %2447 = vmatprep.subr.mxu0 0.0
    %2448 = vmatpush1.xpose.msra.mxu0 0.0
    %2449 = vmatprep.subr.mxu0 0.0
    %2450 = vmatpush1.xpose.msra.mxu0 0.0
    %2451 = vmatprep.subr.mxu0 0.0
    %2452 = vmatpush1.xpose.msra.mxu0 0.0
    %2453 = vmatprep.subr.mxu0 0.0
    %2454 = vmatpush1.xpose.msra.mxu0 0.0
    %2455 = vmatprep.subr.mxu0 0.0
    %2456 = vmatpush1.xpose.msra.mxu0 0.0
    %2457 = vmatprep.subr.mxu0 0.0
    %2458 = vmatpush1.xpose.msra.mxu0 0.0
    %2459 = vmatprep.mubr.f32.mxu0 0.0
    %2460 = vmatmul.mubr.f32.gmra.mrb[0].mxu0 %v2387
    %v2461 = vpop.f32.mrb[0].mxu0
    %v2462 = vadd.f32 0.0, %v2461
    %v2463 = vpop.f32.mrb[0].mxu0
    %2464 = vmatprep.mubr.f32.mxu0 0.0
    %2465 = vmatmul.mubr.f32.gmra.mrb[0].mxu0 %v2389
    %v2466 = vpop.f32.mrb[0].mxu0
    %v2467 = vadd.f32 0.0, %v2466
    %v2468 = vpop.f32.mrb[0].mxu0
    %2469 = vdwg.mxu0
    %v2470 = vmul.f32 %v2462, 0.35355338
    %v2471 = vmul.f32 %v2467, 0.35355338
    %v2472 = vadd.f32 %v2470, %v54
    %v2473 = vadd.f32 %v2471, %v55
    %v2474 = vsel %vm287, %v2472, -inf
    %2475 = vmax.xlane.f32.xlu0 %v2474
    %v2476 = vpop.xlane.xlu0 %2475
    %v2477 = vsel %vm287, %v2473, -inf
    %2478 = vmax.xlane.f32.xlu0 %v2477
    %v2479 = vpop.xlane.xlu0 %2478
    %v2480 = vsub.f32 %v2472, %v2476
    %v2481 = vsub.f32 %v2473, %v2479
    %v2482 = vmul.f32 %v2480, 1.442695
    %v2483 = vpow.pop %v2482
    %v2484 = vmul.f32 %v2481, 1.442695
    %v2485 = vpow.pop %v2484
    %v2486 = vsel %vm287, %v2483, 0.0
    %2487 = vadd.xlane.f32.xlu0 %v2486
    %v2488 = vpop.xlane.xlu0 %2487
    %v2489 = vsel %vm287, %v2485, 0.0
    %2490 = vadd.xlane.f32.xlu0 %v2489
    %v2491 = vpop.xlane.xlu0 %2490
    %v2492 = vrcp.pop %v2488
    %v2493 = vmul.f32 %v2483, %v2492
    %v2494 = vrcp.pop %v2491
    %v2495 = vmul.f32 %v2485, %v2494
    %2496 = vrot.lane.b32.xlu0 %v1516, 40
    %v2497 = vpop.permute.xlu0 %2496
    %2498 = vrot.lane.b32.xlu0 %v1521, 40
    %v2499 = vpop.permute.xlu0 %2498
    %v2503 = vsel %vm287, %v2493, 0
    %v2506 = vsel %vm287, %v2495, 0
    %2508 = vmatprep.subr.mxu0 0.0
    %2509 = vmatpush1.msra.mxu0 %v2497
    %2510 = vmatprep.subr.mxu0 0.0
    %2511 = vmatpush1.msra.mxu0 %v2499
    %2512 = vmatprep.subr.mxu0 0.0
    %2513 = vmatpush1.msra.mxu0 0.0
    %2514 = vmatprep.subr.mxu0 0.0
    %2515 = vmatpush1.msra.mxu0 0.0
    %2516 = vmatprep.subr.mxu0 0.0
    %2517 = vmatpush1.msra.mxu0 0.0
    %2518 = vmatprep.subr.mxu0 0.0
    %2519 = vmatpush1.msra.mxu0 0.0
    %2520 = vmatprep.subr.mxu0 0.0
    %2521 = vmatpush1.msra.mxu0 0.0
    %2522 = vmatprep.subr.mxu0 0.0
    %2523 = vmatpush1.msra.mxu0 0.0
    %2524 = vmatprep.subr.mxu0 0.0
    %2525 = vmatpush1.msra.mxu0 0.0
    %2526 = vmatprep.subr.mxu0 0.0
    %2527 = vmatpush1.msra.mxu0 0.0
    %2528 = vmatprep.subr.mxu0 0.0
    %2529 = vmatpush1.msra.mxu0 0.0
    %2530 = vmatprep.subr.mxu0 0.0
    %2531 = vmatpush1.msra.mxu0 0.0
    %2532 = vmatprep.subr.mxu0 0.0
    %2533 = vmatpush1.msra.mxu0 0.0
    %2534 = vmatprep.subr.mxu0 0.0
    %2535 = vmatpush1.msra.mxu0 0.0
    %2536 = vmatprep.subr.mxu0 0.0
    %2537 = vmatpush1.msra.mxu0 0.0
    %2538 = vmatprep.subr.mxu0 0.0
    %2539 = vmatpush1.msra.mxu0 0.0
    %2540 = vmatprep.subr.mxu0 0.0
    %2541 = vmatpush1.msra.mxu0 0.0
    %2542 = vmatprep.subr.mxu0 0.0
    %2543 = vmatpush1.msra.mxu0 0.0
    %2544 = vmatprep.subr.mxu0 0.0
    %2545 = vmatpush1.msra.mxu0 0.0
    %2546 = vmatprep.subr.mxu0 0.0
    %2547 = vmatpush1.msra.mxu0 0.0
    %2548 = vmatprep.subr.mxu0 0.0
    %2549 = vmatpush1.msra.mxu0 0.0
    %2550 = vmatprep.subr.mxu0 0.0
    %2551 = vmatpush1.msra.mxu0 0.0
    %2552 = vmatprep.subr.mxu0 0.0
    %2553 = vmatpush1.msra.mxu0 0.0
    %2554 = vmatprep.subr.mxu0 0.0
    %2555 = vmatpush1.msra.mxu0 0.0
    %2556 = vmatprep.subr.mxu0 0.0
    %2557 = vmatpush1.msra.mxu0 0.0
    %2558 = vmatprep.subr.mxu0 0.0
    %2559 = vmatpush1.msra.mxu0 0.0
    %2560 = vmatprep.subr.mxu0 0.0
    %2561 = vmatpush1.msra.mxu0 0.0
    %2562 = vmatprep.subr.mxu0 0.0
    %2563 = vmatpush1.msra.mxu0 0.0
    %2564 = vmatprep.subr.mxu0 0.0
    %2565 = vmatpush1.msra.mxu0 0.0
    %2566 = vmatprep.subr.mxu0 0.0
    %2567 = vmatpush1.msra.mxu0 0.0
    %2568 = vmatprep.subr.mxu0 0.0
    %2569 = vmatpush1.msra.mxu0 0.0
    %2570 = vmatprep.subr.mxu0 0.0
    %2571 = vmatpush1.msra.mxu0 0.0
    %2572 = vmatprep.mubr.f32.mxu0 0.0
    %2573 = vmatmul.mubr.f32.gmra.mrb[0].mxu0 %v2503
    %v2574 = vpop.f32.mrb[0].mxu0
    %v2575 = vadd.f32 0.0, %v2574
    %v2576 = vpop.f32.mrb[0].mxu0
    %2577 = vmatprep.mubr.f32.mxu0 0.0
    %2578 = vmatmul.mubr.f32.gmra.mrb[0].mxu0 %v2506
    %v2579 = vpop.f32.mrb[0].mxu0
    %v2580 = vadd.f32 0.0, %v2579
    %v2581 = vpop.f32.mrb[0].mxu0
    %2582 = vdwg.mxu0
    %v2584 = vsel %vm199, %v2575, 0
    %v2587 = vsel %vm199, %v2580, 0
    %2589 = vmatprep.subr.mxu0 0.0
    %2590 = vmatpush1.msra.mxu0 %v1396
    %2591 = vmatprep.subr.mxu0 0.0
    %2592 = vmatpush1.msra.mxu0 0.0
    %2593 = vmatprep.subr.mxu0 0.0
    %2594 = vmatpush1.msra.mxu0 0.0
    %2595 = vmatprep.subr.mxu0 0.0
    %2596 = vmatpush1.msra.mxu0 0.0
    %2597 = vmatprep.subr.mxu0 0.0
    %2598 = vmatpush1.msra.mxu0 0.0
    %2599 = vmatprep.subr.mxu0 0.0
    %2600 = vmatpush1.msra.mxu0 0.0
    %2601 = vmatprep.subr.mxu0 0.0
    %2602 = vmatpush1.msra.mxu0 0.0
    %2603 = vmatprep.subr.mxu0 0.0
    %2604 = vmatpush1.msra.mxu0 0.0
    %2605 = vmatprep.subr.mxu0 0.0
    %2606 = vmatpush1.msra.mxu0 0.0
    %2607 = vmatprep.subr.mxu0 0.0
    %2608 = vmatpush1.msra.mxu0 0.0
    %2609 = vmatprep.subr.mxu0 0.0
    %2610 = vmatpush1.msra.mxu0 0.0
    %2611 = vmatprep.subr.mxu0 0.0
    %2612 = vmatpush1.msra.mxu0 0.0
    %2613 = vmatprep.subr.mxu0 0.0
    %2614 = vmatpush1.msra.mxu0 0.0
    %2615 = vmatprep.subr.mxu0 0.0
    %2616 = vmatpush1.msra.mxu0 0.0
    %2617 = vmatprep.subr.mxu0 0.0
    %2618 = vmatpush1.msra.mxu0 0.0
    %2619 = vmatprep.subr.mxu0 0.0
    %2620 = vmatpush1.msra.mxu0 0.0
    %2621 = vmatprep.subr.mxu0 0.0
    %2622 = vmatpush1.msra.mxu0 0.0
    %2623 = vmatprep.subr.mxu0 0.0
    %2624 = vmatpush1.msra.mxu0 0.0
    %2625 = vmatprep.subr.mxu0 0.0
    %2626 = vmatpush1.msra.mxu0 0.0
    %2627 = vmatprep.subr.mxu0 0.0
    %2628 = vmatpush1.msra.mxu0 0.0
    %2629 = vmatprep.subr.mxu0 0.0
    %2630 = vmatpush1.msra.mxu0 0.0
    %2631 = vmatprep.subr.mxu0 0.0
    %2632 = vmatpush1.msra.mxu0 0.0
    %2633 = vmatprep.subr.mxu0 0.0
    %2634 = vmatpush1.msra.mxu0 0.0
    %2635 = vmatprep.subr.mxu0 0.0
    %2636 = vmatpush1.msra.mxu0 0.0
    %2637 = vmatprep.subr.mxu0 0.0
    %2638 = vmatpush1.msra.mxu0 0.0
    %2639 = vmatprep.subr.mxu0 0.0
    %2640 = vmatpush1.msra.mxu0 0.0
    %2641 = vmatprep.subr.mxu0 0.0
    %2642 = vmatpush1.msra.mxu0 0.0
    %2643 = vmatprep.subr.mxu0 0.0
    %2644 = vmatpush1.msra.mxu0 0.0
    %2645 = vmatprep.subr.mxu0 0.0
    %2646 = vmatpush1.msra.mxu0 0.0
    %2647 = vmatprep.subr.mxu0 0.0
    %2648 = vmatpush1.msra.mxu0 0.0
    %2649 = vmatprep.subr.mxu0 0.0
    %2650 = vmatpush1.msra.mxu0 0.0
    %2651 = vmatprep.subr.mxu0 0.0
    %2652 = vmatpush1.msra.mxu0 0.0
    %2653 = vmatprep.mubr.f32.mxu0 0.0
    %2654 = vmatmul.mubr.f32.gmra.mrb[0].mxu0 %v2584
    %v2655 = vpop.f32.mrb[0].mxu0
    %v2656 = vadd.f32 0.0, %v2655
    %v2657 = vpop.f32.mrb[0].mxu0
    %2658 = vmatprep.mubr.f32.mxu0 0.0
    %2659 = vmatmul.mubr.f32.gmra.mrb[0].mxu0 %v2587
    %v2660 = vpop.f32.mrb[0].mxu0
    %v2661 = vadd.f32 0.0, %v2660
    %v2662 = vpop.f32.mrb[0].mxu0
    %2663 = vdwg.mxu0
    %v2664 = vadd.f32 %v2377, %v2656
    %v2665 = vadd.f32 %v2378, %v2661
    %v2666 = vlaneseq
    %v2667 = vshrl.u32 %v2666, 7
    %v2668 = vsub.s32 2, %v2667
    %v2669 = vrot.slane %v1398, %v2668
    %v2670 = vadd.f32 %v2664, %v2669
    %v2671 = vadd.f32 %v2665, %v2669
    %v2672 = vadd.f32 %v2670, %v1383
    %v2673 = vadd.f32 %v2671, %v1384
    %v2674 = vsel %vm66, %v2672, 0.0
    %2675 = vadd.xlane.f32.xlu0 %v2674
    %v2676 = vpop.xlane.xlu0 %2675
    %v2677 = vsel %vm66, %v2673, 0.0
    %2678 = vadd.xlane.f32.xlu0 %v2677
    %v2679 = vpop.xlane.xlu0 %2678
    %v2680 = vmul.f32 %v2676, %v73
    %v2681 = vmul.f32 %v2679, %v73
    %v2682 = vsub.f32 %v2672, %v2680
    %v2683 = vsub.f32 %v2673, %v2681
    %v2684 = vmul.f32 %v2682, %v2682
    %v2685 = vmul.f32 %v2683, %v2683
    %v2686 = vsel %vm66, %v2684, 0.0
    %2687 = vadd.xlane.f32.xlu0 %v2686
    %v2688 = vpop.xlane.xlu0 %2687
    %v2689 = vsel %vm66, %v2685, 0.0
    %2690 = vadd.xlane.f32.xlu0 %v2689
    %v2691 = vpop.xlane.xlu0 %2690
    %v2692 = vmul.f32 %v2688, %v73
    %v2693 = vmul.f32 %v2691, %v73
    %v2694 = vadd.f32 %v2692, 1e-05
    %v2695 = vadd.f32 %v2693, 1e-05
    %v2696 = vrsqrt.pop %v2694
    %v2697 = vrsqrt.pop %v2695
    %v2698 = vmul.f32 %v2682, %v2696
    %v2699 = vmul.f32 %v2683, %v2697
    %v2700 = vlaneseq
    %v2701 = vshrl.u32 %v2700, 7
    %v2702 = vsub.s32 3, %v2701
    %v2703 = vrot.slane %v1398, %v2702
    %v2704 = vmul.f32 %v2698, %v2703
    %v2705 = vmul.f32 %v2699, %v2703
    %v2706 = vlaneseq
    %v2707 = vshrl.u32 %v2706, 7
    %v2708 = vsub.s32 4, %v2707
    %v2709 = vrot.slane %v1398, %v2708
    %v2710 = vadd.f32 %v2704, %v2709
    %v2711 = vadd.f32 %v2705, %v2709
    %v2712 = vadd.f32 %v2710, %v2672
    %v2713 = vadd.f32 %v2711, %v2673
    %2714 = vst.msk [vmem:[#allocation7] sm:$0xff] %vm66, %v2712
    %2715 = vst.msk [vmem:[#allocation7 + $0x8] sm:$0xff] %vm66, %v2713
    // Predicated region
    $region34: #{transformer_encoder.1} parent=1 // pred_check
      _
    $region35: #{transformer_encoder.1} parent=1 // pred_check_branch
      %2717 = sbr.rel (0) target = $region37
    $region36: #{transformer_encoder.1} parent=1 // pred_region
      %s2719 = ssub.s32 256, 256
      %2720 = vsyncadd [#allocation4], %s2719
      %s2721 = sshll.u32 [#allocation7], 4
      %s2722 = int_to_ptr.vmem [resolvable:$true] %s2721
      %2727 = dma.vmem_to_hbm [thread:$0]  %s2722, 256, %s6, [#allocation4], 128, 128, 8
    $region37: #{transformer_encoder.1} parent=1 // pred_fallthru
      _
    // Predicated region
    $region38: #{transformer_encoder.1} parent=1 // pred_check
      _
    $region39: #{transformer_encoder.1} parent=1 // pred_check_branch
      %2729 = sbr.rel (0) target = $region41
    $region40: #{transformer_encoder.1} parent=1 // pred_region
      %2730 = dma.done [#allocation4], 256
    $region41: #{transformer_encoder.1} parent=1 // pred_fallthru
      _
    %2731 = vsyncpa [#allocation3], 1
    %2732 = vsyncpa [#allocation6], 1
    %2733 = vsyncpa [#allocation4], 1

</llo_original>
